<compile_context>
chip_gen: v5e
topology: v5e:2x2
jax: 0.10.0
libtpu: 0.0.40
codegen_flags: <defaults>
</compile_context>

<pallas_src>
import functools

import jax
import jax.numpy as jnp
from jax.experimental import pallas as pl
from jax.experimental.pallas import tpu as pltpu

# ---------------- config (synthetic, small) ----------------
INPUT_SIZE = 8
HIDDEN = 32          # wiring.units
MOTOR = 16           # wiring.output_dim == attention embed dim
N_LAYERS_CFC = 2
NUM_HEADS = 2
OUTPUT_SIZE = 4
LAYERS_FCN = 3
WIDTH_FCN = 32
DECAY_FCN = 2
LEAKY_SLOPE = 0.01   # activation == 'relu' -> nn.LeakyReLU()
LN_EPS = 1e-6        # spec uses nn.LayerNorm(layer_out, eps=1e-06)

N_PER_LAYER = 14     # h0, c0, w_in, b_in, w_hh, w_ch, wq, bq, wk, bk, wv, bv, wo, bo
N_FCN = 8            # w1, b1, w2, b2, ln_g, ln_b, w3, b3


def _vmem_specs(n):
    return [pl.BlockSpec(memory_space=pltpu.MemorySpace.VMEM) for _ in range(n)]


# ---------------- single fused kernel ----------------------------------------
def cfc_net_kernel(*refs, batch, seq_len):
    B, S = batch, seq_len
    H, M, E = HIDDEN, MOTOR, MOTOR

    # ---- unpack refs: inputs, then outputs ----
    x_ref, t_ref = refs[0], refs[1]
    pos = 2
    layer_refs = []
    for _ in range(N_LAYERS_CFC):
        layer_refs.append(refs[pos:pos + N_PER_LAYER])
        pos += N_PER_LAYER
    fcn_refs = refs[pos:pos + N_FCN]
    pos += N_FCN
    out_ref = refs[pos]
    hN_refs = refs[pos + 1: pos + 1 + N_LAYERS_CFC]
    cN_refs = refs[pos + 1 + N_LAYERS_CFC: pos + 1 + 2 * N_LAYERS_CFC]

    def step_rows(flat, s):
        # flat: (B*S, D) batch-major rows; gather the B rows of timestep s.
        return jnp.concatenate(
            [flat[b * S + s: b * S + s + 1, :] for b in range(B)], axis=0)

    # per-step timespans, computed once and reused by every layer
    t_all = t_ref[...]                                   # (B*S, 1)
    ts_list = [step_rows(t_all, s) for s in range(S)]    # each (B, 1)

    x_flat = x_ref[...]                                  # (B*S, Fin), batch-major

    for li in range(N_LAYERS_CFC):
        (h0_ref, c0_ref, w_in_ref, b_in_ref, w_hh_ref, w_ch_ref,
         wq_ref, bq_ref, wk_ref, bk_ref, wv_ref, bv_ref,
         wo_ref, bo_ref) = layer_refs[li]

        # ---- hoisted input projections: [w_ih | w_cfc_x] in one matmul ----
        # columns [0:4H) -> LSTM gates x-part (+bias), [4H:8H) -> CfC x-part (+bias)
        xp = (jnp.dot(x_flat, w_in_ref[...],
                      preferred_element_type=jnp.float32) + b_in_ref[...])

        w_hh = w_hh_ref[...]
        w_ch = w_ch_ref[...]
        h = h0_ref[...]                                  # (B, H)
        c = c0_ref[...]                                  # (B, H)

        motor_list = []
        for s in range(S):                               # fully unrolled recurrence
            xp_s = step_rows(xp, s)                      # (B, 8H)
            ts = ts_list[s]                              # (B, 1)

            # --- LSTM cell (mixed memory), PyTorch gate order i, f, g, o ---
            g = xp_s[:, :4 * H] + jnp.dot(h, w_hh,
                                          preferred_element_type=jnp.float32)
            i_g = jax.nn.sigmoid(g[:, 0 * H:1 * H])
            f_g = jax.nn.sigmoid(g[:, 1 * H:2 * H])
            g_g = jnp.tanh(g[:, 2 * H:3 * H])
            o_g = jax.nn.sigmoid(g[:, 3 * H:4 * H])
            c = f_g * c + i_g * g_g
            h_lstm = o_g * jnp.tanh(c)

            # --- CfC cell (dense approx): ff1 | ff2 | time_a | time_b ---
            z = xp_s[:, 4 * H:] + jnp.dot(h_lstm, w_ch,
                                          preferred_element_type=jnp.float32)
            ff1 = jnp.tanh(z[:, 0:H])
            ff2 = jnp.tanh(z[:, H:2 * H])
            t_a = z[:, 2 * H:3 * H]
            t_b = z[:, 3 * H:4 * H]
            t_interp = jax.nn.sigmoid(t_a * ts + t_b)
            h = ff1 * (1.0 - t_interp) + t_interp * ff2

            # motor neurons = first M units (wiring output_dim)
            motor_list.append(h[:, :M])

        hN_refs[li][...] = h
        cN_refs[li][...] = c

        # ---- multi-head self attention over the motor sequence (q=k=v) ----
        # batch-major flat sequence (B*S, E), assembled in VMEM/vregs only
        seq = jnp.concatenate(
            [jnp.concatenate([motor_list[s][b:b + 1, :] for s in range(S)],
                             axis=0)
             for b in range(B)], axis=0)

        q = jnp.dot(seq, wq_ref[...], preferred_element_type=jnp.float32) + bq_ref[...]
        k = jnp.dot(seq, wk_ref[...], preferred_element_type=jnp.float32) + bk_ref[...]
        v = jnp.dot(seq, wv_ref[...], preferred_element_type=jnp.float32) + bv_ref[...]

        hd = E // NUM_HEADS
        scale = 1.0 / (hd ** 0.5)
        o_rows = []
        for b in range(B):                               # static, tiny batch
            qb = q[b * S:(b + 1) * S, :]
            kb = k[b * S:(b + 1) * S, :]
            vb = v[b * S:(b + 1) * S, :]
            heads = []
            for hh in range(NUM_HEADS):                  # static, tiny head count
                lo, hi = hh * hd, (hh + 1) * hd
                sc = jnp.einsum('qd,kd->qk', qb[:, lo:hi], kb[:, lo:hi],
                                preferred_element_type=jnp.float32) * scale
                p = jax.nn.softmax(sc, axis=-1)
                heads.append(jnp.dot(p, vb[:, lo:hi],
                                     preferred_element_type=jnp.float32))
            o_rows.append(jnp.concatenate(heads, axis=-1))   # (S, E) heads on lanes
        o = jnp.concatenate(o_rows, axis=0)                  # (B*S, E)
        # single output matmul with the full Wo (no per-head accumulate)
        x_flat = (jnp.dot(o, wo_ref[...],
                          preferred_element_type=jnp.float32) + bo_ref[...])

    # ---- FCN head on the last timestep --------------------------------------
    (w1_ref, b1_ref, w2_ref, b2_ref,
     g_ref, beta_ref, w3_ref, b3_ref) = fcn_refs
    x_last = step_rows(x_flat, S - 1)                        # (B, E)
    h1 = jnp.dot(x_last, w1_ref[...], preferred_element_type=jnp.float32) + b1_ref[...]
    h2 = jnp.dot(h1, w2_ref[...], preferred_element_type=jnp.float32) + b2_ref[...]
    mean = jnp.mean(h2, axis=-1, keepdims=True)
    var = jnp.mean((h2 - mean) ** 2, axis=-1, keepdims=True)
    hn = (h2 - mean) * jax.lax.rsqrt(var + LN_EPS) * g_ref[...] + beta_ref[...]
    act = jnp.where(hn >= 0.0, hn, LEAKY_SLOPE * hn)
    out_ref[...] = (jnp.dot(act, w3_ref[...],
                            preferred_element_type=jnp.float32) + b3_ref[...])


# ---------------- full network forward (single pallas_call) ------------------
def cfc_net_forward(params, x, t, state):
    B, S, Fin = x.shape
    h, c = state                                         # (B, n_layers, H)

    args = [x.reshape(B * S, Fin), t.reshape(B * S, 1)]
    for li, lp in enumerate(params['layers']):
        w_in = jnp.concatenate([lp['w_ih'], lp['w_cfc_x']], axis=1)   # (Fin, 8H)
        b_in = jnp.concatenate([lp['b_lstm'], lp['b_cfc']], axis=1)   # (1, 8H)
        args += [h[:, li], c[:, li], w_in, b_in, lp['w_hh'], lp['w_cfc_h'],
                 lp['wq'], lp['bq'], lp['wk'], lp['bk'],
                 lp['wv'], lp['bv'], lp['wo'], lp['bo']]
    f = params['fcn']
    args += [f['w1'], f['b1'], f['w2'], f['b2'],
             f['ln_g'], f['ln_b'], f['w3'], f['b3']]

    n_out = 1 + 2 * N_LAYERS_CFC
    out_shapes = tuple(
        [jax.ShapeDtypeStruct((B, OUTPUT_SIZE), jnp.float32)]
        + [jax.ShapeDtypeStruct((B, HIDDEN), jnp.float32)] * (2 * N_LAYERS_CFC))

    kernel = functools.partial(cfc_net_kernel, batch=B, seq_len=S)
    results = pl.pallas_call(
        kernel,
        in_specs=_vmem_specs(len(args)),
        out_specs=tuple(_vmem_specs(n_out)),
        out_shape=out_shapes,
    )(*args)

    out = results[0]
    hs = results[1:1 + N_LAYERS_CFC]
    cs = results[1 + N_LAYERS_CFC:]
    new_h = jnp.stack(hs, axis=1)                        # (B, n_layers, H)
    new_c = jnp.stack(cs, axis=1)
    return out, (new_h, new_c)


# ---------------- deterministic parameter init --------------------------------
def init_params(key):
    keys = iter(jax.random.split(key, 128))

    def nrm(shape, scale):
        return jax.random.normal(next(keys), shape, jnp.float32) * scale

    layers = []
    H = HIDDEN
    for li in range(N_LAYERS_CFC):
        fin = INPUT_SIZE if li == 0 else MOTOR
        lp = {
            # LSTM (mixed memory): weight_ih kaiming-normal, biases 0
            'w_ih': nrm((fin, 4 * H), (2.0 / fin) ** 0.5),
            # TODO(synk): orthogonal init for weight_hh approximated
            'w_hh': nrm((H, 4 * H), 1.0 / (H ** 0.5)),
            'b_lstm': jnp.zeros((1, 4 * H), jnp.float32),
            # CfC cell ff1|ff2|time_a|time_b stacked along output axis
            'w_cfc_x': nrm((fin, 4 * H), 1.0 / (fin ** 0.5)),
            'w_cfc_h': nrm((H, 4 * H), 1.0 / (H ** 0.5)),
            'b_cfc': jnp.zeros((1, 4 * H), jnp.float32),
            # attention projections (embed = MOTOR)
            'wq': nrm((MOTOR, MOTOR), 1.0 / (MOTOR ** 0.5)),
            'wk': nrm((MOTOR, MOTOR), 1.0 / (MOTOR ** 0.5)),
            'wv': nrm((MOTOR, MOTOR), 1.0 / (MOTOR ** 0.5)),
            'wo': nrm((MOTOR, MOTOR), 1.0 / (MOTOR ** 0.5)),
            'bq': jnp.zeros((1, MOTOR), jnp.float32),
            'bk': jnp.zeros((1, MOTOR), jnp.float32),
            'bv': jnp.zeros((1, MOTOR), jnp.float32),
            'bo': jnp.zeros((1, MOTOR), jnp.float32),
        }
        layers.append(lp)

    W1 = WIDTH_FCN
    W2 = WIDTH_FCN // DECAY_FCN
    fcn = {
        # init_weight_nn: weights ~ N(0, 1), biases 0
        'w1': nrm((MOTOR, W1), 1.0),
        'b1': jnp.zeros((1, W1), jnp.float32),
        'w2': nrm((W1, W2), 1.0),
        'b2': jnp.zeros((1, W2), jnp.float32),
        'ln_g': jnp.ones((1, W2), jnp.float32),
        'ln_b': jnp.zeros((1, W2), jnp.float32),
        'w3': nrm((W2, OUTPUT_SIZE), 1.0),
        'b3': jnp.zeros((1, OUTPUT_SIZE), jnp.float32),
    }
    return {'layers': layers, 'fcn': fcn}


# ---------------- main --------------------------------------------------------
if __name__ == "__main__":
    key = jax.random.PRNGKey(0)
    k_p, k_x, k_t = jax.random.split(key, 3)

    B, S = 2, 8
    params = init_params(k_p)

    x = jax.random.normal(k_x, (B, S, INPUT_SIZE), jnp.float32)
    t = jnp.abs(jax.random.normal(k_t, (B, S), jnp.float32)) * 0.1 + 0.05
    h0 = jnp.zeros((B, N_LAYERS_CFC, HIDDEN), jnp.float32)
    c0 = jnp.zeros((B, N_LAYERS_CFC, HIDDEN), jnp.float32)

    fwd = jax.jit(cfc_net_forward)
    out, (new_h, new_c) = fwd(params, x, t, (h0, c0))
    jax.block_until_ready((out, new_h, new_c))

    assert out.shape == (B, OUTPUT_SIZE)
    assert new_h.shape == (B, N_LAYERS_CFC, HIDDEN)
    assert new_c.shape == (B, N_LAYERS_CFC, HIDDEN)
    print("KERNEL_OK")
</pallas_src>

<mosaic_0001>
module attributes {stable_mosaic.version = 11 : i64} {
  func.func @cfc_net_kernel(%arg0: memref<16x8xf32, #tpu.memory_space<vmem>>, %arg1: memref<16x1xf32, #tpu.memory_space<vmem>>, %arg2: memref<2x32xf32, #tpu.memory_space<vmem>>, %arg3: memref<2x32xf32, #tpu.memory_space<vmem>>, %arg4: memref<8x256xf32, #tpu.memory_space<vmem>>, %arg5: memref<1x256xf32, #tpu.memory_space<vmem>>, %arg6: memref<32x128xf32, #tpu.memory_space<vmem>>, %arg7: memref<32x128xf32, #tpu.memory_space<vmem>>, %arg8: memref<16x16xf32, #tpu.memory_space<vmem>>, %arg9: memref<1x16xf32, #tpu.memory_space<vmem>>, %arg10: memref<16x16xf32, #tpu.memory_space<vmem>>, %arg11: memref<1x16xf32, #tpu.memory_space<vmem>>, %arg12: memref<16x16xf32, #tpu.memory_space<vmem>>, %arg13: memref<1x16xf32, #tpu.memory_space<vmem>>, %arg14: memref<16x16xf32, #tpu.memory_space<vmem>>, %arg15: memref<1x16xf32, #tpu.memory_space<vmem>>, %arg16: memref<2x32xf32, #tpu.memory_space<vmem>>, %arg17: memref<2x32xf32, #tpu.memory_space<vmem>>, %arg18: memref<16x256xf32, #tpu.memory_space<vmem>>, %arg19: memref<1x256xf32, #tpu.memory_space<vmem>>, %arg20: memref<32x128xf32, #tpu.memory_space<vmem>>, %arg21: memref<32x128xf32, #tpu.memory_space<vmem>>, %arg22: memref<16x16xf32, #tpu.memory_space<vmem>>, %arg23: memref<1x16xf32, #tpu.memory_space<vmem>>, %arg24: memref<16x16xf32, #tpu.memory_space<vmem>>, %arg25: memref<1x16xf32, #tpu.memory_space<vmem>>, %arg26: memref<16x16xf32, #tpu.memory_space<vmem>>, %arg27: memref<1x16xf32, #tpu.memory_space<vmem>>, %arg28: memref<16x16xf32, #tpu.memory_space<vmem>>, %arg29: memref<1x16xf32, #tpu.memory_space<vmem>>, %arg30: memref<16x32xf32, #tpu.memory_space<vmem>>, %arg31: memref<1x32xf32, #tpu.memory_space<vmem>>, %arg32: memref<32x16xf32, #tpu.memory_space<vmem>>, %arg33: memref<1x16xf32, #tpu.memory_space<vmem>>, %arg34: memref<1x16xf32, #tpu.memory_space<vmem>>, %arg35: memref<1x16xf32, #tpu.memory_space<vmem>>, %arg36: memref<16x4xf32, #tpu.memory_space<vmem>>, %arg37: memref<1x4xf32, #tpu.memory_space<vmem>>, %arg38: memref<2x4xf32, #tpu.memory_space<vmem>>, %arg39: memref<2x32xf32, #tpu.memory_space<vmem>>, %arg40: memref<2x32xf32, #tpu.memory_space<vmem>>, %arg41: memref<2x32xf32, #tpu.memory_space<vmem>>, %arg42: memref<2x32xf32, #tpu.memory_space<vmem>>) attributes {dimension_semantics = [], scalar_prefetch = 0 : i64, scratch_operands = 0 : i64, tpu.core_type = #tpu.core_type<tc>} {
    %c0 = arith.constant 0 : index
    %c0_0 = arith.constant 0 : index
    %0 = vector.load %arg1[%c0, %c0_0] : memref<16x1xf32, #tpu.memory_space<vmem>>, vector<16x1xf32>
    %1 = vector.extract_strided_slice %0 {offsets = [0, 0], sizes = [1, 1], strides = [1, 1]} : vector<16x1xf32> to vector<1x1xf32>
    %2 = vector.extract_strided_slice %0 {offsets = [8, 0], sizes = [1, 1], strides = [1, 1]} : vector<16x1xf32> to vector<1x1xf32>
    %3 = tpu.concatenate %1, %2 in 0 : vector<1x1xf32>, vector<1x1xf32> -> vector<2x1xf32>
    %4 = vector.extract_strided_slice %0 {offsets = [1, 0], sizes = [1, 1], strides = [1, 1]} : vector<16x1xf32> to vector<1x1xf32>
    %5 = vector.extract_strided_slice %0 {offsets = [9, 0], sizes = [1, 1], strides = [1, 1]} : vector<16x1xf32> to vector<1x1xf32>
    %6 = tpu.concatenate %4, %5 in 0 : vector<1x1xf32>, vector<1x1xf32> -> vector<2x1xf32>
    %7 = vector.extract_strided_slice %0 {offsets = [2, 0], sizes = [1, 1], strides = [1, 1]} : vector<16x1xf32> to vector<1x1xf32>
    %8 = vector.extract_strided_slice %0 {offsets = [10, 0], sizes = [1, 1], strides = [1, 1]} : vector<16x1xf32> to vector<1x1xf32>
    %9 = tpu.concatenate %7, %8 in 0 : vector<1x1xf32>, vector<1x1xf32> -> vector<2x1xf32>
    %10 = vector.extract_strided_slice %0 {offsets = [3, 0], sizes = [1, 1], strides = [1, 1]} : vector<16x1xf32> to vector<1x1xf32>
    %11 = vector.extract_strided_slice %0 {offsets = [11, 0], sizes = [1, 1], strides = [1, 1]} : vector<16x1xf32> to vector<1x1xf32>
    %12 = tpu.concatenate %10, %11 in 0 : vector<1x1xf32>, vector<1x1xf32> -> vector<2x1xf32>
    %13 = vector.extract_strided_slice %0 {offsets = [4, 0], sizes = [1, 1], strides = [1, 1]} : vector<16x1xf32> to vector<1x1xf32>
    %14 = vector.extract_strided_slice %0 {offsets = [12, 0], sizes = [1, 1], strides = [1, 1]} : vector<16x1xf32> to vector<1x1xf32>
    %15 = tpu.concatenate %13, %14 in 0 : vector<1x1xf32>, vector<1x1xf32> -> vector<2x1xf32>
    %16 = vector.extract_strided_slice %0 {offsets = [5, 0], sizes = [1, 1], strides = [1, 1]} : vector<16x1xf32> to vector<1x1xf32>
    %17 = vector.extract_strided_slice %0 {offsets = [13, 0], sizes = [1, 1], strides = [1, 1]} : vector<16x1xf32> to vector<1x1xf32>
    %18 = tpu.concatenate %16, %17 in 0 : vector<1x1xf32>, vector<1x1xf32> -> vector<2x1xf32>
    %19 = vector.extract_strided_slice %0 {offsets = [6, 0], sizes = [1, 1], strides = [1, 1]} : vector<16x1xf32> to vector<1x1xf32>
    %20 = vector.extract_strided_slice %0 {offsets = [14, 0], sizes = [1, 1], strides = [1, 1]} : vector<16x1xf32> to vector<1x1xf32>
    %21 = tpu.concatenate %19, %20 in 0 : vector<1x1xf32>, vector<1x1xf32> -> vector<2x1xf32>
    %22 = vector.extract_strided_slice %0 {offsets = [7, 0], sizes = [1, 1], strides = [1, 1]} : vector<16x1xf32> to vector<1x1xf32>
    %23 = vector.extract_strided_slice %0 {offsets = [15, 0], sizes = [1, 1], strides = [1, 1]} : vector<16x1xf32> to vector<1x1xf32>
    %24 = tpu.concatenate %22, %23 in 0 : vector<1x1xf32>, vector<1x1xf32> -> vector<2x1xf32>
    %c0_1 = arith.constant 0 : index
    %c0_2 = arith.constant 0 : index
    %25 = vector.load %arg0[%c0_1, %c0_2] : memref<16x8xf32, #tpu.memory_space<vmem>>, vector<16x8xf32>
    %c0_3 = arith.constant 0 : index
    %c0_4 = arith.constant 0 : index
    %26 = vector.load %arg4[%c0_3, %c0_4] : memref<8x256xf32, #tpu.memory_space<vmem>>, vector<8x256xf32>
    %cst = arith.constant dense<0.000000e+00> : vector<16x256xf32>
    %27 = tpu.matmul %25, %26, %cst {dimension_numbers = #tpu.dot_dimension_numbers<[1], [0], [0], [1], [0, 0, 1, 1], [], []>} : vector<16x8xf32>, vector<8x256xf32>, vector<16x256xf32> -> vector<16x256xf32>
    %c0_5 = arith.constant 0 : index
    %c0_6 = arith.constant 0 : index
    %28 = vector.load %arg5[%c0_5, %c0_6] : memref<1x256xf32, #tpu.memory_space<vmem>>, vector<1x256xf32>
    %29 = vector.broadcast %28 : vector<1x256xf32> to vector<16x256xf32>
    %30 = arith.addf %27, %29 : vector<16x256xf32>
    %c0_7 = arith.constant 0 : index
    %c0_8 = arith.constant 0 : index
    %31 = vector.load %arg6[%c0_7, %c0_8] : memref<32x128xf32, #tpu.memory_space<vmem>>, vector<32x128xf32>
    %c0_9 = arith.constant 0 : index
    %c0_10 = arith.constant 0 : index
    %32 = vector.load %arg7[%c0_9, %c0_10] : memref<32x128xf32, #tpu.memory_space<vmem>>, vector<32x128xf32>
    %c0_11 = arith.constant 0 : index
    %c0_12 = arith.constant 0 : index
    %33 = vector.load %arg2[%c0_11, %c0_12] : memref<2x32xf32, #tpu.memory_space<vmem>>, vector<2x32xf32>
    %c0_13 = arith.constant 0 : index
    %c0_14 = arith.constant 0 : index
    %34 = vector.load %arg3[%c0_13, %c0_14] : memref<2x32xf32, #tpu.memory_space<vmem>>, vector<2x32xf32>
    %35 = vector.extract_strided_slice %30 {offsets = [0, 0], sizes = [1, 256], strides = [1, 1]} : vector<16x256xf32> to vector<1x256xf32>
    %36 = vector.extract_strided_slice %30 {offsets = [8, 0], sizes = [1, 256], strides = [1, 1]} : vector<16x256xf32> to vector<1x256xf32>
    %37 = tpu.concatenate %35, %36 in 0 : vector<1x256xf32>, vector<1x256xf32> -> vector<2x256xf32>
    %38 = vector.extract_strided_slice %37 {offsets = [0, 0], sizes = [2, 128], strides = [1, 1]} : vector<2x256xf32> to vector<2x128xf32>
    %cst_15 = arith.constant dense<0.000000e+00> : vector<2x128xf32>
    %39 = tpu.matmul %33, %31, %cst_15 {dimension_numbers = #tpu.dot_dimension_numbers<[1], [0], [0], [1], [0, 0, 1, 1], [], []>} : vector<2x32xf32>, vector<32x128xf32>, vector<2x128xf32> -> vector<2x128xf32>
    %40 = arith.addf %38, %39 : vector<2x128xf32>
    %41 = vector.extract_strided_slice %40 {offsets = [0, 0], sizes = [2, 32], strides = [1, 1]} : vector<2x128xf32> to vector<2x32xf32>
    %42 = arith.negf %41 : vector<2x32xf32>
    %43 = math.exp %42 : vector<2x32xf32>
    %cst_16 = arith.constant 1.000000e+00 : f32
    %44 = vector.broadcast %cst_16 : f32 to vector<2x32xf32>
    %45 = arith.addf %44, %43 : vector<2x32xf32>
    %46 = arith.divf %44, %45 : vector<2x32xf32>
    %47 = vector.extract_strided_slice %40 {offsets = [0, 32], sizes = [2, 32], strides = [1, 1]} : vector<2x128xf32> to vector<2x32xf32>
    %48 = arith.negf %47 : vector<2x32xf32>
    %49 = math.exp %48 : vector<2x32xf32>
    %cst_17 = arith.constant 1.000000e+00 : f32
    %50 = vector.broadcast %cst_17 : f32 to vector<2x32xf32>
    %51 = arith.addf %50, %49 : vector<2x32xf32>
    %52 = arith.divf %50, %51 : vector<2x32xf32>
    %53 = vector.extract_strided_slice %40 {offsets = [0, 64], sizes = [2, 32], strides = [1, 1]} : vector<2x128xf32> to vector<2x32xf32>
    %54 = math.tanh %53 : vector<2x32xf32>
    %55 = vector.extract_strided_slice %40 {offsets = [0, 96], sizes = [2, 32], strides = [1, 1]} : vector<2x128xf32> to vector<2x32xf32>
    %56 = arith.negf %55 : vector<2x32xf32>
    %57 = math.exp %56 : vector<2x32xf32>
    %cst_18 = arith.constant 1.000000e+00 : f32
    %58 = vector.broadcast %cst_18 : f32 to vector<2x32xf32>
    %59 = arith.addf %58, %57 : vector<2x32xf32>
    %60 = arith.divf %58, %59 : vector<2x32xf32>
    %61 = arith.mulf %52, %34 : vector<2x32xf32>
    %62 = arith.mulf %46, %54 : vector<2x32xf32>
    %63 = arith.addf %61, %62 : vector<2x32xf32>
    %64 = math.tanh %63 : vector<2x32xf32>
    %65 = arith.mulf %60, %64 : vector<2x32xf32>
    %66 = vector.extract_strided_slice %37 {offsets = [0, 128], sizes = [2, 128], strides = [1, 1]} : vector<2x256xf32> to vector<2x128xf32>
    %cst_19 = arith.constant dense<0.000000e+00> : vector<2x128xf32>
    %67 = tpu.matmul %65, %32, %cst_19 {dimension_numbers = #tpu.dot_dimension_numbers<[1], [0], [0], [1], [0, 0, 1, 1], [], []>} : vector<2x32xf32>, vector<32x128xf32>, vector<2x128xf32> -> vector<2x128xf32>
    %68 = arith.addf %66, %67 : vector<2x128xf32>
    %69 = vector.extract_strided_slice %68 {offsets = [0, 0], sizes = [2, 32], strides = [1, 1]} : vector<2x128xf32> to vector<2x32xf32>
    %70 = math.tanh %69 : vector<2x32xf32>
    %71 = vector.extract_strided_slice %68 {offsets = [0, 32], sizes = [2, 32], strides = [1, 1]} : vector<2x128xf32> to vector<2x32xf32>
    %72 = math.tanh %71 : vector<2x32xf32>
    %73 = vector.extract_strided_slice %68 {offsets = [0, 64], sizes = [2, 32], strides = [1, 1]} : vector<2x128xf32> to vector<2x32xf32>
    %74 = vector.extract_strided_slice %68 {offsets = [0, 96], sizes = [2, 32], strides = [1, 1]} : vector<2x128xf32> to vector<2x32xf32>
    %75 = vector.broadcast %3 : vector<2x1xf32> to vector<2x32xf32>
    %76 = arith.mulf %73, %75 : vector<2x32xf32>
    %77 = arith.addf %76, %74 : vector<2x32xf32>
    %78 = arith.negf %77 : vector<2x32xf32>
    %79 = math.exp %78 : vector<2x32xf32>
    %cst_20 = arith.constant 1.000000e+00 : f32
    %80 = vector.broadcast %cst_20 : f32 to vector<2x32xf32>
    %81 = arith.addf %80, %79 : vector<2x32xf32>
    %82 = arith.divf %80, %81 : vector<2x32xf32>
    %cst_21 = arith.constant 1.000000e+00 : f32
    %83 = vector.broadcast %cst_21 : f32 to vector<2x32xf32>
    %84 = arith.subf %83, %82 : vector<2x32xf32>
    %85 = arith.mulf %70, %84 : vector<2x32xf32>
    %86 = arith.mulf %82, %72 : vector<2x32xf32>
    %87 = arith.addf %85, %86 : vector<2x32xf32>
    %88 = vector.extract_strided_slice %87 {offsets = [0, 0], sizes = [2, 16], strides = [1, 1]} : vector<2x32xf32> to vector<2x16xf32>
    %89 = vector.extract_strided_slice %30 {offsets = [1, 0], sizes = [1, 256], strides = [1, 1]} : vector<16x256xf32> to vector<1x256xf32>
    %90 = vector.extract_strided_slice %30 {offsets = [9, 0], sizes = [1, 256], strides = [1, 1]} : vector<16x256xf32> to vector<1x256xf32>
    %91 = tpu.concatenate %89, %90 in 0 : vector<1x256xf32>, vector<1x256xf32> -> vector<2x256xf32>
    %92 = vector.extract_strided_slice %91 {offsets = [0, 0], sizes = [2, 128], strides = [1, 1]} : vector<2x256xf32> to vector<2x128xf32>
    %cst_22 = arith.constant dense<0.000000e+00> : vector<2x128xf32>
    %93 = tpu.matmul %87, %31, %cst_22 {dimension_numbers = #tpu.dot_dimension_numbers<[1], [0], [0], [1], [0, 0, 1, 1], [], []>} : vector<2x32xf32>, vector<32x128xf32>, vector<2x128xf32> -> vector<2x128xf32>
    %94 = arith.addf %92, %93 : vector<2x128xf32>
    %95 = vector.extract_strided_slice %94 {offsets = [0, 0], sizes = [2, 32], strides = [1, 1]} : vector<2x128xf32> to vector<2x32xf32>
    %96 = arith.negf %95 : vector<2x32xf32>
    %97 = math.exp %96 : vector<2x32xf32>
    %cst_23 = arith.constant 1.000000e+00 : f32
    %98 = vector.broadcast %cst_23 : f32 to vector<2x32xf32>
    %99 = arith.addf %98, %97 : vector<2x32xf32>
    %100 = arith.divf %98, %99 : vector<2x32xf32>
    %101 = vector.extract_strided_slice %94 {offsets = [0, 32], sizes = [2, 32], strides = [1, 1]} : vector<2x128xf32> to vector<2x32xf32>
    %102 = arith.negf %101 : vector<2x32xf32>
    %103 = math.exp %102 : vector<2x32xf32>
    %cst_24 = arith.constant 1.000000e+00 : f32
    %104 = vector.broadcast %cst_24 : f32 to vector<2x32xf32>
    %105 = arith.addf %104, %103 : vector<2x32xf32>
    %106 = arith.divf %104, %105 : vector<2x32xf32>
    %107 = vector.extract_strided_slice %94 {offsets = [0, 64], sizes = [2, 32], strides = [1, 1]} : vector<2x128xf32> to vector<2x32xf32>
    %108 = math.tanh %107 : vector<2x32xf32>
    %109 = vector.extract_strided_slice %94 {offsets = [0, 96], sizes = [2, 32], strides = [1, 1]} : vector<2x128xf32> to vector<2x32xf32>
    %110 = arith.negf %109 : vector<2x32xf32>
    %111 = math.exp %110 : vector<2x32xf32>
    %cst_25 = arith.constant 1.000000e+00 : f32
    %112 = vector.broadcast %cst_25 : f32 to vector<2x32xf32>
    %113 = arith.addf %112, %111 : vector<2x32xf32>
    %114 = arith.divf %112, %113 : vector<2x32xf32>
    %115 = arith.mulf %106, %63 : vector<2x32xf32>
    %116 = arith.mulf %100, %108 : vector<2x32xf32>
    %117 = arith.addf %115, %116 : vector<2x32xf32>
    %118 = math.tanh %117 : vector<2x32xf32>
    %119 = arith.mulf %114, %118 : vector<2x32xf32>
    %120 = vector.extract_strided_slice %91 {offsets = [0, 128], sizes = [2, 128], strides = [1, 1]} : vector<2x256xf32> to vector<2x128xf32>
    %cst_26 = arith.constant dense<0.000000e+00> : vector<2x128xf32>
    %121 = tpu.matmul %119, %32, %cst_26 {dimension_numbers = #tpu.dot_dimension_numbers<[1], [0], [0], [1], [0, 0, 1, 1], [], []>} : vector<2x32xf32>, vector<32x128xf32>, vector<2x128xf32> -> vector<2x128xf32>
    %122 = arith.addf %120, %121 : vector<2x128xf32>
    %123 = vector.extract_strided_slice %122 {offsets = [0, 0], sizes = [2, 32], strides = [1, 1]} : vector<2x128xf32> to vector<2x32xf32>
    %124 = math.tanh %123 : vector<2x32xf32>
    %125 = vector.extract_strided_slice %122 {offsets = [0, 32], sizes = [2, 32], strides = [1, 1]} : vector<2x128xf32> to vector<2x32xf32>
    %126 = math.tanh %125 : vector<2x32xf32>
    %127 = vector.extract_strided_slice %122 {offsets = [0, 64], sizes = [2, 32], strides = [1, 1]} : vector<2x128xf32> to vector<2x32xf32>
    %128 = vector.extract_strided_slice %122 {offsets = [0, 96], sizes = [2, 32], strides = [1, 1]} : vector<2x128xf32> to vector<2x32xf32>
    %129 = vector.broadcast %6 : vector<2x1xf32> to vector<2x32xf32>
    %130 = arith.mulf %127, %129 : vector<2x32xf32>
    %131 = arith.addf %130, %128 : vector<2x32xf32>
    %132 = arith.negf %131 : vector<2x32xf32>
    %133 = math.exp %132 : vector<2x32xf32>
    %cst_27 = arith.constant 1.000000e+00 : f32
    %134 = vector.broadcast %cst_27 : f32 to vector<2x32xf32>
    %135 = arith.addf %134, %133 : vector<2x32xf32>
    %136 = arith.divf %134, %135 : vector<2x32xf32>
    %cst_28 = arith.constant 1.000000e+00 : f32
    %137 = vector.broadcast %cst_28 : f32 to vector<2x32xf32>
    %138 = arith.subf %137, %136 : vector<2x32xf32>
    %139 = arith.mulf %124, %138 : vector<2x32xf32>
    %140 = arith.mulf %136, %126 : vector<2x32xf32>
    %141 = arith.addf %139, %140 : vector<2x32xf32>
    %142 = vector.extract_strided_slice %141 {offsets = [0, 0], sizes = [2, 16], strides = [1, 1]} : vector<2x32xf32> to vector<2x16xf32>
    %143 = vector.extract_strided_slice %30 {offsets = [2, 0], sizes = [1, 256], strides = [1, 1]} : vector<16x256xf32> to vector<1x256xf32>
    %144 = vector.extract_strided_slice %30 {offsets = [10, 0], sizes = [1, 256], strides = [1, 1]} : vector<16x256xf32> to vector<1x256xf32>
    %145 = tpu.concatenate %143, %144 in 0 : vector<1x256xf32>, vector<1x256xf32> -> vector<2x256xf32>
    %146 = vector.extract_strided_slice %145 {offsets = [0, 0], sizes = [2, 128], strides = [1, 1]} : vector<2x256xf32> to vector<2x128xf32>
    %cst_29 = arith.constant dense<0.000000e+00> : vector<2x128xf32>
    %147 = tpu.matmul %141, %31, %cst_29 {dimension_numbers = #tpu.dot_dimension_numbers<[1], [0], [0], [1], [0, 0, 1, 1], [], []>} : vector<2x32xf32>, vector<32x128xf32>, vector<2x128xf32> -> vector<2x128xf32>
    %148 = arith.addf %146, %147 : vector<2x128xf32>
    %149 = vector.extract_strided_slice %148 {offsets = [0, 0], sizes = [2, 32], strides = [1, 1]} : vector<2x128xf32> to vector<2x32xf32>
    %150 = arith.negf %149 : vector<2x32xf32>
    %151 = math.exp %150 : vector<2x32xf32>
    %cst_30 = arith.constant 1.000000e+00 : f32
    %152 = vector.broadcast %cst_30 : f32 to vector<2x32xf32>
    %153 = arith.addf %152, %151 : vector<2x32xf32>
    %154 = arith.divf %152, %153 : vector<2x32xf32>
    %155 = vector.extract_strided_slice %148 {offsets = [0, 32], sizes = [2, 32], strides = [1, 1]} : vector<2x128xf32> to vector<2x32xf32>
    %156 = arith.negf %155 : vector<2x32xf32>
    %157 = math.exp %156 : vector<2x32xf32>
    %cst_31 = arith.constant 1.000000e+00 : f32
    %158 = vector.broadcast %cst_31 : f32 to vector<2x32xf32>
    %159 = arith.addf %158, %157 : vector<2x32xf32>
    %160 = arith.divf %158, %159 : vector<2x32xf32>
    %161 = vector.extract_strided_slice %148 {offsets = [0, 64], sizes = [2, 32], strides = [1, 1]} : vector<2x128xf32> to vector<2x32xf32>
    %162 = math.tanh %161 : vector<2x32xf32>
    %163 = vector.extract_strided_slice %148 {offsets = [0, 96], sizes = [2, 32], strides = [1, 1]} : vector<2x128xf32> to vector<2x32xf32>
    %164 = arith.negf %163 : vector<2x32xf32>
    %165 = math.exp %164 : vector<2x32xf32>
    %cst_32 = arith.constant 1.000000e+00 : f32
    %166 = vector.broadcast %cst_32 : f32 to vector<2x32xf32>
    %167 = arith.addf %166, %165 : vector<2x32xf32>
    %168 = arith.divf %166, %167 : vector<2x32xf32>
    %169 = arith.mulf %160, %117 : vector<2x32xf32>
    %170 = arith.mulf %154, %162 : vector<2x32xf32>
    %171 = arith.addf %169, %170 : vector<2x32xf32>
    %172 = math.tanh %171 : vector<2x32xf32>
    %173 = arith.mulf %168, %172 : vector<2x32xf32>
    %174 = vector.extract_strided_slice %145 {offsets = [0, 128], sizes = [2, 128], strides = [1, 1]} : vector<2x256xf32> to vector<2x128xf32>
    %cst_33 = arith.constant dense<0.000000e+00> : vector<2x128xf32>
    %175 = tpu.matmul %173, %32, %cst_33 {dimension_numbers = #tpu.dot_dimension_numbers<[1], [0], [0], [1], [0, 0, 1, 1], [], []>} : vector<2x32xf32>, vector<32x128xf32>, vector<2x128xf32> -> vector<2x128xf32>
    %176 = arith.addf %174, %175 : vector<2x128xf32>
    %177 = vector.extract_strided_slice %176 {offsets = [0, 0], sizes = [2, 32], strides = [1, 1]} : vector<2x128xf32> to vector<2x32xf32>
    %178 = math.tanh %177 : vector<2x32xf32>
    %179 = vector.extract_strided_slice %176 {offsets = [0, 32], sizes = [2, 32], strides = [1, 1]} : vector<2x128xf32> to vector<2x32xf32>
    %180 = math.tanh %179 : vector<2x32xf32>
    %181 = vector.extract_strided_slice %176 {offsets = [0, 64], sizes = [2, 32], strides = [1, 1]} : vector<2x128xf32> to vector<2x32xf32>
    %182 = vector.extract_strided_slice %176 {offsets = [0, 96], sizes = [2, 32], strides = [1, 1]} : vector<2x128xf32> to vector<2x32xf32>
    %183 = vector.broadcast %9 : vector<2x1xf32> to vector<2x32xf32>
    %184 = arith.mulf %181, %183 : vector<2x32xf32>
    %185 = arith.addf %184, %182 : vector<2x32xf32>
    %186 = arith.negf %185 : vector<2x32xf32>
    %187 = math.exp %186 : vector<2x32xf32>
    %cst_34 = arith.constant 1.000000e+00 : f32
    %188 = vector.broadcast %cst_34 : f32 to vector<2x32xf32>
    %189 = arith.addf %188, %187 : vector<2x32xf32>
    %190 = arith.divf %188, %189 : vector<2x32xf32>
    %cst_35 = arith.constant 1.000000e+00 : f32
    %191 = vector.broadcast %cst_35 : f32 to vector<2x32xf32>
    %192 = arith.subf %191, %190 : vector<2x32xf32>
    %193 = arith.mulf %178, %192 : vector<2x32xf32>
    %194 = arith.mulf %190, %180 : vector<2x32xf32>
    %195 = arith.addf %193, %194 : vector<2x32xf32>
    %196 = vector.extract_strided_slice %195 {offsets = [0, 0], sizes = [2, 16], strides = [1, 1]} : vector<2x32xf32> to vector<2x16xf32>
    %197 = vector.extract_strided_slice %30 {offsets = [3, 0], sizes = [1, 256], strides = [1, 1]} : vector<16x256xf32> to vector<1x256xf32>
    %198 = vector.extract_strided_slice %30 {offsets = [11, 0], sizes = [1, 256], strides = [1, 1]} : vector<16x256xf32> to vector<1x256xf32>
    %199 = tpu.concatenate %197, %198 in 0 : vector<1x256xf32>, vector<1x256xf32> -> vector<2x256xf32>
    %200 = vector.extract_strided_slice %199 {offsets = [0, 0], sizes = [2, 128], strides = [1, 1]} : vector<2x256xf32> to vector<2x128xf32>
    %cst_36 = arith.constant dense<0.000000e+00> : vector<2x128xf32>
    %201 = tpu.matmul %195, %31, %cst_36 {dimension_numbers = #tpu.dot_dimension_numbers<[1], [0], [0], [1], [0, 0, 1, 1], [], []>} : vector<2x32xf32>, vector<32x128xf32>, vector<2x128xf32> -> vector<2x128xf32>
    %202 = arith.addf %200, %201 : vector<2x128xf32>
    %203 = vector.extract_strided_slice %202 {offsets = [0, 0], sizes = [2, 32], strides = [1, 1]} : vector<2x128xf32> to vector<2x32xf32>
    %204 = arith.negf %203 : vector<2x32xf32>
    %205 = math.exp %204 : vector<2x32xf32>
    %cst_37 = arith.constant 1.000000e+00 : f32
    %206 = vector.broadcast %cst_37 : f32 to vector<2x32xf32>
    %207 = arith.addf %206, %205 : vector<2x32xf32>
    %208 = arith.divf %206, %207 : vector<2x32xf32>
    %209 = vector.extract_strided_slice %202 {offsets = [0, 32], sizes = [2, 32], strides = [1, 1]} : vector<2x128xf32> to vector<2x32xf32>
    %210 = arith.negf %209 : vector<2x32xf32>
    %211 = math.exp %210 : vector<2x32xf32>
    %cst_38 = arith.constant 1.000000e+00 : f32
    %212 = vector.broadcast %cst_38 : f32 to vector<2x32xf32>
    %213 = arith.addf %212, %211 : vector<2x32xf32>
    %214 = arith.divf %212, %213 : vector<2x32xf32>
    %215 = vector.extract_strided_slice %202 {offsets = [0, 64], sizes = [2, 32], strides = [1, 1]} : vector<2x128xf32> to vector<2x32xf32>
    %216 = math.tanh %215 : vector<2x32xf32>
    %217 = vector.extract_strided_slice %202 {offsets = [0, 96], sizes = [2, 32], strides = [1, 1]} : vector<2x128xf32> to vector<2x32xf32>
    %218 = arith.negf %217 : vector<2x32xf32>
    %219 = math.exp %218 : vector<2x32xf32>
    %cst_39 = arith.constant 1.000000e+00 : f32
    %220 = vector.broadcast %cst_39 : f32 to vector<2x32xf32>
    %221 = arith.addf %220, %219 : vector<2x32xf32>
    %222 = arith.divf %220, %221 : vector<2x32xf32>
    %223 = arith.mulf %214, %171 : vector<2x32xf32>
    %224 = arith.mulf %208, %216 : vector<2x32xf32>
    %225 = arith.addf %223, %224 : vector<2x32xf32>
    %226 = math.tanh %225 : vector<2x32xf32>
    %227 = arith.mulf %222, %226 : vector<2x32xf32>
    %228 = vector.extract_strided_slice %199 {offsets = [0, 128], sizes = [2, 128], strides = [1, 1]} : vector<2x256xf32> to vector<2x128xf32>
    %cst_40 = arith.constant dense<0.000000e+00> : vector<2x128xf32>
    %229 = tpu.matmul %227, %32, %cst_40 {dimension_numbers = #tpu.dot_dimension_numbers<[1], [0], [0], [1], [0, 0, 1, 1], [], []>} : vector<2x32xf32>, vector<32x128xf32>, vector<2x128xf32> -> vector<2x128xf32>
    %230 = arith.addf %228, %229 : vector<2x128xf32>
    %231 = vector.extract_strided_slice %230 {offsets = [0, 0], sizes = [2, 32], strides = [1, 1]} : vector<2x128xf32> to vector<2x32xf32>
    %232 = math.tanh %231 : vector<2x32xf32>
    %233 = vector.extract_strided_slice %230 {offsets = [0, 32], sizes = [2, 32], strides = [1, 1]} : vector<2x128xf32> to vector<2x32xf32>
    %234 = math.tanh %233 : vector<2x32xf32>
    %235 = vector.extract_strided_slice %230 {offsets = [0, 64], sizes = [2, 32], strides = [1, 1]} : vector<2x128xf32> to vector<2x32xf32>
    %236 = vector.extract_strided_slice %230 {offsets = [0, 96], sizes = [2, 32], strides = [1, 1]} : vector<2x128xf32> to vector<2x32xf32>
    %237 = vector.broadcast %12 : vector<2x1xf32> to vector<2x32xf32>
    %238 = arith.mulf %235, %237 : vector<2x32xf32>
    %239 = arith.addf %238, %236 : vector<2x32xf32>
    %240 = arith.negf %239 : vector<2x32xf32>
    %241 = math.exp %240 : vector<2x32xf32>
    %cst_41 = arith.constant 1.000000e+00 : f32
    %242 = vector.broadcast %cst_41 : f32 to vector<2x32xf32>
    %243 = arith.addf %242, %241 : vector<2x32xf32>
    %244 = arith.divf %242, %243 : vector<2x32xf32>
    %cst_42 = arith.constant 1.000000e+00 : f32
    %245 = vector.broadcast %cst_42 : f32 to vector<2x32xf32>
    %246 = arith.subf %245, %244 : vector<2x32xf32>
    %247 = arith.mulf %232, %246 : vector<2x32xf32>
    %248 = arith.mulf %244, %234 : vector<2x32xf32>
    %249 = arith.addf %247, %248 : vector<2x32xf32>
    %250 = vector.extract_strided_slice %249 {offsets = [0, 0], sizes = [2, 16], strides = [1, 1]} : vector<2x32xf32> to vector<2x16xf32>
    %251 = vector.extract_strided_slice %30 {offsets = [4, 0], sizes = [1, 256], strides = [1, 1]} : vector<16x256xf32> to vector<1x256xf32>
    %252 = vector.extract_strided_slice %30 {offsets = [12, 0], sizes = [1, 256], strides = [1, 1]} : vector<16x256xf32> to vector<1x256xf32>
    %253 = tpu.concatenate %251, %252 in 0 : vector<1x256xf32>, vector<1x256xf32> -> vector<2x256xf32>
    %254 = vector.extract_strided_slice %253 {offsets = [0, 0], sizes = [2, 128], strides = [1, 1]} : vector<2x256xf32> to vector<2x128xf32>
    %cst_43 = arith.constant dense<0.000000e+00> : vector<2x128xf32>
    %255 = tpu.matmul %249, %31, %cst_43 {dimension_numbers = #tpu.dot_dimension_numbers<[1], [0], [0], [1], [0, 0, 1, 1], [], []>} : vector<2x32xf32>, vector<32x128xf32>, vector<2x128xf32> -> vector<2x128xf32>
    %256 = arith.addf %254, %255 : vector<2x128xf32>
    %257 = vector.extract_strided_slice %256 {offsets = [0, 0], sizes = [2, 32], strides = [1, 1]} : vector<2x128xf32> to vector<2x32xf32>
    %258 = arith.negf %257 : vector<2x32xf32>
    %259 = math.exp %258 : vector<2x32xf32>
    %cst_44 = arith.constant 1.000000e+00 : f32
    %260 = vector.broadcast %cst_44 : f32 to vector<2x32xf32>
    %261 = arith.addf %260, %259 : vector<2x32xf32>
    %262 = arith.divf %260, %261 : vector<2x32xf32>
    %263 = vector.extract_strided_slice %256 {offsets = [0, 32], sizes = [2, 32], strides = [1, 1]} : vector<2x128xf32> to vector<2x32xf32>
    %264 = arith.negf %263 : vector<2x32xf32>
    %265 = math.exp %264 : vector<2x32xf32>
    %cst_45 = arith.constant 1.000000e+00 : f32
    %266 = vector.broadcast %cst_45 : f32 to vector<2x32xf32>
    %267 = arith.addf %266, %265 : vector<2x32xf32>
    %268 = arith.divf %266, %267 : vector<2x32xf32>
    %269 = vector.extract_strided_slice %256 {offsets = [0, 64], sizes = [2, 32], strides = [1, 1]} : vector<2x128xf32> to vector<2x32xf32>
    %270 = math.tanh %269 : vector<2x32xf32>
    %271 = vector.extract_strided_slice %256 {offsets = [0, 96], sizes = [2, 32], strides = [1, 1]} : vector<2x128xf32> to vector<2x32xf32>
    %272 = arith.negf %271 : vector<2x32xf32>
    %273 = math.exp %272 : vector<2x32xf32>
    %cst_46 = arith.constant 1.000000e+00 : f32
    %274 = vector.broadcast %cst_46 : f32 to vector<2x32xf32>
    %275 = arith.addf %274, %273 : vector<2x32xf32>
    %276 = arith.divf %274, %275 : vector<2x32xf32>
    %277 = arith.mulf %268, %225 : vector<2x32xf32>
    %278 = arith.mulf %262, %270 : vector<2x32xf32>
    %279 = arith.addf %277, %278 : vector<2x32xf32>
    %280 = math.tanh %279 : vector<2x32xf32>
    %281 = arith.mulf %276, %280 : vector<2x32xf32>
    %282 = vector.extract_strided_slice %253 {offsets = [0, 128], sizes = [2, 128], strides = [1, 1]} : vector<2x256xf32> to vector<2x128xf32>
    %cst_47 = arith.constant dense<0.000000e+00> : vector<2x128xf32>
    %283 = tpu.matmul %281, %32, %cst_47 {dimension_numbers = #tpu.dot_dimension_numbers<[1], [0], [0], [1], [0, 0, 1, 1], [], []>} : vector<2x32xf32>, vector<32x128xf32>, vector<2x128xf32> -> vector<2x128xf32>
    %284 = arith.addf %282, %283 : vector<2x128xf32>
    %285 = vector.extract_strided_slice %284 {offsets = [0, 0], sizes = [2, 32], strides = [1, 1]} : vector<2x128xf32> to vector<2x32xf32>
    %286 = math.tanh %285 : vector<2x32xf32>
    %287 = vector.extract_strided_slice %284 {offsets = [0, 32], sizes = [2, 32], strides = [1, 1]} : vector<2x128xf32> to vector<2x32xf32>
    %288 = math.tanh %287 : vector<2x32xf32>
    %289 = vector.extract_strided_slice %284 {offsets = [0, 64], sizes = [2, 32], strides = [1, 1]} : vector<2x128xf32> to vector<2x32xf32>
    %290 = vector.extract_strided_slice %284 {offsets = [0, 96], sizes = [2, 32], strides = [1, 1]} : vector<2x128xf32> to vector<2x32xf32>
    %291 = vector.broadcast %15 : vector<2x1xf32> to vector<2x32xf32>
    %292 = arith.mulf %289, %291 : vector<2x32xf32>
    %293 = arith.addf %292, %290 : vector<2x32xf32>
    %294 = arith.negf %293 : vector<2x32xf32>
    %295 = math.exp %294 : vector<2x32xf32>
    %cst_48 = arith.constant 1.000000e+00 : f32
    %296 = vector.broadcast %cst_48 : f32 to vector<2x32xf32>
    %297 = arith.addf %296, %295 : vector<2x32xf32>
    %298 = arith.divf %296, %297 : vector<2x32xf32>
    %cst_49 = arith.constant 1.000000e+00 : f32
    %299 = vector.broadcast %cst_49 : f32 to vector<2x32xf32>
    %300 = arith.subf %299, %298 : vector<2x32xf32>
    %301 = arith.mulf %286, %300 : vector<2x32xf32>
    %302 = arith.mulf %298, %288 : vector<2x32xf32>
    %303 = arith.addf %301, %302 : vector<2x32xf32>
    %304 = vector.extract_strided_slice %303 {offsets = [0, 0], sizes = [2, 16], strides = [1, 1]} : vector<2x32xf32> to vector<2x16xf32>
    %305 = vector.extract_strided_slice %30 {offsets = [5, 0], sizes = [1, 256], strides = [1, 1]} : vector<16x256xf32> to vector<1x256xf32>
    %306 = vector.extract_strided_slice %30 {offsets = [13, 0], sizes = [1, 256], strides = [1, 1]} : vector<16x256xf32> to vector<1x256xf32>
    %307 = tpu.concatenate %305, %306 in 0 : vector<1x256xf32>, vector<1x256xf32> -> vector<2x256xf32>
    %308 = vector.extract_strided_slice %307 {offsets = [0, 0], sizes = [2, 128], strides = [1, 1]} : vector<2x256xf32> to vector<2x128xf32>
    %cst_50 = arith.constant dense<0.000000e+00> : vector<2x128xf32>
    %309 = tpu.matmul %303, %31, %cst_50 {dimension_numbers = #tpu.dot_dimension_numbers<[1], [0], [0], [1], [0, 0, 1, 1], [], []>} : vector<2x32xf32>, vector<32x128xf32>, vector<2x128xf32> -> vector<2x128xf32>
    %310 = arith.addf %308, %309 : vector<2x128xf32>
    %311 = vector.extract_strided_slice %310 {offsets = [0, 0], sizes = [2, 32], strides = [1, 1]} : vector<2x128xf32> to vector<2x32xf32>
    %312 = arith.negf %311 : vector<2x32xf32>
    %313 = math.exp %312 : vector<2x32xf32>
    %cst_51 = arith.constant 1.000000e+00 : f32
    %314 = vector.broadcast %cst_51 : f32 to vector<2x32xf32>
    %315 = arith.addf %314, %313 : vector<2x32xf32>
    %316 = arith.divf %314, %315 : vector<2x32xf32>
    %317 = vector.extract_strided_slice %310 {offsets = [0, 32], sizes = [2, 32], strides = [1, 1]} : vector<2x128xf32> to vector<2x32xf32>
    %318 = arith.negf %317 : vector<2x32xf32>
    %319 = math.exp %318 : vector<2x32xf32>
    %cst_52 = arith.constant 1.000000e+00 : f32
    %320 = vector.broadcast %cst_52 : f32 to vector<2x32xf32>
    %321 = arith.addf %320, %319 : vector<2x32xf32>
    %322 = arith.divf %320, %321 : vector<2x32xf32>
    %323 = vector.extract_strided_slice %310 {offsets = [0, 64], sizes = [2, 32], strides = [1, 1]} : vector<2x128xf32> to vector<2x32xf32>
    %324 = math.tanh %323 : vector<2x32xf32>
    %325 = vector.extract_strided_slice %310 {offsets = [0, 96], sizes = [2, 32], strides = [1, 1]} : vector<2x128xf32> to vector<2x32xf32>
    %326 = arith.negf %325 : vector<2x32xf32>
    %327 = math.exp %326 : vector<2x32xf32>
    %cst_53 = arith.constant 1.000000e+00 : f32
    %328 = vector.broadcast %cst_53 : f32 to vector<2x32xf32>
    %329 = arith.addf %328, %327 : vector<2x32xf32>
    %330 = arith.divf %328, %329 : vector<2x32xf32>
    %331 = arith.mulf %322, %279 : vector<2x32xf32>
    %332 = arith.mulf %316, %324 : vector<2x32xf32>
    %333 = arith.addf %331, %332 : vector<2x32xf32>
    %334 = math.tanh %333 : vector<2x32xf32>
    %335 = arith.mulf %330, %334 : vector<2x32xf32>
    %336 = vector.extract_strided_slice %307 {offsets = [0, 128], sizes = [2, 128], strides = [1, 1]} : vector<2x256xf32> to vector<2x128xf32>
    %cst_54 = arith.constant dense<0.000000e+00> : vector<2x128xf32>
    %337 = tpu.matmul %335, %32, %cst_54 {dimension_numbers = #tpu.dot_dimension_numbers<[1], [0], [0], [1], [0, 0, 1, 1], [], []>} : vector<2x32xf32>, vector<32x128xf32>, vector<2x128xf32> -> vector<2x128xf32>
    %338 = arith.addf %336, %337 : vector<2x128xf32>
    %339 = vector.extract_strided_slice %338 {offsets = [0, 0], sizes = [2, 32], strides = [1, 1]} : vector<2x128xf32> to vector<2x32xf32>
    %340 = math.tanh %339 : vector<2x32xf32>
    %341 = vector.extract_strided_slice %338 {offsets = [0, 32], sizes = [2, 32], strides = [1, 1]} : vector<2x128xf32> to vector<2x32xf32>
    %342 = math.tanh %341 : vector<2x32xf32>
    %343 = vector.extract_strided_slice %338 {offsets = [0, 64], sizes = [2, 32], strides = [1, 1]} : vector<2x128xf32> to vector<2x32xf32>
    %344 = vector.extract_strided_slice %338 {offsets = [0, 96], sizes = [2, 32], strides = [1, 1]} : vector<2x128xf32> to vector<2x32xf32>
    %345 = vector.broadcast %18 : vector<2x1xf32> to vector<2x32xf32>
    %346 = arith.mulf %343, %345 : vector<2x32xf32>
    %347 = arith.addf %346, %344 : vector<2x32xf32>
    %348 = arith.negf %347 : vector<2x32xf32>
    %349 = math.exp %348 : vector<2x32xf32>
    %cst_55 = arith.constant 1.000000e+00 : f32
    %350 = vector.broadcast %cst_55 : f32 to vector<2x32xf32>
    %351 = arith.addf %350, %349 : vector<2x32xf32>
    %352 = arith.divf %350, %351 : vector<2x32xf32>
    %cst_56 = arith.constant 1.000000e+00 : f32
    %353 = vector.broadcast %cst_56 : f32 to vector<2x32xf32>
    %354 = arith.subf %353, %352 : vector<2x32xf32>
    %355 = arith.mulf %340, %354 : vector<2x32xf32>
    %356 = arith.mulf %352, %342 : vector<2x32xf32>
    %357 = arith.addf %355, %356 : vector<2x32xf32>
    %358 = vector.extract_strided_slice %357 {offsets = [0, 0], sizes = [2, 16], strides = [1, 1]} : vector<2x32xf32> to vector<2x16xf32>
    %359 = vector.extract_strided_slice %30 {offsets = [6, 0], sizes = [1, 256], strides = [1, 1]} : vector<16x256xf32> to vector<1x256xf32>
    %360 = vector.extract_strided_slice %30 {offsets = [14, 0], sizes = [1, 256], strides = [1, 1]} : vector<16x256xf32> to vector<1x256xf32>
    %361 = tpu.concatenate %359, %360 in 0 : vector<1x256xf32>, vector<1x256xf32> -> vector<2x256xf32>
    %362 = vector.extract_strided_slice %361 {offsets = [0, 0], sizes = [2, 128], strides = [1, 1]} : vector<2x256xf32> to vector<2x128xf32>
    %cst_57 = arith.constant dense<0.000000e+00> : vector<2x128xf32>
    %363 = tpu.matmul %357, %31, %cst_57 {dimension_numbers = #tpu.dot_dimension_numbers<[1], [0], [0], [1], [0, 0, 1, 1], [], []>} : vector<2x32xf32>, vector<32x128xf32>, vector<2x128xf32> -> vector<2x128xf32>
    %364 = arith.addf %362, %363 : vector<2x128xf32>
    %365 = vector.extract_strided_slice %364 {offsets = [0, 0], sizes = [2, 32], strides = [1, 1]} : vector<2x128xf32> to vector<2x32xf32>
    %366 = arith.negf %365 : vector<2x32xf32>
    %367 = math.exp %366 : vector<2x32xf32>
    %cst_58 = arith.constant 1.000000e+00 : f32
    %368 = vector.broadcast %cst_58 : f32 to vector<2x32xf32>
    %369 = arith.addf %368, %367 : vector<2x32xf32>
    %370 = arith.divf %368, %369 : vector<2x32xf32>
    %371 = vector.extract_strided_slice %364 {offsets = [0, 32], sizes = [2, 32], strides = [1, 1]} : vector<2x128xf32> to vector<2x32xf32>
    %372 = arith.negf %371 : vector<2x32xf32>
    %373 = math.exp %372 : vector<2x32xf32>
    %cst_59 = arith.constant 1.000000e+00 : f32
    %374 = vector.broadcast %cst_59 : f32 to vector<2x32xf32>
    %375 = arith.addf %374, %373 : vector<2x32xf32>
    %376 = arith.divf %374, %375 : vector<2x32xf32>
    %377 = vector.extract_strided_slice %364 {offsets = [0, 64], sizes = [2, 32], strides = [1, 1]} : vector<2x128xf32> to vector<2x32xf32>
    %378 = math.tanh %377 : vector<2x32xf32>
    %379 = vector.extract_strided_slice %364 {offsets = [0, 96], sizes = [2, 32], strides = [1, 1]} : vector<2x128xf32> to vector<2x32xf32>
    %380 = arith.negf %379 : vector<2x32xf32>
    %381 = math.exp %380 : vector<2x32xf32>
    %cst_60 = arith.constant 1.000000e+00 : f32
    %382 = vector.broadcast %cst_60 : f32 to vector<2x32xf32>
    %383 = arith.addf %382, %381 : vector<2x32xf32>
    %384 = arith.divf %382, %383 : vector<2x32xf32>
    %385 = arith.mulf %376, %333 : vector<2x32xf32>
    %386 = arith.mulf %370, %378 : vector<2x32xf32>
    %387 = arith.addf %385, %386 : vector<2x32xf32>
    %388 = math.tanh %387 : vector<2x32xf32>
    %389 = arith.mulf %384, %388 : vector<2x32xf32>
    %390 = vector.extract_strided_slice %361 {offsets = [0, 128], sizes = [2, 128], strides = [1, 1]} : vector<2x256xf32> to vector<2x128xf32>
    %cst_61 = arith.constant dense<0.000000e+00> : vector<2x128xf32>
    %391 = tpu.matmul %389, %32, %cst_61 {dimension_numbers = #tpu.dot_dimension_numbers<[1], [0], [0], [1], [0, 0, 1, 1], [], []>} : vector<2x32xf32>, vector<32x128xf32>, vector<2x128xf32> -> vector<2x128xf32>
    %392 = arith.addf %390, %391 : vector<2x128xf32>
    %393 = vector.extract_strided_slice %392 {offsets = [0, 0], sizes = [2, 32], strides = [1, 1]} : vector<2x128xf32> to vector<2x32xf32>
    %394 = math.tanh %393 : vector<2x32xf32>
    %395 = vector.extract_strided_slice %392 {offsets = [0, 32], sizes = [2, 32], strides = [1, 1]} : vector<2x128xf32> to vector<2x32xf32>
    %396 = math.tanh %395 : vector<2x32xf32>
    %397 = vector.extract_strided_slice %392 {offsets = [0, 64], sizes = [2, 32], strides = [1, 1]} : vector<2x128xf32> to vector<2x32xf32>
    %398 = vector.extract_strided_slice %392 {offsets = [0, 96], sizes = [2, 32], strides = [1, 1]} : vector<2x128xf32> to vector<2x32xf32>
    %399 = vector.broadcast %21 : vector<2x1xf32> to vector<2x32xf32>
    %400 = arith.mulf %397, %399 : vector<2x32xf32>
    %401 = arith.addf %400, %398 : vector<2x32xf32>
    %402 = arith.negf %401 : vector<2x32xf32>
    %403 = math.exp %402 : vector<2x32xf32>
    %cst_62 = arith.constant 1.000000e+00 : f32
    %404 = vector.broadcast %cst_62 : f32 to vector<2x32xf32>
    %405 = arith.addf %404, %403 : vector<2x32xf32>
    %406 = arith.divf %404, %405 : vector<2x32xf32>
    %cst_63 = arith.constant 1.000000e+00 : f32
    %407 = vector.broadcast %cst_63 : f32 to vector<2x32xf32>
    %408 = arith.subf %407, %406 : vector<2x32xf32>
    %409 = arith.mulf %394, %408 : vector<2x32xf32>
    %410 = arith.mulf %406, %396 : vector<2x32xf32>
    %411 = arith.addf %409, %410 : vector<2x32xf32>
    %412 = vector.extract_strided_slice %411 {offsets = [0, 0], sizes = [2, 16], strides = [1, 1]} : vector<2x32xf32> to vector<2x16xf32>
    %413 = vector.extract_strided_slice %30 {offsets = [7, 0], sizes = [1, 256], strides = [1, 1]} : vector<16x256xf32> to vector<1x256xf32>
    %414 = vector.extract_strided_slice %30 {offsets = [15, 0], sizes = [1, 256], strides = [1, 1]} : vector<16x256xf32> to vector<1x256xf32>
    %415 = tpu.concatenate %413, %414 in 0 : vector<1x256xf32>, vector<1x256xf32> -> vector<2x256xf32>
    %416 = vector.extract_strided_slice %415 {offsets = [0, 0], sizes = [2, 128], strides = [1, 1]} : vector<2x256xf32> to vector<2x128xf32>
    %cst_64 = arith.constant dense<0.000000e+00> : vector<2x128xf32>
    %417 = tpu.matmul %411, %31, %cst_64 {dimension_numbers = #tpu.dot_dimension_numbers<[1], [0], [0], [1], [0, 0, 1, 1], [], []>} : vector<2x32xf32>, vector<32x128xf32>, vector<2x128xf32> -> vector<2x128xf32>
    %418 = arith.addf %416, %417 : vector<2x128xf32>
    %419 = vector.extract_strided_slice %418 {offsets = [0, 0], sizes = [2, 32], strides = [1, 1]} : vector<2x128xf32> to vector<2x32xf32>
    %420 = arith.negf %419 : vector<2x32xf32>
    %421 = math.exp %420 : vector<2x32xf32>
    %cst_65 = arith.constant 1.000000e+00 : f32
    %422 = vector.broadcast %cst_65 : f32 to vector<2x32xf32>
    %423 = arith.addf %422, %421 : vector<2x32xf32>
    %424 = arith.divf %422, %423 : vector<2x32xf32>
    %425 = vector.extract_strided_slice %418 {offsets = [0, 32], sizes = [2, 32], strides = [1, 1]} : vector<2x128xf32> to vector<2x32xf32>
    %426 = arith.negf %425 : vector<2x32xf32>
    %427 = math.exp %426 : vector<2x32xf32>
    %cst_66 = arith.constant 1.000000e+00 : f32
    %428 = vector.broadcast %cst_66 : f32 to vector<2x32xf32>
    %429 = arith.addf %428, %427 : vector<2x32xf32>
    %430 = arith.divf %428, %429 : vector<2x32xf32>
    %431 = vector.extract_strided_slice %418 {offsets = [0, 64], sizes = [2, 32], strides = [1, 1]} : vector<2x128xf32> to vector<2x32xf32>
    %432 = math.tanh %431 : vector<2x32xf32>
    %433 = vector.extract_strided_slice %418 {offsets = [0, 96], sizes = [2, 32], strides = [1, 1]} : vector<2x128xf32> to vector<2x32xf32>
    %434 = arith.negf %433 : vector<2x32xf32>
    %435 = math.exp %434 : vector<2x32xf32>
    %cst_67 = arith.constant 1.000000e+00 : f32
    %436 = vector.broadcast %cst_67 : f32 to vector<2x32xf32>
    %437 = arith.addf %436, %435 : vector<2x32xf32>
    %438 = arith.divf %436, %437 : vector<2x32xf32>
    %439 = arith.mulf %430, %387 : vector<2x32xf32>
    %440 = arith.mulf %424, %432 : vector<2x32xf32>
    %441 = arith.addf %439, %440 : vector<2x32xf32>
    %442 = math.tanh %441 : vector<2x32xf32>
    %443 = arith.mulf %438, %442 : vector<2x32xf32>
    %444 = vector.extract_strided_slice %415 {offsets = [0, 128], sizes = [2, 128], strides = [1, 1]} : vector<2x256xf32> to vector<2x128xf32>
    %cst_68 = arith.constant dense<0.000000e+00> : vector<2x128xf32>
    %445 = tpu.matmul %443, %32, %cst_68 {dimension_numbers = #tpu.dot_dimension_numbers<[1], [0], [0], [1], [0, 0, 1, 1], [], []>} : vector<2x32xf32>, vector<32x128xf32>, vector<2x128xf32> -> vector<2x128xf32>
    %446 = arith.addf %444, %445 : vector<2x128xf32>
    %447 = vector.extract_strided_slice %446 {offsets = [0, 0], sizes = [2, 32], strides = [1, 1]} : vector<2x128xf32> to vector<2x32xf32>
    %448 = math.tanh %447 : vector<2x32xf32>
    %449 = vector.extract_strided_slice %446 {offsets = [0, 32], sizes = [2, 32], strides = [1, 1]} : vector<2x128xf32> to vector<2x32xf32>
    %450 = math.tanh %449 : vector<2x32xf32>
    %451 = vector.extract_strided_slice %446 {offsets = [0, 64], sizes = [2, 32], strides = [1, 1]} : vector<2x128xf32> to vector<2x32xf32>
    %452 = vector.extract_strided_slice %446 {offsets = [0, 96], sizes = [2, 32], strides = [1, 1]} : vector<2x128xf32> to vector<2x32xf32>
    %453 = vector.broadcast %24 : vector<2x1xf32> to vector<2x32xf32>
    %454 = arith.mulf %451, %453 : vector<2x32xf32>
    %455 = arith.addf %454, %452 : vector<2x32xf32>
    %456 = arith.negf %455 : vector<2x32xf32>
    %457 = math.exp %456 : vector<2x32xf32>
    %cst_69 = arith.constant 1.000000e+00 : f32
    %458 = vector.broadcast %cst_69 : f32 to vector<2x32xf32>
    %459 = arith.addf %458, %457 : vector<2x32xf32>
    %460 = arith.divf %458, %459 : vector<2x32xf32>
    %cst_70 = arith.constant 1.000000e+00 : f32
    %461 = vector.broadcast %cst_70 : f32 to vector<2x32xf32>
    %462 = arith.subf %461, %460 : vector<2x32xf32>
    %463 = arith.mulf %448, %462 : vector<2x32xf32>
    %464 = arith.mulf %460, %450 : vector<2x32xf32>
    %465 = arith.addf %463, %464 : vector<2x32xf32>
    %466 = vector.extract_strided_slice %465 {offsets = [0, 0], sizes = [2, 16], strides = [1, 1]} : vector<2x32xf32> to vector<2x16xf32>
    %c0_71 = arith.constant 0 : index
    %c0_72 = arith.constant 0 : index
    %467 = vector.load %arg39[%c0_71, %c0_72] : memref<2x32xf32, #tpu.memory_space<vmem>>, vector<2x32xf32>
    tpu.vector_store %arg39[%c0_71, %c0_72], %465 {strides = array<i32>} : memref<2x32xf32, #tpu.memory_space<vmem>>, vector<2x32xf32>,
    %c0_73 = arith.constant 0 : index
    %c0_74 = arith.constant 0 : index
    %468 = vector.load %arg41[%c0_73, %c0_74] : memref<2x32xf32, #tpu.memory_space<vmem>>, vector<2x32xf32>
    tpu.vector_store %arg41[%c0_73, %c0_74], %441 {strides = array<i32>} : memref<2x32xf32, #tpu.memory_space<vmem>>, vector<2x32xf32>,
    %469 = vector.extract_strided_slice %88 {offsets = [0, 0], sizes = [1, 16], strides = [1, 1]} : vector<2x16xf32> to vector<1x16xf32>
    %470 = vector.extract_strided_slice %142 {offsets = [0, 0], sizes = [1, 16], strides = [1, 1]} : vector<2x16xf32> to vector<1x16xf32>
    %471 = vector.extract_strided_slice %196 {offsets = [0, 0], sizes = [1, 16], strides = [1, 1]} : vector<2x16xf32> to vector<1x16xf32>
    %472 = vector.extract_strided_slice %250 {offsets = [0, 0], sizes = [1, 16], strides = [1, 1]} : vector<2x16xf32> to vector<1x16xf32>
    %473 = vector.extract_strided_slice %304 {offsets = [0, 0], sizes = [1, 16], strides = [1, 1]} : vector<2x16xf32> to vector<1x16xf32>
    %474 = vector.extract_strided_slice %358 {offsets = [0, 0], sizes = [1, 16], strides = [1, 1]} : vector<2x16xf32> to vector<1x16xf32>
    %475 = vector.extract_strided_slice %412 {offsets = [0, 0], sizes = [1, 16], strides = [1, 1]} : vector<2x16xf32> to vector<1x16xf32>
    %476 = vector.extract_strided_slice %466 {offsets = [0, 0], sizes = [1, 16], strides = [1, 1]} : vector<2x16xf32> to vector<1x16xf32>
    %477 = tpu.concatenate %469, %470, %471, %472, %473, %474, %475, %476 in 0 : vector<1x16xf32>, vector<1x16xf32>, vector<1x16xf32>, vector<1x16xf32>, vector<1x16xf32>, vector<1x16xf32>, vector<1x16xf32>, vector<1x16xf32> -> vector<8x16xf32>
    %478 = vector.extract_strided_slice %88 {offsets = [1, 0], sizes = [1, 16], strides = [1, 1]} : vector<2x16xf32> to vector<1x16xf32>
    %479 = vector.extract_strided_slice %142 {offsets = [1, 0], sizes = [1, 16], strides = [1, 1]} : vector<2x16xf32> to vector<1x16xf32>
    %480 = vector.extract_strided_slice %196 {offsets = [1, 0], sizes = [1, 16], strides = [1, 1]} : vector<2x16xf32> to vector<1x16xf32>
    %481 = vector.extract_strided_slice %250 {offsets = [1, 0], sizes = [1, 16], strides = [1, 1]} : vector<2x16xf32> to vector<1x16xf32>
    %482 = vector.extract_strided_slice %304 {offsets = [1, 0], sizes = [1, 16], strides = [1, 1]} : vector<2x16xf32> to vector<1x16xf32>
    %483 = vector.extract_strided_slice %358 {offsets = [1, 0], sizes = [1, 16], strides = [1, 1]} : vector<2x16xf32> to vector<1x16xf32>
    %484 = vector.extract_strided_slice %412 {offsets = [1, 0], sizes = [1, 16], strides = [1, 1]} : vector<2x16xf32> to vector<1x16xf32>
    %485 = vector.extract_strided_slice %466 {offsets = [1, 0], sizes = [1, 16], strides = [1, 1]} : vector<2x16xf32> to vector<1x16xf32>
    %486 = tpu.concatenate %478, %479, %480, %481, %482, %483, %484, %485 in 0 : vector<1x16xf32>, vector<1x16xf32>, vector<1x16xf32>, vector<1x16xf32>, vector<1x16xf32>, vector<1x16xf32>, vector<1x16xf32>, vector<1x16xf32> -> vector<8x16xf32>
    %487 = tpu.concatenate %477, %486 in 0 : vector<8x16xf32>, vector<8x16xf32> -> vector<16x16xf32>
    %c0_75 = arith.constant 0 : index
    %c0_76 = arith.constant 0 : index
    %488 = vector.load %arg8[%c0_75, %c0_76] : memref<16x16xf32, #tpu.memory_space<vmem>>, vector<16x16xf32>
    %cst_77 = arith.constant dense<0.000000e+00> : vector<16x16xf32>
    %489 = tpu.matmul %487, %488, %cst_77 {dimension_numbers = #tpu.dot_dimension_numbers<[1], [0], [0], [1], [0, 0, 1, 1], [], []>} : vector<16x16xf32>, vector<16x16xf32>, vector<16x16xf32> -> vector<16x16xf32>
    %c0_78 = arith.constant 0 : index
    %c0_79 = arith.constant 0 : index
    %490 = vector.load %arg9[%c0_78, %c0_79] : memref<1x16xf32, #tpu.memory_space<vmem>>, vector<1x16xf32>
    %491 = vector.broadcast %490 : vector<1x16xf32> to vector<16x16xf32>
    %492 = arith.addf %489, %491 : vector<16x16xf32>
    %c0_80 = arith.constant 0 : index
    %c0_81 = arith.constant 0 : index
    %493 = vector.load %arg10[%c0_80, %c0_81] : memref<16x16xf32, #tpu.memory_space<vmem>>, vector<16x16xf32>
    %cst_82 = arith.constant dense<0.000000e+00> : vector<16x16xf32>
    %494 = tpu.matmul %487, %493, %cst_82 {dimension_numbers = #tpu.dot_dimension_numbers<[1], [0], [0], [1], [0, 0, 1, 1], [], []>} : vector<16x16xf32>, vector<16x16xf32>, vector<16x16xf32> -> vector<16x16xf32>
    %c0_83 = arith.constant 0 : index
    %c0_84 = arith.constant 0 : index
    %495 = vector.load %arg11[%c0_83, %c0_84] : memref<1x16xf32, #tpu.memory_space<vmem>>, vector<1x16xf32>
    %496 = vector.broadcast %495 : vector<1x16xf32> to vector<16x16xf32>
    %497 = arith.addf %494, %496 : vector<16x16xf32>
    %c0_85 = arith.constant 0 : index
    %c0_86 = arith.constant 0 : index
    %498 = vector.load %arg12[%c0_85, %c0_86] : memref<16x16xf32, #tpu.memory_space<vmem>>, vector<16x16xf32>
    %cst_87 = arith.constant dense<0.000000e+00> : vector<16x16xf32>
    %499 = tpu.matmul %487, %498, %cst_87 {dimension_numbers = #tpu.dot_dimension_numbers<[1], [0], [0], [1], [0, 0, 1, 1], [], []>} : vector<16x16xf32>, vector<16x16xf32>, vector<16x16xf32> -> vector<16x16xf32>
    %c0_88 = arith.constant 0 : index
    %c0_89 = arith.constant 0 : index
    %500 = vector.load %arg13[%c0_88, %c0_89] : memref<1x16xf32, #tpu.memory_space<vmem>>, vector<1x16xf32>
    %501 = vector.broadcast %500 : vector<1x16xf32> to vector<16x16xf32>
    %502 = arith.addf %499, %501 : vector<16x16xf32>
    %503 = vector.extract_strided_slice %492 {offsets = [0, 0], sizes = [8, 16], strides = [1, 1]} : vector<16x16xf32> to vector<8x16xf32>
    %504 = vector.extract_strided_slice %497 {offsets = [0, 0], sizes = [8, 16], strides = [1, 1]} : vector<16x16xf32> to vector<8x16xf32>
    %505 = vector.extract_strided_slice %502 {offsets = [0, 0], sizes = [8, 16], strides = [1, 1]} : vector<16x16xf32> to vector<8x16xf32>
    %506 = vector.extract_strided_slice %503 {offsets = [0, 0], sizes = [8, 8], strides = [1, 1]} : vector<8x16xf32> to vector<8x8xf32>
    %507 = vector.extract_strided_slice %504 {offsets = [0, 0], sizes = [8, 8], strides = [1, 1]} : vector<8x16xf32> to vector<8x8xf32>
    "tpu.trace_start"() <{level = 10 : i32, message = "qd,kd->qk"}> : () -> ()
    %cst_90 = arith.constant dense<0.000000e+00> : vector<8x8xf32>
    %508 = tpu.matmul %506, %507, %cst_90 {dimension_numbers = #tpu.dot_dimension_numbers<[1], [1], [0], [0], [0, 0, 1, 0], [], []>} : vector<8x8xf32>, vector<8x8xf32>, vector<8x8xf32> -> vector<8x8xf32>
    "tpu.trace_stop"() : () -> ()
    %cst_91 = arith.constant 0.353553385 : f32
    %509 = vector.broadcast %cst_91 : f32 to vector<8x8xf32>
    %510 = arith.mulf %508, %509 : vector<8x8xf32>
    %cst_92 = arith.constant dense<0xFF800000> : vector<8xf32>
    %511 = vector.multi_reduction <maximumf>, %510, %cst_92 [1] : vector<8x8xf32> to vector<8xf32>
    %cst_93 = arith.constant 0xFF800000 : f32
    %512 = vector.broadcast %cst_93 : f32 to vector<8xf32>
    %513 = arith.maximumf %512, %511 : vector<8xf32>
    %514 = vector.shape_cast %513 : vector<8xf32> to vector<8x1xf32>
    %515 = vector.broadcast %514 : vector<8x1xf32> to vector<8x8xf32>
    %516 = arith.subf %510, %515 : vector<8x8xf32>
    %517 = math.exp %516 : vector<8x8xf32>
    %cst_94 = arith.constant dense<0.000000e+00> : vector<8xf32>
    %518 = vector.multi_reduction <add>, %517, %cst_94 [1] : vector<8x8xf32> to vector<8xf32>
    %519 = vector.shape_cast %518 : vector<8xf32> to vector<8x1xf32>
    %520 = vector.broadcast %519 : vector<8x1xf32> to vector<8x8xf32>
    %521 = arith.divf %517, %520 : vector<8x8xf32>
    %522 = vector.extract_strided_slice %505 {offsets = [0, 0], sizes = [8, 8], strides = [1, 1]} : vector<8x16xf32> to vector<8x8xf32>
    %cst_95 = arith.constant dense<0.000000e+00> : vector<8x8xf32>
    %523 = tpu.matmul %521, %522, %cst_95 {dimension_numbers = #tpu.dot_dimension_numbers<[1], [0], [0], [1], [0, 0, 1, 1], [], []>} : vector<8x8xf32>, vector<8x8xf32>, vector<8x8xf32> -> vector<8x8xf32>
    %524 = vector.extract_strided_slice %503 {offsets = [0, 8], sizes = [8, 8], strides = [1, 1]} : vector<8x16xf32> to vector<8x8xf32>
    %525 = vector.extract_strided_slice %504 {offsets = [0, 8], sizes = [8, 8], strides = [1, 1]} : vector<8x16xf32> to vector<8x8xf32>
    "tpu.trace_start"() <{level = 10 : i32, message = "qd,kd->qk"}> : () -> ()
    %cst_96 = arith.constant dense<0.000000e+00> : vector<8x8xf32>
    %526 = tpu.matmul %524, %525, %cst_96 {dimension_numbers = #tpu.dot_dimension_numbers<[1], [1], [0], [0], [0, 0, 1, 0], [], []>} : vector<8x8xf32>, vector<8x8xf32>, vector<8x8xf32> -> vector<8x8xf32>
    "tpu.trace_stop"() : () -> ()
    %cst_97 = arith.constant 0.353553385 : f32
    %527 = vector.broadcast %cst_97 : f32 to vector<8x8xf32>
    %528 = arith.mulf %526, %527 : vector<8x8xf32>
    %cst_98 = arith.constant dense<0xFF800000> : vector<8xf32>
    %529 = vector.multi_reduction <maximumf>, %528, %cst_98 [1] : vector<8x8xf32> to vector<8xf32>
    %cst_99 = arith.constant 0xFF800000 : f32
    %530 = vector.broadcast %cst_99 : f32 to vector<8xf32>
    %531 = arith.maximumf %530, %529 : vector<8xf32>
    %532 = vector.shape_cast %531 : vector<8xf32> to vector<8x1xf32>
    %533 = vector.broadcast %532 : vector<8x1xf32> to vector<8x8xf32>
    %534 = arith.subf %528, %533 : vector<8x8xf32>
    %535 = math.exp %534 : vector<8x8xf32>
    %cst_100 = arith.constant dense<0.000000e+00> : vector<8xf32>
    %536 = vector.multi_reduction <add>, %535, %cst_100 [1] : vector<8x8xf32> to vector<8xf32>
    %537 = vector.shape_cast %536 : vector<8xf32> to vector<8x1xf32>
    %538 = vector.broadcast %537 : vector<8x1xf32> to vector<8x8xf32>
    %539 = arith.divf %535, %538 : vector<8x8xf32>
    %540 = vector.extract_strided_slice %505 {offsets = [0, 8], sizes = [8, 8], strides = [1, 1]} : vector<8x16xf32> to vector<8x8xf32>
    %cst_101 = arith.constant dense<0.000000e+00> : vector<8x8xf32>
    %541 = tpu.matmul %539, %540, %cst_101 {dimension_numbers = #tpu.dot_dimension_numbers<[1], [0], [0], [1], [0, 0, 1, 1], [], []>} : vector<8x8xf32>, vector<8x8xf32>, vector<8x8xf32> -> vector<8x8xf32>
    %542 = tpu.concatenate %523, %541 in 1 : vector<8x8xf32>, vector<8x8xf32> -> vector<8x16xf32>
    %543 = vector.extract_strided_slice %492 {offsets = [8, 0], sizes = [8, 16], strides = [1, 1]} : vector<16x16xf32> to vector<8x16xf32>
    %544 = vector.extract_strided_slice %497 {offsets = [8, 0], sizes = [8, 16], strides = [1, 1]} : vector<16x16xf32> to vector<8x16xf32>
    %545 = vector.extract_strided_slice %502 {offsets = [8, 0], sizes = [8, 16], strides = [1, 1]} : vector<16x16xf32> to vector<8x16xf32>
    %546 = vector.extract_strided_slice %543 {offsets = [0, 0], sizes = [8, 8], strides = [1, 1]} : vector<8x16xf32> to vector<8x8xf32>
    %547 = vector.extract_strided_slice %544 {offsets = [0, 0], sizes = [8, 8], strides = [1, 1]} : vector<8x16xf32> to vector<8x8xf32>
    "tpu.trace_start"() <{level = 10 : i32, message = "qd,kd->qk"}> : () -> ()
    %cst_102 = arith.constant dense<0.000000e+00> : vector<8x8xf32>
    %548 = tpu.matmul %546, %547, %cst_102 {dimension_numbers = #tpu.dot_dimension_numbers<[1], [1], [0], [0], [0, 0, 1, 0], [], []>} : vector<8x8xf32>, vector<8x8xf32>, vector<8x8xf32> -> vector<8x8xf32>
    "tpu.trace_stop"() : () -> ()
    %cst_103 = arith.constant 0.353553385 : f32
    %549 = vector.broadcast %cst_103 : f32 to vector<8x8xf32>
    %550 = arith.mulf %548, %549 : vector<8x8xf32>
    %cst_104 = arith.constant dense<0xFF800000> : vector<8xf32>
    %551 = vector.multi_reduction <maximumf>, %550, %cst_104 [1] : vector<8x8xf32> to vector<8xf32>
    %cst_105 = arith.constant 0xFF800000 : f32
    %552 = vector.broadcast %cst_105 : f32 to vector<8xf32>
    %553 = arith.maximumf %552, %551 : vector<8xf32>
    %554 = vector.shape_cast %553 : vector<8xf32> to vector<8x1xf32>
    %555 = vector.broadcast %554 : vector<8x1xf32> to vector<8x8xf32>
    %556 = arith.subf %550, %555 : vector<8x8xf32>
    %557 = math.exp %556 : vector<8x8xf32>
    %cst_106 = arith.constant dense<0.000000e+00> : vector<8xf32>
    %558 = vector.multi_reduction <add>, %557, %cst_106 [1] : vector<8x8xf32> to vector<8xf32>
    %559 = vector.shape_cast %558 : vector<8xf32> to vector<8x1xf32>
    %560 = vector.broadcast %559 : vector<8x1xf32> to vector<8x8xf32>
    %561 = arith.divf %557, %560 : vector<8x8xf32>
    %562 = vector.extract_strided_slice %545 {offsets = [0, 0], sizes = [8, 8], strides = [1, 1]} : vector<8x16xf32> to vector<8x8xf32>
    %cst_107 = arith.constant dense<0.000000e+00> : vector<8x8xf32>
    %563 = tpu.matmul %561, %562, %cst_107 {dimension_numbers = #tpu.dot_dimension_numbers<[1], [0], [0], [1], [0, 0, 1, 1], [], []>} : vector<8x8xf32>, vector<8x8xf32>, vector<8x8xf32> -> vector<8x8xf32>
    %564 = vector.extract_strided_slice %543 {offsets = [0, 8], sizes = [8, 8], strides = [1, 1]} : vector<8x16xf32> to vector<8x8xf32>
    %565 = vector.extract_strided_slice %544 {offsets = [0, 8], sizes = [8, 8], strides = [1, 1]} : vector<8x16xf32> to vector<8x8xf32>
    "tpu.trace_start"() <{level = 10 : i32, message = "qd,kd->qk"}> : () -> ()
    %cst_108 = arith.constant dense<0.000000e+00> : vector<8x8xf32>
    %566 = tpu.matmul %564, %565, %cst_108 {dimension_numbers = #tpu.dot_dimension_numbers<[1], [1], [0], [0], [0, 0, 1, 0], [], []>} : vector<8x8xf32>, vector<8x8xf32>, vector<8x8xf32> -> vector<8x8xf32>
    "tpu.trace_stop"() : () -> ()
    %cst_109 = arith.constant 0.353553385 : f32
    %567 = vector.broadcast %cst_109 : f32 to vector<8x8xf32>
    %568 = arith.mulf %566, %567 : vector<8x8xf32>
    %cst_110 = arith.constant dense<0xFF800000> : vector<8xf32>
    %569 = vector.multi_reduction <maximumf>, %568, %cst_110 [1] : vector<8x8xf32> to vector<8xf32>
    %cst_111 = arith.constant 0xFF800000 : f32
    %570 = vector.broadcast %cst_111 : f32 to vector<8xf32>
    %571 = arith.maximumf %570, %569 : vector<8xf32>
    %572 = vector.shape_cast %571 : vector<8xf32> to vector<8x1xf32>
    %573 = vector.broadcast %572 : vector<8x1xf32> to vector<8x8xf32>
    %574 = arith.subf %568, %573 : vector<8x8xf32>
    %575 = math.exp %574 : vector<8x8xf32>
    %cst_112 = arith.constant dense<0.000000e+00> : vector<8xf32>
    %576 = vector.multi_reduction <add>, %575, %cst_112 [1] : vector<8x8xf32> to vector<8xf32>
    %577 = vector.shape_cast %576 : vector<8xf32> to vector<8x1xf32>
    %578 = vector.broadcast %577 : vector<8x1xf32> to vector<8x8xf32>
    %579 = arith.divf %575, %578 : vector<8x8xf32>
    %580 = vector.extract_strided_slice %545 {offsets = [0, 8], sizes = [8, 8], strides = [1, 1]} : vector<8x16xf32> to vector<8x8xf32>
    %cst_113 = arith.constant dense<0.000000e+00> : vector<8x8xf32>
    %581 = tpu.matmul %579, %580, %cst_113 {dimension_numbers = #tpu.dot_dimension_numbers<[1], [0], [0], [1], [0, 0, 1, 1], [], []>} : vector<8x8xf32>, vector<8x8xf32>, vector<8x8xf32> -> vector<8x8xf32>
    %582 = tpu.concatenate %563, %581 in 1 : vector<8x8xf32>, vector<8x8xf32> -> vector<8x16xf32>
    %583 = tpu.concatenate %542, %582 in 0 : vector<8x16xf32>, vector<8x16xf32> -> vector<16x16xf32>
    %c0_114 = arith.constant 0 : index
    %c0_115 = arith.constant 0 : index
    %584 = vector.load %arg14[%c0_114, %c0_115] : memref<16x16xf32, #tpu.memory_space<vmem>>, vector<16x16xf32>
    %cst_116 = arith.constant dense<0.000000e+00> : vector<16x16xf32>
    %585 = tpu.matmul %583, %584, %cst_116 {dimension_numbers = #tpu.dot_dimension_numbers<[1], [0], [0], [1], [0, 0, 1, 1], [], []>} : vector<16x16xf32>, vector<16x16xf32>, vector<16x16xf32> -> vector<16x16xf32>
    %c0_117 = arith.constant 0 : index
    %c0_118 = arith.constant 0 : index
    %586 = vector.load %arg15[%c0_117, %c0_118] : memref<1x16xf32, #tpu.memory_space<vmem>>, vector<1x16xf32>
    %587 = vector.broadcast %586 : vector<1x16xf32> to vector<16x16xf32>
    %588 = arith.addf %585, %587 : vector<16x16xf32>
    %c0_119 = arith.constant 0 : index
    %c0_120 = arith.constant 0 : index
    %589 = vector.load %arg18[%c0_119, %c0_120] : memref<16x256xf32, #tpu.memory_space<vmem>>, vector<16x256xf32>
    %cst_121 = arith.constant dense<0.000000e+00> : vector<16x256xf32>
    %590 = tpu.matmul %588, %589, %cst_121 {dimension_numbers = #tpu.dot_dimension_numbers<[1], [0], [0], [1], [0, 0, 1, 1], [], []>} : vector<16x16xf32>, vector<16x256xf32>, vector<16x256xf32> -> vector<16x256xf32>
    %c0_122 = arith.constant 0 : index
    %c0_123 = arith.constant 0 : index
    %591 = vector.load %arg19[%c0_122, %c0_123] : memref<1x256xf32, #tpu.memory_space<vmem>>, vector<1x256xf32>
    %592 = vector.broadcast %591 : vector<1x256xf32> to vector<16x256xf32>
    %593 = arith.addf %590, %592 : vector<16x256xf32>
    %c0_124 = arith.constant 0 : index
    %c0_125 = arith.constant 0 : index
    %594 = vector.load %arg20[%c0_124, %c0_125] : memref<32x128xf32, #tpu.memory_space<vmem>>, vector<32x128xf32>
    %c0_126 = arith.constant 0 : index
    %c0_127 = arith.constant 0 : index
    %595 = vector.load %arg21[%c0_126, %c0_127] : memref<32x128xf32, #tpu.memory_space<vmem>>, vector<32x128xf32>
    %c0_128 = arith.constant 0 : index
    %c0_129 = arith.constant 0 : index
    %596 = vector.load %arg16[%c0_128, %c0_129] : memref<2x32xf32, #tpu.memory_space<vmem>>, vector<2x32xf32>
    %c0_130 = arith.constant 0 : index
    %c0_131 = arith.constant 0 : index
    %597 = vector.load %arg17[%c0_130, %c0_131] : memref<2x32xf32, #tpu.memory_space<vmem>>, vector<2x32xf32>
    %598 = vector.extract_strided_slice %593 {offsets = [0, 0], sizes = [1, 256], strides = [1, 1]} : vector<16x256xf32> to vector<1x256xf32>
    %599 = vector.extract_strided_slice %593 {offsets = [8, 0], sizes = [1, 256], strides = [1, 1]} : vector<16x256xf32> to vector<1x256xf32>
    %600 = tpu.concatenate %598, %599 in 0 : vector<1x256xf32>, vector<1x256xf32> -> vector<2x256xf32>
    %601 = vector.extract_strided_slice %600 {offsets = [0, 0], sizes = [2, 128], strides = [1, 1]} : vector<2x256xf32> to vector<2x128xf32>
    %cst_132 = arith.constant dense<0.000000e+00> : vector<2x128xf32>
    %602 = tpu.matmul %596, %594, %cst_132 {dimension_numbers = #tpu.dot_dimension_numbers<[1], [0], [0], [1], [0, 0, 1, 1], [], []>} : vector<2x32xf32>, vector<32x128xf32>, vector<2x128xf32> -> vector<2x128xf32>
    %603 = arith.addf %601, %602 : vector<2x128xf32>
    %604 = vector.extract_strided_slice %603 {offsets = [0, 0], sizes = [2, 32], strides = [1, 1]} : vector<2x128xf32> to vector<2x32xf32>
    %605 = arith.negf %604 : vector<2x32xf32>
    %606 = math.exp %605 : vector<2x32xf32>
    %cst_133 = arith.constant 1.000000e+00 : f32
    %607 = vector.broadcast %cst_133 : f32 to vector<2x32xf32>
    %608 = arith.addf %607, %606 : vector<2x32xf32>
    %609 = arith.divf %607, %608 : vector<2x32xf32>
    %610 = vector.extract_strided_slice %603 {offsets = [0, 32], sizes = [2, 32], strides = [1, 1]} : vector<2x128xf32> to vector<2x32xf32>
    %611 = arith.negf %610 : vector<2x32xf32>
    %612 = math.exp %611 : vector<2x32xf32>
    %cst_134 = arith.constant 1.000000e+00 : f32
    %613 = vector.broadcast %cst_134 : f32 to vector<2x32xf32>
    %614 = arith.addf %613, %612 : vector<2x32xf32>
    %615 = arith.divf %613, %614 : vector<2x32xf32>
    %616 = vector.extract_strided_slice %603 {offsets = [0, 64], sizes = [2, 32], strides = [1, 1]} : vector<2x128xf32> to vector<2x32xf32>
    %617 = math.tanh %616 : vector<2x32xf32>
    %618 = vector.extract_strided_slice %603 {offsets = [0, 96], sizes = [2, 32], strides = [1, 1]} : vector<2x128xf32> to vector<2x32xf32>
    %619 = arith.negf %618 : vector<2x32xf32>
    %620 = math.exp %619 : vector<2x32xf32>
    %cst_135 = arith.constant 1.000000e+00 : f32
    %621 = vector.broadcast %cst_135 : f32 to vector<2x32xf32>
    %622 = arith.addf %621, %620 : vector<2x32xf32>
    %623 = arith.divf %621, %622 : vector<2x32xf32>
    %624 = arith.mulf %615, %597 : vector<2x32xf32>
    %625 = arith.mulf %609, %617 : vector<2x32xf32>
    %626 = arith.addf %624, %625 : vector<2x32xf32>
    %627 = math.tanh %626 : vector<2x32xf32>
    %628 = arith.mulf %623, %627 : vector<2x32xf32>
    %629 = vector.extract_strided_slice %600 {offsets = [0, 128], sizes = [2, 128], strides = [1, 1]} : vector<2x256xf32> to vector<2x128xf32>
    %cst_136 = arith.constant dense<0.000000e+00> : vector<2x128xf32>
    %630 = tpu.matmul %628, %595, %cst_136 {dimension_numbers = #tpu.dot_dimension_numbers<[1], [0], [0], [1], [0, 0, 1, 1], [], []>} : vector<2x32xf32>, vector<32x128xf32>, vector<2x128xf32> -> vector<2x128xf32>
    %631 = arith.addf %629, %630 : vector<2x128xf32>
    %632 = vector.extract_strided_slice %631 {offsets = [0, 0], sizes = [2, 32], strides = [1, 1]} : vector<2x128xf32> to vector<2x32xf32>
    %633 = math.tanh %632 : vector<2x32xf32>
    %634 = vector.extract_strided_slice %631 {offsets = [0, 32], sizes = [2, 32], strides = [1, 1]} : vector<2x128xf32> to vector<2x32xf32>
    %635 = math.tanh %634 : vector<2x32xf32>
    %636 = vector.extract_strided_slice %631 {offsets = [0, 64], sizes = [2, 32], strides = [1, 1]} : vector<2x128xf32> to vector<2x32xf32>
    %637 = vector.extract_strided_slice %631 {offsets = [0, 96], sizes = [2, 32], strides = [1, 1]} : vector<2x128xf32> to vector<2x32xf32>
    %638 = vector.broadcast %3 : vector<2x1xf32> to vector<2x32xf32>
    %639 = arith.mulf %636, %638 : vector<2x32xf32>
    %640 = arith.addf %639, %637 : vector<2x32xf32>
    %641 = arith.negf %640 : vector<2x32xf32>
    %642 = math.exp %641 : vector<2x32xf32>
    %cst_137 = arith.constant 1.000000e+00 : f32
    %643 = vector.broadcast %cst_137 : f32 to vector<2x32xf32>
    %644 = arith.addf %643, %642 : vector<2x32xf32>
    %645 = arith.divf %643, %644 : vector<2x32xf32>
    %cst_138 = arith.constant 1.000000e+00 : f32
    %646 = vector.broadcast %cst_138 : f32 to vector<2x32xf32>
    %647 = arith.subf %646, %645 : vector<2x32xf32>
    %648 = arith.mulf %633, %647 : vector<2x32xf32>
    %649 = arith.mulf %645, %635 : vector<2x32xf32>
    %650 = arith.addf %648, %649 : vector<2x32xf32>
    %651 = vector.extract_strided_slice %650 {offsets = [0, 0], sizes = [2, 16], strides = [1, 1]} : vector<2x32xf32> to vector<2x16xf32>
    %652 = vector.extract_strided_slice %593 {offsets = [1, 0], sizes = [1, 256], strides = [1, 1]} : vector<16x256xf32> to vector<1x256xf32>
    %653 = vector.extract_strided_slice %593 {offsets = [9, 0], sizes = [1, 256], strides = [1, 1]} : vector<16x256xf32> to vector<1x256xf32>
    %654 = tpu.concatenate %652, %653 in 0 : vector<1x256xf32>, vector<1x256xf32> -> vector<2x256xf32>
    %655 = vector.extract_strided_slice %654 {offsets = [0, 0], sizes = [2, 128], strides = [1, 1]} : vector<2x256xf32> to vector<2x128xf32>
    %cst_139 = arith.constant dense<0.000000e+00> : vector<2x128xf32>
    %656 = tpu.matmul %650, %594, %cst_139 {dimension_numbers = #tpu.dot_dimension_numbers<[1], [0], [0], [1], [0, 0, 1, 1], [], []>} : vector<2x32xf32>, vector<32x128xf32>, vector<2x128xf32> -> vector<2x128xf32>
    %657 = arith.addf %655, %656 : vector<2x128xf32>
    %658 = vector.extract_strided_slice %657 {offsets = [0, 0], sizes = [2, 32], strides = [1, 1]} : vector<2x128xf32> to vector<2x32xf32>
    %659 = arith.negf %658 : vector<2x32xf32>
    %660 = math.exp %659 : vector<2x32xf32>
    %cst_140 = arith.constant 1.000000e+00 : f32
    %661 = vector.broadcast %cst_140 : f32 to vector<2x32xf32>
    %662 = arith.addf %661, %660 : vector<2x32xf32>
    %663 = arith.divf %661, %662 : vector<2x32xf32>
    %664 = vector.extract_strided_slice %657 {offsets = [0, 32], sizes = [2, 32], strides = [1, 1]} : vector<2x128xf32> to vector<2x32xf32>
    %665 = arith.negf %664 : vector<2x32xf32>
    %666 = math.exp %665 : vector<2x32xf32>
    %cst_141 = arith.constant 1.000000e+00 : f32
    %667 = vector.broadcast %cst_141 : f32 to vector<2x32xf32>
    %668 = arith.addf %667, %666 : vector<2x32xf32>
    %669 = arith.divf %667, %668 : vector<2x32xf32>
    %670 = vector.extract_strided_slice %657 {offsets = [0, 64], sizes = [2, 32], strides = [1, 1]} : vector<2x128xf32> to vector<2x32xf32>
    %671 = math.tanh %670 : vector<2x32xf32>
    %672 = vector.extract_strided_slice %657 {offsets = [0, 96], sizes = [2, 32], strides = [1, 1]} : vector<2x128xf32> to vector<2x32xf32>
    %673 = arith.negf %672 : vector<2x32xf32>
    %674 = math.exp %673 : vector<2x32xf32>
    %cst_142 = arith.constant 1.000000e+00 : f32
    %675 = vector.broadcast %cst_142 : f32 to vector<2x32xf32>
    %676 = arith.addf %675, %674 : vector<2x32xf32>
    %677 = arith.divf %675, %676 : vector<2x32xf32>
    %678 = arith.mulf %669, %626 : vector<2x32xf32>
    %679 = arith.mulf %663, %671 : vector<2x32xf32>
    %680 = arith.addf %678, %679 : vector<2x32xf32>
    %681 = math.tanh %680 : vector<2x32xf32>
    %682 = arith.mulf %677, %681 : vector<2x32xf32>
    %683 = vector.extract_strided_slice %654 {offsets = [0, 128], sizes = [2, 128], strides = [1, 1]} : vector<2x256xf32> to vector<2x128xf32>
    %cst_143 = arith.constant dense<0.000000e+00> : vector<2x128xf32>
    %684 = tpu.matmul %682, %595, %cst_143 {dimension_numbers = #tpu.dot_dimension_numbers<[1], [0], [0], [1], [0, 0, 1, 1], [], []>} : vector<2x32xf32>, vector<32x128xf32>, vector<2x128xf32> -> vector<2x128xf32>
    %685 = arith.addf %683, %684 : vector<2x128xf32>
    %686 = vector.extract_strided_slice %685 {offsets = [0, 0], sizes = [2, 32], strides = [1, 1]} : vector<2x128xf32> to vector<2x32xf32>
    %687 = math.tanh %686 : vector<2x32xf32>
    %688 = vector.extract_strided_slice %685 {offsets = [0, 32], sizes = [2, 32], strides = [1, 1]} : vector<2x128xf32> to vector<2x32xf32>
    %689 = math.tanh %688 : vector<2x32xf32>
    %690 = vector.extract_strided_slice %685 {offsets = [0, 64], sizes = [2, 32], strides = [1, 1]} : vector<2x128xf32> to vector<2x32xf32>
    %691 = vector.extract_strided_slice %685 {offsets = [0, 96], sizes = [2, 32], strides = [1, 1]} : vector<2x128xf32> to vector<2x32xf32>
    %692 = vector.broadcast %6 : vector<2x1xf32> to vector<2x32xf32>
    %693 = arith.mulf %690, %692 : vector<2x32xf32>
    %694 = arith.addf %693, %691 : vector<2x32xf32>
    %695 = arith.negf %694 : vector<2x32xf32>
    %696 = math.exp %695 : vector<2x32xf32>
    %cst_144 = arith.constant 1.000000e+00 : f32
    %697 = vector.broadcast %cst_144 : f32 to vector<2x32xf32>
    %698 = arith.addf %697, %696 : vector<2x32xf32>
    %699 = arith.divf %697, %698 : vector<2x32xf32>
    %cst_145 = arith.constant 1.000000e+00 : f32
    %700 = vector.broadcast %cst_145 : f32 to vector<2x32xf32>
    %701 = arith.subf %700, %699 : vector<2x32xf32>
    %702 = arith.mulf %687, %701 : vector<2x32xf32>
    %703 = arith.mulf %699, %689 : vector<2x32xf32>
    %704 = arith.addf %702, %703 : vector<2x32xf32>
    %705 = vector.extract_strided_slice %704 {offsets = [0, 0], sizes = [2, 16], strides = [1, 1]} : vector<2x32xf32> to vector<2x16xf32>
    %706 = vector.extract_strided_slice %593 {offsets = [2, 0], sizes = [1, 256], strides = [1, 1]} : vector<16x256xf32> to vector<1x256xf32>
    %707 = vector.extract_strided_slice %593 {offsets = [10, 0], sizes = [1, 256], strides = [1, 1]} : vector<16x256xf32> to vector<1x256xf32>
    %708 = tpu.concatenate %706, %707 in 0 : vector<1x256xf32>, vector<1x256xf32> -> vector<2x256xf32>
    %709 = vector.extract_strided_slice %708 {offsets = [0, 0], sizes = [2, 128], strides = [1, 1]} : vector<2x256xf32> to vector<2x128xf32>
    %cst_146 = arith.constant dense<0.000000e+00> : vector<2x128xf32>
    %710 = tpu.matmul %704, %594, %cst_146 {dimension_numbers = #tpu.dot_dimension_numbers<[1], [0], [0], [1], [0, 0, 1, 1], [], []>} : vector<2x32xf32>, vector<32x128xf32>, vector<2x128xf32> -> vector<2x128xf32>
    %711 = arith.addf %709, %710 : vector<2x128xf32>
    %712 = vector.extract_strided_slice %711 {offsets = [0, 0], sizes = [2, 32], strides = [1, 1]} : vector<2x128xf32> to vector<2x32xf32>
    %713 = arith.negf %712 : vector<2x32xf32>
    %714 = math.exp %713 : vector<2x32xf32>
    %cst_147 = arith.constant 1.000000e+00 : f32
    %715 = vector.broadcast %cst_147 : f32 to vector<2x32xf32>
    %716 = arith.addf %715, %714 : vector<2x32xf32>
    %717 = arith.divf %715, %716 : vector<2x32xf32>
    %718 = vector.extract_strided_slice %711 {offsets = [0, 32], sizes = [2, 32], strides = [1, 1]} : vector<2x128xf32> to vector<2x32xf32>
    %719 = arith.negf %718 : vector<2x32xf32>
    %720 = math.exp %719 : vector<2x32xf32>
    %cst_148 = arith.constant 1.000000e+00 : f32
    %721 = vector.broadcast %cst_148 : f32 to vector<2x32xf32>
    %722 = arith.addf %721, %720 : vector<2x32xf32>
    %723 = arith.divf %721, %722 : vector<2x32xf32>
    %724 = vector.extract_strided_slice %711 {offsets = [0, 64], sizes = [2, 32], strides = [1, 1]} : vector<2x128xf32> to vector<2x32xf32>
    %725 = math.tanh %724 : vector<2x32xf32>
    %726 = vector.extract_strided_slice %711 {offsets = [0, 96], sizes = [2, 32], strides = [1, 1]} : vector<2x128xf32> to vector<2x32xf32>
    %727 = arith.negf %726 : vector<2x32xf32>
    %728 = math.exp %727 : vector<2x32xf32>
    %cst_149 = arith.constant 1.000000e+00 : f32
    %729 = vector.broadcast %cst_149 : f32 to vector<2x32xf32>
    %730 = arith.addf %729, %728 : vector<2x32xf32>
    %731 = arith.divf %729, %730 : vector<2x32xf32>
    %732 = arith.mulf %723, %680 : vector<2x32xf32>
    %733 = arith.mulf %717, %725 : vector<2x32xf32>
    %734 = arith.addf %732, %733 : vector<2x32xf32>
    %735 = math.tanh %734 : vector<2x32xf32>
    %736 = arith.mulf %731, %735 : vector<2x32xf32>
    %737 = vector.extract_strided_slice %708 {offsets = [0, 128], sizes = [2, 128], strides = [1, 1]} : vector<2x256xf32> to vector<2x128xf32>
    %cst_150 = arith.constant dense<0.000000e+00> : vector<2x128xf32>
    %738 = tpu.matmul %736, %595, %cst_150 {dimension_numbers = #tpu.dot_dimension_numbers<[1], [0], [0], [1], [0, 0, 1, 1], [], []>} : vector<2x32xf32>, vector<32x128xf32>, vector<2x128xf32> -> vector<2x128xf32>
    %739 = arith.addf %737, %738 : vector<2x128xf32>
    %740 = vector.extract_strided_slice %739 {offsets = [0, 0], sizes = [2, 32], strides = [1, 1]} : vector<2x128xf32> to vector<2x32xf32>
    %741 = math.tanh %740 : vector<2x32xf32>
    %742 = vector.extract_strided_slice %739 {offsets = [0, 32], sizes = [2, 32], strides = [1, 1]} : vector<2x128xf32> to vector<2x32xf32>
    %743 = math.tanh %742 : vector<2x32xf32>
    %744 = vector.extract_strided_slice %739 {offsets = [0, 64], sizes = [2, 32], strides = [1, 1]} : vector<2x128xf32> to vector<2x32xf32>
    %745 = vector.extract_strided_slice %739 {offsets = [0, 96], sizes = [2, 32], strides = [1, 1]} : vector<2x128xf32> to vector<2x32xf32>
    %746 = vector.broadcast %9 : vector<2x1xf32> to vector<2x32xf32>
    %747 = arith.mulf %744, %746 : vector<2x32xf32>
    %748 = arith.addf %747, %745 : vector<2x32xf32>
    %749 = arith.negf %748 : vector<2x32xf32>
    %750 = math.exp %749 : vector<2x32xf32>
    %cst_151 = arith.constant 1.000000e+00 : f32
    %751 = vector.broadcast %cst_151 : f32 to vector<2x32xf32>
    %752 = arith.addf %751, %750 : vector<2x32xf32>
    %753 = arith.divf %751, %752 : vector<2x32xf32>
    %cst_152 = arith.constant 1.000000e+00 : f32
    %754 = vector.broadcast %cst_152 : f32 to vector<2x32xf32>
    %755 = arith.subf %754, %753 : vector<2x32xf32>
    %756 = arith.mulf %741, %755 : vector<2x32xf32>
    %757 = arith.mulf %753, %743 : vector<2x32xf32>
    %758 = arith.addf %756, %757 : vector<2x32xf32>
    %759 = vector.extract_strided_slice %758 {offsets = [0, 0], sizes = [2, 16], strides = [1, 1]} : vector<2x32xf32> to vector<2x16xf32>
    %760 = vector.extract_strided_slice %593 {offsets = [3, 0], sizes = [1, 256], strides = [1, 1]} : vector<16x256xf32> to vector<1x256xf32>
    %761 = vector.extract_strided_slice %593 {offsets = [11, 0], sizes = [1, 256], strides = [1, 1]} : vector<16x256xf32> to vector<1x256xf32>
    %762 = tpu.concatenate %760, %761 in 0 : vector<1x256xf32>, vector<1x256xf32> -> vector<2x256xf32>
    %763 = vector.extract_strided_slice %762 {offsets = [0, 0], sizes = [2, 128], strides = [1, 1]} : vector<2x256xf32> to vector<2x128xf32>
    %cst_153 = arith.constant dense<0.000000e+00> : vector<2x128xf32>
    %764 = tpu.matmul %758, %594, %cst_153 {dimension_numbers = #tpu.dot_dimension_numbers<[1], [0], [0], [1], [0, 0, 1, 1], [], []>} : vector<2x32xf32>, vector<32x128xf32>, vector<2x128xf32> -> vector<2x128xf32>
    %765 = arith.addf %763, %764 : vector<2x128xf32>
    %766 = vector.extract_strided_slice %765 {offsets = [0, 0], sizes = [2, 32], strides = [1, 1]} : vector<2x128xf32> to vector<2x32xf32>
    %767 = arith.negf %766 : vector<2x32xf32>
    %768 = math.exp %767 : vector<2x32xf32>
    %cst_154 = arith.constant 1.000000e+00 : f32
    %769 = vector.broadcast %cst_154 : f32 to vector<2x32xf32>
    %770 = arith.addf %769, %768 : vector<2x32xf32>
    %771 = arith.divf %769, %770 : vector<2x32xf32>
    %772 = vector.extract_strided_slice %765 {offsets = [0, 32], sizes = [2, 32], strides = [1, 1]} : vector<2x128xf32> to vector<2x32xf32>
    %773 = arith.negf %772 : vector<2x32xf32>
    %774 = math.exp %773 : vector<2x32xf32>
    %cst_155 = arith.constant 1.000000e+00 : f32
    %775 = vector.broadcast %cst_155 : f32 to vector<2x32xf32>
    %776 = arith.addf %775, %774 : vector<2x32xf32>
    %777 = arith.divf %775, %776 : vector<2x32xf32>
    %778 = vector.extract_strided_slice %765 {offsets = [0, 64], sizes = [2, 32], strides = [1, 1]} : vector<2x128xf32> to vector<2x32xf32>
    %779 = math.tanh %778 : vector<2x32xf32>
    %780 = vector.extract_strided_slice %765 {offsets = [0, 96], sizes = [2, 32], strides = [1, 1]} : vector<2x128xf32> to vector<2x32xf32>
    %781 = arith.negf %780 : vector<2x32xf32>
    %782 = math.exp %781 : vector<2x32xf32>
    %cst_156 = arith.constant 1.000000e+00 : f32
    %783 = vector.broadcast %cst_156 : f32 to vector<2x32xf32>
    %784 = arith.addf %783, %782 : vector<2x32xf32>
    %785 = arith.divf %783, %784 : vector<2x32xf32>
    %786 = arith.mulf %777, %734 : vector<2x32xf32>
    %787 = arith.mulf %771, %779 : vector<2x32xf32>
    %788 = arith.addf %786, %787 : vector<2x32xf32>
    %789 = math.tanh %788 : vector<2x32xf32>
    %790 = arith.mulf %785, %789 : vector<2x32xf32>
    %791 = vector.extract_strided_slice %762 {offsets = [0, 128], sizes = [2, 128], strides = [1, 1]} : vector<2x256xf32> to vector<2x128xf32>
    %cst_157 = arith.constant dense<0.000000e+00> : vector<2x128xf32>
    %792 = tpu.matmul %790, %595, %cst_157 {dimension_numbers = #tpu.dot_dimension_numbers<[1], [0], [0], [1], [0, 0, 1, 1], [], []>} : vector<2x32xf32>, vector<32x128xf32>, vector<2x128xf32> -> vector<2x128xf32>
    %793 = arith.addf %791, %792 : vector<2x128xf32>
    %794 = vector.extract_strided_slice %793 {offsets = [0, 0], sizes = [2, 32], strides = [1, 1]} : vector<2x128xf32> to vector<2x32xf32>
    %795 = math.tanh %794 : vector<2x32xf32>
    %796 = vector.extract_strided_slice %793 {offsets = [0, 32], sizes = [2, 32], strides = [1, 1]} : vector<2x128xf32> to vector<2x32xf32>
    %797 = math.tanh %796 : vector<2x32xf32>
    %798 = vector.extract_strided_slice %793 {offsets = [0, 64], sizes = [2, 32], strides = [1, 1]} : vector<2x128xf32> to vector<2x32xf32>
    %799 = vector.extract_strided_slice %793 {offsets = [0, 96], sizes = [2, 32], strides = [1, 1]} : vector<2x128xf32> to vector<2x32xf32>
    %800 = vector.broadcast %12 : vector<2x1xf32> to vector<2x32xf32>
    %801 = arith.mulf %798, %800 : vector<2x32xf32>
    %802 = arith.addf %801, %799 : vector<2x32xf32>
    %803 = arith.negf %802 : vector<2x32xf32>
    %804 = math.exp %803 : vector<2x32xf32>
    %cst_158 = arith.constant 1.000000e+00 : f32
    %805 = vector.broadcast %cst_158 : f32 to vector<2x32xf32>
    %806 = arith.addf %805, %804 : vector<2x32xf32>
    %807 = arith.divf %805, %806 : vector<2x32xf32>
    %cst_159 = arith.constant 1.000000e+00 : f32
    %808 = vector.broadcast %cst_159 : f32 to vector<2x32xf32>
    %809 = arith.subf %808, %807 : vector<2x32xf32>
    %810 = arith.mulf %795, %809 : vector<2x32xf32>
    %811 = arith.mulf %807, %797 : vector<2x32xf32>
    %812 = arith.addf %810, %811 : vector<2x32xf32>
    %813 = vector.extract_strided_slice %812 {offsets = [0, 0], sizes = [2, 16], strides = [1, 1]} : vector<2x32xf32> to vector<2x16xf32>
    %814 = vector.extract_strided_slice %593 {offsets = [4, 0], sizes = [1, 256], strides = [1, 1]} : vector<16x256xf32> to vector<1x256xf32>
    %815 = vector.extract_strided_slice %593 {offsets = [12, 0], sizes = [1, 256], strides = [1, 1]} : vector<16x256xf32> to vector<1x256xf32>
    %816 = tpu.concatenate %814, %815 in 0 : vector<1x256xf32>, vector<1x256xf32> -> vector<2x256xf32>
    %817 = vector.extract_strided_slice %816 {offsets = [0, 0], sizes = [2, 128], strides = [1, 1]} : vector<2x256xf32> to vector<2x128xf32>
    %cst_160 = arith.constant dense<0.000000e+00> : vector<2x128xf32>
    %818 = tpu.matmul %812, %594, %cst_160 {dimension_numbers = #tpu.dot_dimension_numbers<[1], [0], [0], [1], [0, 0, 1, 1], [], []>} : vector<2x32xf32>, vector<32x128xf32>, vector<2x128xf32> -> vector<2x128xf32>
    %819 = arith.addf %817, %818 : vector<2x128xf32>
    %820 = vector.extract_strided_slice %819 {offsets = [0, 0], sizes = [2, 32], strides = [1, 1]} : vector<2x128xf32> to vector<2x32xf32>
    %821 = arith.negf %820 : vector<2x32xf32>
    %822 = math.exp %821 : vector<2x32xf32>
    %cst_161 = arith.constant 1.000000e+00 : f32
    %823 = vector.broadcast %cst_161 : f32 to vector<2x32xf32>
    %824 = arith.addf %823, %822 : vector<2x32xf32>
    %825 = arith.divf %823, %824 : vector<2x32xf32>
    %826 = vector.extract_strided_slice %819 {offsets = [0, 32], sizes = [2, 32], strides = [1, 1]} : vector<2x128xf32> to vector<2x32xf32>
    %827 = arith.negf %826 : vector<2x32xf32>
    %828 = math.exp %827 : vector<2x32xf32>
    %cst_162 = arith.constant 1.000000e+00 : f32
    %829 = vector.broadcast %cst_162 : f32 to vector<2x32xf32>
    %830 = arith.addf %829, %828 : vector<2x32xf32>
    %831 = arith.divf %829, %830 : vector<2x32xf32>
    %832 = vector.extract_strided_slice %819 {offsets = [0, 64], sizes = [2, 32], strides = [1, 1]} : vector<2x128xf32> to vector<2x32xf32>
    %833 = math.tanh %832 : vector<2x32xf32>
    %834 = vector.extract_strided_slice %819 {offsets = [0, 96], sizes = [2, 32], strides = [1, 1]} : vector<2x128xf32> to vector<2x32xf32>
    %835 = arith.negf %834 : vector<2x32xf32>
    %836 = math.exp %835 : vector<2x32xf32>
    %cst_163 = arith.constant 1.000000e+00 : f32
    %837 = vector.broadcast %cst_163 : f32 to vector<2x32xf32>
    %838 = arith.addf %837, %836 : vector<2x32xf32>
    %839 = arith.divf %837, %838 : vector<2x32xf32>
    %840 = arith.mulf %831, %788 : vector<2x32xf32>
    %841 = arith.mulf %825, %833 : vector<2x32xf32>
    %842 = arith.addf %840, %841 : vector<2x32xf32>
    %843 = math.tanh %842 : vector<2x32xf32>
    %844 = arith.mulf %839, %843 : vector<2x32xf32>
    %845 = vector.extract_strided_slice %816 {offsets = [0, 128], sizes = [2, 128], strides = [1, 1]} : vector<2x256xf32> to vector<2x128xf32>
    %cst_164 = arith.constant dense<0.000000e+00> : vector<2x128xf32>
    %846 = tpu.matmul %844, %595, %cst_164 {dimension_numbers = #tpu.dot_dimension_numbers<[1], [0], [0], [1], [0, 0, 1, 1], [], []>} : vector<2x32xf32>, vector<32x128xf32>, vector<2x128xf32> -> vector<2x128xf32>
    %847 = arith.addf %845, %846 : vector<2x128xf32>
    %848 = vector.extract_strided_slice %847 {offsets = [0, 0], sizes = [2, 32], strides = [1, 1]} : vector<2x128xf32> to vector<2x32xf32>
    %849 = math.tanh %848 : vector<2x32xf32>
    %850 = vector.extract_strided_slice %847 {offsets = [0, 32], sizes = [2, 32], strides = [1, 1]} : vector<2x128xf32> to vector<2x32xf32>
    %851 = math.tanh %850 : vector<2x32xf32>
    %852 = vector.extract_strided_slice %847 {offsets = [0, 64], sizes = [2, 32], strides = [1, 1]} : vector<2x128xf32> to vector<2x32xf32>
    %853 = vector.extract_strided_slice %847 {offsets = [0, 96], sizes = [2, 32], strides = [1, 1]} : vector<2x128xf32> to vector<2x32xf32>
    %854 = vector.broadcast %15 : vector<2x1xf32> to vector<2x32xf32>
    %855 = arith.mulf %852, %854 : vector<2x32xf32>
    %856 = arith.addf %855, %853 : vector<2x32xf32>
    %857 = arith.negf %856 : vector<2x32xf32>
    %858 = math.exp %857 : vector<2x32xf32>
    %cst_165 = arith.constant 1.000000e+00 : f32
    %859 = vector.broadcast %cst_165 : f32 to vector<2x32xf32>
    %860 = arith.addf %859, %858 : vector<2x32xf32>
    %861 = arith.divf %859, %860 : vector<2x32xf32>
    %cst_166 = arith.constant 1.000000e+00 : f32
    %862 = vector.broadcast %cst_166 : f32 to vector<2x32xf32>
    %863 = arith.subf %862, %861 : vector<2x32xf32>
    %864 = arith.mulf %849, %863 : vector<2x32xf32>
    %865 = arith.mulf %861, %851 : vector<2x32xf32>
    %866 = arith.addf %864, %865 : vector<2x32xf32>
    %867 = vector.extract_strided_slice %866 {offsets = [0, 0], sizes = [2, 16], strides = [1, 1]} : vector<2x32xf32> to vector<2x16xf32>
    %868 = vector.extract_strided_slice %593 {offsets = [5, 0], sizes = [1, 256], strides = [1, 1]} : vector<16x256xf32> to vector<1x256xf32>
    %869 = vector.extract_strided_slice %593 {offsets = [13, 0], sizes = [1, 256], strides = [1, 1]} : vector<16x256xf32> to vector<1x256xf32>
    %870 = tpu.concatenate %868, %869 in 0 : vector<1x256xf32>, vector<1x256xf32> -> vector<2x256xf32>
    %871 = vector.extract_strided_slice %870 {offsets = [0, 0], sizes = [2, 128], strides = [1, 1]} : vector<2x256xf32> to vector<2x128xf32>
    %cst_167 = arith.constant dense<0.000000e+00> : vector<2x128xf32>
    %872 = tpu.matmul %866, %594, %cst_167 {dimension_numbers = #tpu.dot_dimension_numbers<[1], [0], [0], [1], [0, 0, 1, 1], [], []>} : vector<2x32xf32>, vector<32x128xf32>, vector<2x128xf32> -> vector<2x128xf32>
    %873 = arith.addf %871, %872 : vector<2x128xf32>
    %874 = vector.extract_strided_slice %873 {offsets = [0, 0], sizes = [2, 32], strides = [1, 1]} : vector<2x128xf32> to vector<2x32xf32>
    %875 = arith.negf %874 : vector<2x32xf32>
    %876 = math.exp %875 : vector<2x32xf32>
    %cst_168 = arith.constant 1.000000e+00 : f32
    %877 = vector.broadcast %cst_168 : f32 to vector<2x32xf32>
    %878 = arith.addf %877, %876 : vector<2x32xf32>
    %879 = arith.divf %877, %878 : vector<2x32xf32>
    %880 = vector.extract_strided_slice %873 {offsets = [0, 32], sizes = [2, 32], strides = [1, 1]} : vector<2x128xf32> to vector<2x32xf32>
    %881 = arith.negf %880 : vector<2x32xf32>
    %882 = math.exp %881 : vector<2x32xf32>
    %cst_169 = arith.constant 1.000000e+00 : f32
    %883 = vector.broadcast %cst_169 : f32 to vector<2x32xf32>
    %884 = arith.addf %883, %882 : vector<2x32xf32>
    %885 = arith.divf %883, %884 : vector<2x32xf32>
    %886 = vector.extract_strided_slice %873 {offsets = [0, 64], sizes = [2, 32], strides = [1, 1]} : vector<2x128xf32> to vector<2x32xf32>
    %887 = math.tanh %886 : vector<2x32xf32>
    %888 = vector.extract_strided_slice %873 {offsets = [0, 96], sizes = [2, 32], strides = [1, 1]} : vector<2x128xf32> to vector<2x32xf32>
    %889 = arith.negf %888 : vector<2x32xf32>
    %890 = math.exp %889 : vector<2x32xf32>
    %cst_170 = arith.constant 1.000000e+00 : f32
    %891 = vector.broadcast %cst_170 : f32 to vector<2x32xf32>
    %892 = arith.addf %891, %890 : vector<2x32xf32>
    %893 = arith.divf %891, %892 : vector<2x32xf32>
    %894 = arith.mulf %885, %842 : vector<2x32xf32>
    %895 = arith.mulf %879, %887 : vector<2x32xf32>
    %896 = arith.addf %894, %895 : vector<2x32xf32>
    %897 = math.tanh %896 : vector<2x32xf32>
    %898 = arith.mulf %893, %897 : vector<2x32xf32>
    %899 = vector.extract_strided_slice %870 {offsets = [0, 128], sizes = [2, 128], strides = [1, 1]} : vector<2x256xf32> to vector<2x128xf32>
    %cst_171 = arith.constant dense<0.000000e+00> : vector<2x128xf32>
    %900 = tpu.matmul %898, %595, %cst_171 {dimension_numbers = #tpu.dot_dimension_numbers<[1], [0], [0], [1], [0, 0, 1, 1], [], []>} : vector<2x32xf32>, vector<32x128xf32>, vector<2x128xf32> -> vector<2x128xf32>
    %901 = arith.addf %899, %900 : vector<2x128xf32>
    %902 = vector.extract_strided_slice %901 {offsets = [0, 0], sizes = [2, 32], strides = [1, 1]} : vector<2x128xf32> to vector<2x32xf32>
    %903 = math.tanh %902 : vector<2x32xf32>
    %904 = vector.extract_strided_slice %901 {offsets = [0, 32], sizes = [2, 32], strides = [1, 1]} : vector<2x128xf32> to vector<2x32xf32>
    %905 = math.tanh %904 : vector<2x32xf32>
    %906 = vector.extract_strided_slice %901 {offsets = [0, 64], sizes = [2, 32], strides = [1, 1]} : vector<2x128xf32> to vector<2x32xf32>
    %907 = vector.extract_strided_slice %901 {offsets = [0, 96], sizes = [2, 32], strides = [1, 1]} : vector<2x128xf32> to vector<2x32xf32>
    %908 = vector.broadcast %18 : vector<2x1xf32> to vector<2x32xf32>
    %909 = arith.mulf %906, %908 : vector<2x32xf32>
    %910 = arith.addf %909, %907 : vector<2x32xf32>
    %911 = arith.negf %910 : vector<2x32xf32>
    %912 = math.exp %911 : vector<2x32xf32>
    %cst_172 = arith.constant 1.000000e+00 : f32
    %913 = vector.broadcast %cst_172 : f32 to vector<2x32xf32>
    %914 = arith.addf %913, %912 : vector<2x32xf32>
    %915 = arith.divf %913, %914 : vector<2x32xf32>
    %cst_173 = arith.constant 1.000000e+00 : f32
    %916 = vector.broadcast %cst_173 : f32 to vector<2x32xf32>
    %917 = arith.subf %916, %915 : vector<2x32xf32>
    %918 = arith.mulf %903, %917 : vector<2x32xf32>
    %919 = arith.mulf %915, %905 : vector<2x32xf32>
    %920 = arith.addf %918, %919 : vector<2x32xf32>
    %921 = vector.extract_strided_slice %920 {offsets = [0, 0], sizes = [2, 16], strides = [1, 1]} : vector<2x32xf32> to vector<2x16xf32>
    %922 = vector.extract_strided_slice %593 {offsets = [6, 0], sizes = [1, 256], strides = [1, 1]} : vector<16x256xf32> to vector<1x256xf32>
    %923 = vector.extract_strided_slice %593 {offsets = [14, 0], sizes = [1, 256], strides = [1, 1]} : vector<16x256xf32> to vector<1x256xf32>
    %924 = tpu.concatenate %922, %923 in 0 : vector<1x256xf32>, vector<1x256xf32> -> vector<2x256xf32>
    %925 = vector.extract_strided_slice %924 {offsets = [0, 0], sizes = [2, 128], strides = [1, 1]} : vector<2x256xf32> to vector<2x128xf32>
    %cst_174 = arith.constant dense<0.000000e+00> : vector<2x128xf32>
    %926 = tpu.matmul %920, %594, %cst_174 {dimension_numbers = #tpu.dot_dimension_numbers<[1], [0], [0], [1], [0, 0, 1, 1], [], []>} : vector<2x32xf32>, vector<32x128xf32>, vector<2x128xf32> -> vector<2x128xf32>
    %927 = arith.addf %925, %926 : vector<2x128xf32>
    %928 = vector.extract_strided_slice %927 {offsets = [0, 0], sizes = [2, 32], strides = [1, 1]} : vector<2x128xf32> to vector<2x32xf32>
    %929 = arith.negf %928 : vector<2x32xf32>
    %930 = math.exp %929 : vector<2x32xf32>
    %cst_175 = arith.constant 1.000000e+00 : f32
    %931 = vector.broadcast %cst_175 : f32 to vector<2x32xf32>
    %932 = arith.addf %931, %930 : vector<2x32xf32>
    %933 = arith.divf %931, %932 : vector<2x32xf32>
    %934 = vector.extract_strided_slice %927 {offsets = [0, 32], sizes = [2, 32], strides = [1, 1]} : vector<2x128xf32> to vector<2x32xf32>
    %935 = arith.negf %934 : vector<2x32xf32>
    %936 = math.exp %935 : vector<2x32xf32>
    %cst_176 = arith.constant 1.000000e+00 : f32
    %937 = vector.broadcast %cst_176 : f32 to vector<2x32xf32>
    %938 = arith.addf %937, %936 : vector<2x32xf32>
    %939 = arith.divf %937, %938 : vector<2x32xf32>
    %940 = vector.extract_strided_slice %927 {offsets = [0, 64], sizes = [2, 32], strides = [1, 1]} : vector<2x128xf32> to vector<2x32xf32>
    %941 = math.tanh %940 : vector<2x32xf32>
    %942 = vector.extract_strided_slice %927 {offsets = [0, 96], sizes = [2, 32], strides = [1, 1]} : vector<2x128xf32> to vector<2x32xf32>
    %943 = arith.negf %942 : vector<2x32xf32>
    %944 = math.exp %943 : vector<2x32xf32>
    %cst_177 = arith.constant 1.000000e+00 : f32
    %945 = vector.broadcast %cst_177 : f32 to vector<2x32xf32>
    %946 = arith.addf %945, %944 : vector<2x32xf32>
    %947 = arith.divf %945, %946 : vector<2x32xf32>
    %948 = arith.mulf %939, %896 : vector<2x32xf32>
    %949 = arith.mulf %933, %941 : vector<2x32xf32>
    %950 = arith.addf %948, %949 : vector<2x32xf32>
    %951 = math.tanh %950 : vector<2x32xf32>
    %952 = arith.mulf %947, %951 : vector<2x32xf32>
    %953 = vector.extract_strided_slice %924 {offsets = [0, 128], sizes = [2, 128], strides = [1, 1]} : vector<2x256xf32> to vector<2x128xf32>
    %cst_178 = arith.constant dense<0.000000e+00> : vector<2x128xf32>
    %954 = tpu.matmul %952, %595, %cst_178 {dimension_numbers = #tpu.dot_dimension_numbers<[1], [0], [0], [1], [0, 0, 1, 1], [], []>} : vector<2x32xf32>, vector<32x128xf32>, vector<2x128xf32> -> vector<2x128xf32>
    %955 = arith.addf %953, %954 : vector<2x128xf32>
    %956 = vector.extract_strided_slice %955 {offsets = [0, 0], sizes = [2, 32], strides = [1, 1]} : vector<2x128xf32> to vector<2x32xf32>
    %957 = math.tanh %956 : vector<2x32xf32>
    %958 = vector.extract_strided_slice %955 {offsets = [0, 32], sizes = [2, 32], strides = [1, 1]} : vector<2x128xf32> to vector<2x32xf32>
    %959 = math.tanh %958 : vector<2x32xf32>
    %960 = vector.extract_strided_slice %955 {offsets = [0, 64], sizes = [2, 32], strides = [1, 1]} : vector<2x128xf32> to vector<2x32xf32>
    %961 = vector.extract_strided_slice %955 {offsets = [0, 96], sizes = [2, 32], strides = [1, 1]} : vector<2x128xf32> to vector<2x32xf32>
    %962 = vector.broadcast %21 : vector<2x1xf32> to vector<2x32xf32>
    %963 = arith.mulf %960, %962 : vector<2x32xf32>
    %964 = arith.addf %963, %961 : vector<2x32xf32>
    %965 = arith.negf %964 : vector<2x32xf32>
    %966 = math.exp %965 : vector<2x32xf32>
    %cst_179 = arith.constant 1.000000e+00 : f32
    %967 = vector.broadcast %cst_179 : f32 to vector<2x32xf32>
    %968 = arith.addf %967, %966 : vector<2x32xf32>
    %969 = arith.divf %967, %968 : vector<2x32xf32>
    %cst_180 = arith.constant 1.000000e+00 : f32
    %970 = vector.broadcast %cst_180 : f32 to vector<2x32xf32>
    %971 = arith.subf %970, %969 : vector<2x32xf32>
    %972 = arith.mulf %957, %971 : vector<2x32xf32>
    %973 = arith.mulf %969, %959 : vector<2x32xf32>
    %974 = arith.addf %972, %973 : vector<2x32xf32>
    %975 = vector.extract_strided_slice %974 {offsets = [0, 0], sizes = [2, 16], strides = [1, 1]} : vector<2x32xf32> to vector<2x16xf32>
    %976 = vector.extract_strided_slice %593 {offsets = [7, 0], sizes = [1, 256], strides = [1, 1]} : vector<16x256xf32> to vector<1x256xf32>
    %977 = vector.extract_strided_slice %593 {offsets = [15, 0], sizes = [1, 256], strides = [1, 1]} : vector<16x256xf32> to vector<1x256xf32>
    %978 = tpu.concatenate %976, %977 in 0 : vector<1x256xf32>, vector<1x256xf32> -> vector<2x256xf32>
    %979 = vector.extract_strided_slice %978 {offsets = [0, 0], sizes = [2, 128], strides = [1, 1]} : vector<2x256xf32> to vector<2x128xf32>
    %cst_181 = arith.constant dense<0.000000e+00> : vector<2x128xf32>
    %980 = tpu.matmul %974, %594, %cst_181 {dimension_numbers = #tpu.dot_dimension_numbers<[1], [0], [0], [1], [0, 0, 1, 1], [], []>} : vector<2x32xf32>, vector<32x128xf32>, vector<2x128xf32> -> vector<2x128xf32>
    %981 = arith.addf %979, %980 : vector<2x128xf32>
    %982 = vector.extract_strided_slice %981 {offsets = [0, 0], sizes = [2, 32], strides = [1, 1]} : vector<2x128xf32> to vector<2x32xf32>
    %983 = arith.negf %982 : vector<2x32xf32>
    %984 = math.exp %983 : vector<2x32xf32>
    %cst_182 = arith.constant 1.000000e+00 : f32
    %985 = vector.broadcast %cst_182 : f32 to vector<2x32xf32>
    %986 = arith.addf %985, %984 : vector<2x32xf32>
    %987 = arith.divf %985, %986 : vector<2x32xf32>
    %988 = vector.extract_strided_slice %981 {offsets = [0, 32], sizes = [2, 32], strides = [1, 1]} : vector<2x128xf32> to vector<2x32xf32>
    %989 = arith.negf %988 : vector<2x32xf32>
    %990 = math.exp %989 : vector<2x32xf32>
    %cst_183 = arith.constant 1.000000e+00 : f32
    %991 = vector.broadcast %cst_183 : f32 to vector<2x32xf32>
    %992 = arith.addf %991, %990 : vector<2x32xf32>
    %993 = arith.divf %991, %992 : vector<2x32xf32>
    %994 = vector.extract_strided_slice %981 {offsets = [0, 64], sizes = [2, 32], strides = [1, 1]} : vector<2x128xf32> to vector<2x32xf32>
    %995 = math.tanh %994 : vector<2x32xf32>
    %996 = vector.extract_strided_slice %981 {offsets = [0, 96], sizes = [2, 32], strides = [1, 1]} : vector<2x128xf32> to vector<2x32xf32>
    %997 = arith.negf %996 : vector<2x32xf32>
    %998 = math.exp %997 : vector<2x32xf32>
    %cst_184 = arith.constant 1.000000e+00 : f32
    %999 = vector.broadcast %cst_184 : f32 to vector<2x32xf32>
    %1000 = arith.addf %999, %998 : vector<2x32xf32>
    %1001 = arith.divf %999, %1000 : vector<2x32xf32>
    %1002 = arith.mulf %993, %950 : vector<2x32xf32>
    %1003 = arith.mulf %987, %995 : vector<2x32xf32>
    %1004 = arith.addf %1002, %1003 : vector<2x32xf32>
    %1005 = math.tanh %1004 : vector<2x32xf32>
    %1006 = arith.mulf %1001, %1005 : vector<2x32xf32>
    %1007 = vector.extract_strided_slice %978 {offsets = [0, 128], sizes = [2, 128], strides = [1, 1]} : vector<2x256xf32> to vector<2x128xf32>
    %cst_185 = arith.constant dense<0.000000e+00> : vector<2x128xf32>
    %1008 = tpu.matmul %1006, %595, %cst_185 {dimension_numbers = #tpu.dot_dimension_numbers<[1], [0], [0], [1], [0, 0, 1, 1], [], []>} : vector<2x32xf32>, vector<32x128xf32>, vector<2x128xf32> -> vector<2x128xf32>
    %1009 = arith.addf %1007, %1008 : vector<2x128xf32>
    %1010 = vector.extract_strided_slice %1009 {offsets = [0, 0], sizes = [2, 32], strides = [1, 1]} : vector<2x128xf32> to vector<2x32xf32>
    %1011 = math.tanh %1010 : vector<2x32xf32>
    %1012 = vector.extract_strided_slice %1009 {offsets = [0, 32], sizes = [2, 32], strides = [1, 1]} : vector<2x128xf32> to vector<2x32xf32>
    %1013 = math.tanh %1012 : vector<2x32xf32>
    %1014 = vector.extract_strided_slice %1009 {offsets = [0, 64], sizes = [2, 32], strides = [1, 1]} : vector<2x128xf32> to vector<2x32xf32>
    %1015 = vector.extract_strided_slice %1009 {offsets = [0, 96], sizes = [2, 32], strides = [1, 1]} : vector<2x128xf32> to vector<2x32xf32>
    %1016 = vector.broadcast %24 : vector<2x1xf32> to vector<2x32xf32>
    %1017 = arith.mulf %1014, %1016 : vector<2x32xf32>
    %1018 = arith.addf %1017, %1015 : vector<2x32xf32>
    %1019 = arith.negf %1018 : vector<2x32xf32>
    %1020 = math.exp %1019 : vector<2x32xf32>
    %cst_186 = arith.constant 1.000000e+00 : f32
    %1021 = vector.broadcast %cst_186 : f32 to vector<2x32xf32>
    %1022 = arith.addf %1021, %1020 : vector<2x32xf32>
    %1023 = arith.divf %1021, %1022 : vector<2x32xf32>
    %cst_187 = arith.constant 1.000000e+00 : f32
    %1024 = vector.broadcast %cst_187 : f32 to vector<2x32xf32>
    %1025 = arith.subf %1024, %1023 : vector<2x32xf32>
    %1026 = arith.mulf %1011, %1025 : vector<2x32xf32>
    %1027 = arith.mulf %1023, %1013 : vector<2x32xf32>
    %1028 = arith.addf %1026, %1027 : vector<2x32xf32>
    %1029 = vector.extract_strided_slice %1028 {offsets = [0, 0], sizes = [2, 16], strides = [1, 1]} : vector<2x32xf32> to vector<2x16xf32>
    %c0_188 = arith.constant 0 : index
    %c0_189 = arith.constant 0 : index
    %1030 = vector.load %arg40[%c0_188, %c0_189] : memref<2x32xf32, #tpu.memory_space<vmem>>, vector<2x32xf32>
    tpu.vector_store %arg40[%c0_188, %c0_189], %1028 {strides = array<i32>} : memref<2x32xf32, #tpu.memory_space<vmem>>, vector<2x32xf32>,
    %c0_190 = arith.constant 0 : index
    %c0_191 = arith.constant 0 : index
    %1031 = vector.load %arg42[%c0_190, %c0_191] : memref<2x32xf32, #tpu.memory_space<vmem>>, vector<2x32xf32>
    tpu.vector_store %arg42[%c0_190, %c0_191], %1004 {strides = array<i32>} : memref<2x32xf32, #tpu.memory_space<vmem>>, vector<2x32xf32>,
    %1032 = vector.extract_strided_slice %651 {offsets = [0, 0], sizes = [1, 16], strides = [1, 1]} : vector<2x16xf32> to vector<1x16xf32>
    %1033 = vector.extract_strided_slice %705 {offsets = [0, 0], sizes = [1, 16], strides = [1, 1]} : vector<2x16xf32> to vector<1x16xf32>
    %1034 = vector.extract_strided_slice %759 {offsets = [0, 0], sizes = [1, 16], strides = [1, 1]} : vector<2x16xf32> to vector<1x16xf32>
    %1035 = vector.extract_strided_slice %813 {offsets = [0, 0], sizes = [1, 16], strides = [1, 1]} : vector<2x16xf32> to vector<1x16xf32>
    %1036 = vector.extract_strided_slice %867 {offsets = [0, 0], sizes = [1, 16], strides = [1, 1]} : vector<2x16xf32> to vector<1x16xf32>
    %1037 = vector.extract_strided_slice %921 {offsets = [0, 0], sizes = [1, 16], strides = [1, 1]} : vector<2x16xf32> to vector<1x16xf32>
    %1038 = vector.extract_strided_slice %975 {offsets = [0, 0], sizes = [1, 16], strides = [1, 1]} : vector<2x16xf32> to vector<1x16xf32>
    %1039 = vector.extract_strided_slice %1029 {offsets = [0, 0], sizes = [1, 16], strides = [1, 1]} : vector<2x16xf32> to vector<1x16xf32>
    %1040 = tpu.concatenate %1032, %1033, %1034, %1035, %1036, %1037, %1038, %1039 in 0 : vector<1x16xf32>, vector<1x16xf32>, vector<1x16xf32>, vector<1x16xf32>, vector<1x16xf32>, vector<1x16xf32>, vector<1x16xf32>, vector<1x16xf32> -> vector<8x16xf32>
    %1041 = vector.extract_strided_slice %651 {offsets = [1, 0], sizes = [1, 16], strides = [1, 1]} : vector<2x16xf32> to vector<1x16xf32>
    %1042 = vector.extract_strided_slice %705 {offsets = [1, 0], sizes = [1, 16], strides = [1, 1]} : vector<2x16xf32> to vector<1x16xf32>
    %1043 = vector.extract_strided_slice %759 {offsets = [1, 0], sizes = [1, 16], strides = [1, 1]} : vector<2x16xf32> to vector<1x16xf32>
    %1044 = vector.extract_strided_slice %813 {offsets = [1, 0], sizes = [1, 16], strides = [1, 1]} : vector<2x16xf32> to vector<1x16xf32>
    %1045 = vector.extract_strided_slice %867 {offsets = [1, 0], sizes = [1, 16], strides = [1, 1]} : vector<2x16xf32> to vector<1x16xf32>
    %1046 = vector.extract_strided_slice %921 {offsets = [1, 0], sizes = [1, 16], strides = [1, 1]} : vector<2x16xf32> to vector<1x16xf32>
    %1047 = vector.extract_strided_slice %975 {offsets = [1, 0], sizes = [1, 16], strides = [1, 1]} : vector<2x16xf32> to vector<1x16xf32>
    %1048 = vector.extract_strided_slice %1029 {offsets = [1, 0], sizes = [1, 16], strides = [1, 1]} : vector<2x16xf32> to vector<1x16xf32>
    %1049 = tpu.concatenate %1041, %1042, %1043, %1044, %1045, %1046, %1047, %1048 in 0 : vector<1x16xf32>, vector<1x16xf32>, vector<1x16xf32>, vector<1x16xf32>, vector<1x16xf32>, vector<1x16xf32>, vector<1x16xf32>, vector<1x16xf32> -> vector<8x16xf32>
    %1050 = tpu.concatenate %1040, %1049 in 0 : vector<8x16xf32>, vector<8x16xf32> -> vector<16x16xf32>
    %c0_192 = arith.constant 0 : index
    %c0_193 = arith.constant 0 : index
    %1051 = vector.load %arg22[%c0_192, %c0_193] : memref<16x16xf32, #tpu.memory_space<vmem>>, vector<16x16xf32>
    %cst_194 = arith.constant dense<0.000000e+00> : vector<16x16xf32>
    %1052 = tpu.matmul %1050, %1051, %cst_194 {dimension_numbers = #tpu.dot_dimension_numbers<[1], [0], [0], [1], [0, 0, 1, 1], [], []>} : vector<16x16xf32>, vector<16x16xf32>, vector<16x16xf32> -> vector<16x16xf32>
    %c0_195 = arith.constant 0 : index
    %c0_196 = arith.constant 0 : index
    %1053 = vector.load %arg23[%c0_195, %c0_196] : memref<1x16xf32, #tpu.memory_space<vmem>>, vector<1x16xf32>
    %1054 = vector.broadcast %1053 : vector<1x16xf32> to vector<16x16xf32>
    %1055 = arith.addf %1052, %1054 : vector<16x16xf32>
    %c0_197 = arith.constant 0 : index
    %c0_198 = arith.constant 0 : index
    %1056 = vector.load %arg24[%c0_197, %c0_198] : memref<16x16xf32, #tpu.memory_space<vmem>>, vector<16x16xf32>
    %cst_199 = arith.constant dense<0.000000e+00> : vector<16x16xf32>
    %1057 = tpu.matmul %1050, %1056, %cst_199 {dimension_numbers = #tpu.dot_dimension_numbers<[1], [0], [0], [1], [0, 0, 1, 1], [], []>} : vector<16x16xf32>, vector<16x16xf32>, vector<16x16xf32> -> vector<16x16xf32>
    %c0_200 = arith.constant 0 : index
    %c0_201 = arith.constant 0 : index
    %1058 = vector.load %arg25[%c0_200, %c0_201] : memref<1x16xf32, #tpu.memory_space<vmem>>, vector<1x16xf32>
    %1059 = vector.broadcast %1058 : vector<1x16xf32> to vector<16x16xf32>
    %1060 = arith.addf %1057, %1059 : vector<16x16xf32>
    %c0_202 = arith.constant 0 : index
    %c0_203 = arith.constant 0 : index
    %1061 = vector.load %arg26[%c0_202, %c0_203] : memref<16x16xf32, #tpu.memory_space<vmem>>, vector<16x16xf32>
    %cst_204 = arith.constant dense<0.000000e+00> : vector<16x16xf32>
    %1062 = tpu.matmul %1050, %1061, %cst_204 {dimension_numbers = #tpu.dot_dimension_numbers<[1], [0], [0], [1], [0, 0, 1, 1], [], []>} : vector<16x16xf32>, vector<16x16xf32>, vector<16x16xf32> -> vector<16x16xf32>
    %c0_205 = arith.constant 0 : index
    %c0_206 = arith.constant 0 : index
    %1063 = vector.load %arg27[%c0_205, %c0_206] : memref<1x16xf32, #tpu.memory_space<vmem>>, vector<1x16xf32>
    %1064 = vector.broadcast %1063 : vector<1x16xf32> to vector<16x16xf32>
    %1065 = arith.addf %1062, %1064 : vector<16x16xf32>
    %1066 = vector.extract_strided_slice %1055 {offsets = [0, 0], sizes = [8, 16], strides = [1, 1]} : vector<16x16xf32> to vector<8x16xf32>
    %1067 = vector.extract_strided_slice %1060 {offsets = [0, 0], sizes = [8, 16], strides = [1, 1]} : vector<16x16xf32> to vector<8x16xf32>
    %1068 = vector.extract_strided_slice %1065 {offsets = [0, 0], sizes = [8, 16], strides = [1, 1]} : vector<16x16xf32> to vector<8x16xf32>
    %1069 = vector.extract_strided_slice %1066 {offsets = [0, 0], sizes = [8, 8], strides = [1, 1]} : vector<8x16xf32> to vector<8x8xf32>
    %1070 = vector.extract_strided_slice %1067 {offsets = [0, 0], sizes = [8, 8], strides = [1, 1]} : vector<8x16xf32> to vector<8x8xf32>
    "tpu.trace_start"() <{level = 10 : i32, message = "qd,kd->qk"}> : () -> ()
    %cst_207 = arith.constant dense<0.000000e+00> : vector<8x8xf32>
    %1071 = tpu.matmul %1069, %1070, %cst_207 {dimension_numbers = #tpu.dot_dimension_numbers<[1], [1], [0], [0], [0, 0, 1, 0], [], []>} : vector<8x8xf32>, vector<8x8xf32>, vector<8x8xf32> -> vector<8x8xf32>
    "tpu.trace_stop"() : () -> ()
    %cst_208 = arith.constant 0.353553385 : f32
    %1072 = vector.broadcast %cst_208 : f32 to vector<8x8xf32>
    %1073 = arith.mulf %1071, %1072 : vector<8x8xf32>
    %cst_209 = arith.constant dense<0xFF800000> : vector<8xf32>
    %1074 = vector.multi_reduction <maximumf>, %1073, %cst_209 [1] : vector<8x8xf32> to vector<8xf32>
    %cst_210 = arith.constant 0xFF800000 : f32
    %1075 = vector.broadcast %cst_210 : f32 to vector<8xf32>
    %1076 = arith.maximumf %1075, %1074 : vector<8xf32>
    %1077 = vector.shape_cast %1076 : vector<8xf32> to vector<8x1xf32>
    %1078 = vector.broadcast %1077 : vector<8x1xf32> to vector<8x8xf32>
    %1079 = arith.subf %1073, %1078 : vector<8x8xf32>
    %1080 = math.exp %1079 : vector<8x8xf32>
    %cst_211 = arith.constant dense<0.000000e+00> : vector<8xf32>
    %1081 = vector.multi_reduction <add>, %1080, %cst_211 [1] : vector<8x8xf32> to vector<8xf32>
    %1082 = vector.shape_cast %1081 : vector<8xf32> to vector<8x1xf32>
    %1083 = vector.broadcast %1082 : vector<8x1xf32> to vector<8x8xf32>
    %1084 = arith.divf %1080, %1083 : vector<8x8xf32>
    %1085 = vector.extract_strided_slice %1068 {offsets = [0, 0], sizes = [8, 8], strides = [1, 1]} : vector<8x16xf32> to vector<8x8xf32>
    %cst_212 = arith.constant dense<0.000000e+00> : vector<8x8xf32>
    %1086 = tpu.matmul %1084, %1085, %cst_212 {dimension_numbers = #tpu.dot_dimension_numbers<[1], [0], [0], [1], [0, 0, 1, 1], [], []>} : vector<8x8xf32>, vector<8x8xf32>, vector<8x8xf32> -> vector<8x8xf32>
    %1087 = vector.extract_strided_slice %1066 {offsets = [0, 8], sizes = [8, 8], strides = [1, 1]} : vector<8x16xf32> to vector<8x8xf32>
    %1088 = vector.extract_strided_slice %1067 {offsets = [0, 8], sizes = [8, 8], strides = [1, 1]} : vector<8x16xf32> to vector<8x8xf32>
    "tpu.trace_start"() <{level = 10 : i32, message = "qd,kd->qk"}> : () -> ()
    %cst_213 = arith.constant dense<0.000000e+00> : vector<8x8xf32>
    %1089 = tpu.matmul %1087, %1088, %cst_213 {dimension_numbers = #tpu.dot_dimension_numbers<[1], [1], [0], [0], [0, 0, 1, 0], [], []>} : vector<8x8xf32>, vector<8x8xf32>, vector<8x8xf32> -> vector<8x8xf32>
    "tpu.trace_stop"() : () -> ()
    %cst_214 = arith.constant 0.353553385 : f32
    %1090 = vector.broadcast %cst_214 : f32 to vector<8x8xf32>
    %1091 = arith.mulf %1089, %1090 : vector<8x8xf32>
    %cst_215 = arith.constant dense<0xFF800000> : vector<8xf32>
    %1092 = vector.multi_reduction <maximumf>, %1091, %cst_215 [1] : vector<8x8xf32> to vector<8xf32>
    %cst_216 = arith.constant 0xFF800000 : f32
    %1093 = vector.broadcast %cst_216 : f32 to vector<8xf32>
    %1094 = arith.maximumf %1093, %1092 : vector<8xf32>
    %1095 = vector.shape_cast %1094 : vector<8xf32> to vector<8x1xf32>
    %1096 = vector.broadcast %1095 : vector<8x1xf32> to vector<8x8xf32>
    %1097 = arith.subf %1091, %1096 : vector<8x8xf32>
    %1098 = math.exp %1097 : vector<8x8xf32>
    %cst_217 = arith.constant dense<0.000000e+00> : vector<8xf32>
    %1099 = vector.multi_reduction <add>, %1098, %cst_217 [1] : vector<8x8xf32> to vector<8xf32>
    %1100 = vector.shape_cast %1099 : vector<8xf32> to vector<8x1xf32>
    %1101 = vector.broadcast %1100 : vector<8x1xf32> to vector<8x8xf32>
    %1102 = arith.divf %1098, %1101 : vector<8x8xf32>
    %1103 = vector.extract_strided_slice %1068 {offsets = [0, 8], sizes = [8, 8], strides = [1, 1]} : vector<8x16xf32> to vector<8x8xf32>
    %cst_218 = arith.constant dense<0.000000e+00> : vector<8x8xf32>
    %1104 = tpu.matmul %1102, %1103, %cst_218 {dimension_numbers = #tpu.dot_dimension_numbers<[1], [0], [0], [1], [0, 0, 1, 1], [], []>} : vector<8x8xf32>, vector<8x8xf32>, vector<8x8xf32> -> vector<8x8xf32>
    %1105 = tpu.concatenate %1086, %1104 in 1 : vector<8x8xf32>, vector<8x8xf32> -> vector<8x16xf32>
    %1106 = vector.extract_strided_slice %1055 {offsets = [8, 0], sizes = [8, 16], strides = [1, 1]} : vector<16x16xf32> to vector<8x16xf32>
    %1107 = vector.extract_strided_slice %1060 {offsets = [8, 0], sizes = [8, 16], strides = [1, 1]} : vector<16x16xf32> to vector<8x16xf32>
    %1108 = vector.extract_strided_slice %1065 {offsets = [8, 0], sizes = [8, 16], strides = [1, 1]} : vector<16x16xf32> to vector<8x16xf32>
    %1109 = vector.extract_strided_slice %1106 {offsets = [0, 0], sizes = [8, 8], strides = [1, 1]} : vector<8x16xf32> to vector<8x8xf32>
    %1110 = vector.extract_strided_slice %1107 {offsets = [0, 0], sizes = [8, 8], strides = [1, 1]} : vector<8x16xf32> to vector<8x8xf32>
    "tpu.trace_start"() <{level = 10 : i32, message = "qd,kd->qk"}> : () -> ()
    %cst_219 = arith.constant dense<0.000000e+00> : vector<8x8xf32>
    %1111 = tpu.matmul %1109, %1110, %cst_219 {dimension_numbers = #tpu.dot_dimension_numbers<[1], [1], [0], [0], [0, 0, 1, 0], [], []>} : vector<8x8xf32>, vector<8x8xf32>, vector<8x8xf32> -> vector<8x8xf32>
    "tpu.trace_stop"() : () -> ()
    %cst_220 = arith.constant 0.353553385 : f32
    %1112 = vector.broadcast %cst_220 : f32 to vector<8x8xf32>
    %1113 = arith.mulf %1111, %1112 : vector<8x8xf32>
    %cst_221 = arith.constant dense<0xFF800000> : vector<8xf32>
    %1114 = vector.multi_reduction <maximumf>, %1113, %cst_221 [1] : vector<8x8xf32> to vector<8xf32>
    %cst_222 = arith.constant 0xFF800000 : f32
    %1115 = vector.broadcast %cst_222 : f32 to vector<8xf32>
    %1116 = arith.maximumf %1115, %1114 : vector<8xf32>
    %1117 = vector.shape_cast %1116 : vector<8xf32> to vector<8x1xf32>
    %1118 = vector.broadcast %1117 : vector<8x1xf32> to vector<8x8xf32>
    %1119 = arith.subf %1113, %1118 : vector<8x8xf32>
    %1120 = math.exp %1119 : vector<8x8xf32>
    %cst_223 = arith.constant dense<0.000000e+00> : vector<8xf32>
    %1121 = vector.multi_reduction <add>, %1120, %cst_223 [1] : vector<8x8xf32> to vector<8xf32>
    %1122 = vector.shape_cast %1121 : vector<8xf32> to vector<8x1xf32>
    %1123 = vector.broadcast %1122 : vector<8x1xf32> to vector<8x8xf32>
    %1124 = arith.divf %1120, %1123 : vector<8x8xf32>
    %1125 = vector.extract_strided_slice %1108 {offsets = [0, 0], sizes = [8, 8], strides = [1, 1]} : vector<8x16xf32> to vector<8x8xf32>
    %cst_224 = arith.constant dense<0.000000e+00> : vector<8x8xf32>
    %1126 = tpu.matmul %1124, %1125, %cst_224 {dimension_numbers = #tpu.dot_dimension_numbers<[1], [0], [0], [1], [0, 0, 1, 1], [], []>} : vector<8x8xf32>, vector<8x8xf32>, vector<8x8xf32> -> vector<8x8xf32>
    %1127 = vector.extract_strided_slice %1106 {offsets = [0, 8], sizes = [8, 8], strides = [1, 1]} : vector<8x16xf32> to vector<8x8xf32>
    %1128 = vector.extract_strided_slice %1107 {offsets = [0, 8], sizes = [8, 8], strides = [1, 1]} : vector<8x16xf32> to vector<8x8xf32>
    "tpu.trace_start"() <{level = 10 : i32, message = "qd,kd->qk"}> : () -> ()
    %cst_225 = arith.constant dense<0.000000e+00> : vector<8x8xf32>
    %1129 = tpu.matmul %1127, %1128, %cst_225 {dimension_numbers = #tpu.dot_dimension_numbers<[1], [1], [0], [0], [0, 0, 1, 0], [], []>} : vector<8x8xf32>, vector<8x8xf32>, vector<8x8xf32> -> vector<8x8xf32>
    "tpu.trace_stop"() : () -> ()
    %cst_226 = arith.constant 0.353553385 : f32
    %1130 = vector.broadcast %cst_226 : f32 to vector<8x8xf32>
    %1131 = arith.mulf %1129, %1130 : vector<8x8xf32>
    %cst_227 = arith.constant dense<0xFF800000> : vector<8xf32>
    %1132 = vector.multi_reduction <maximumf>, %1131, %cst_227 [1] : vector<8x8xf32> to vector<8xf32>
    %cst_228 = arith.constant 0xFF800000 : f32
    %1133 = vector.broadcast %cst_228 : f32 to vector<8xf32>
    %1134 = arith.maximumf %1133, %1132 : vector<8xf32>
    %1135 = vector.shape_cast %1134 : vector<8xf32> to vector<8x1xf32>
    %1136 = vector.broadcast %1135 : vector<8x1xf32> to vector<8x8xf32>
    %1137 = arith.subf %1131, %1136 : vector<8x8xf32>
    %1138 = math.exp %1137 : vector<8x8xf32>
    %cst_229 = arith.constant dense<0.000000e+00> : vector<8xf32>
    %1139 = vector.multi_reduction <add>, %1138, %cst_229 [1] : vector<8x8xf32> to vector<8xf32>
    %1140 = vector.shape_cast %1139 : vector<8xf32> to vector<8x1xf32>
    %1141 = vector.broadcast %1140 : vector<8x1xf32> to vector<8x8xf32>
    %1142 = arith.divf %1138, %1141 : vector<8x8xf32>
    %1143 = vector.extract_strided_slice %1108 {offsets = [0, 8], sizes = [8, 8], strides = [1, 1]} : vector<8x16xf32> to vector<8x8xf32>
    %cst_230 = arith.constant dense<0.000000e+00> : vector<8x8xf32>
    %1144 = tpu.matmul %1142, %1143, %cst_230 {dimension_numbers = #tpu.dot_dimension_numbers<[1], [0], [0], [1], [0, 0, 1, 1], [], []>} : vector<8x8xf32>, vector<8x8xf32>, vector<8x8xf32> -> vector<8x8xf32>
    %1145 = tpu.concatenate %1126, %1144 in 1 : vector<8x8xf32>, vector<8x8xf32> -> vector<8x16xf32>
    %1146 = tpu.concatenate %1105, %1145 in 0 : vector<8x16xf32>, vector<8x16xf32> -> vector<16x16xf32>
    %c0_231 = arith.constant 0 : index
    %c0_232 = arith.constant 0 : index
    %1147 = vector.load %arg28[%c0_231, %c0_232] : memref<16x16xf32, #tpu.memory_space<vmem>>, vector<16x16xf32>
    %cst_233 = arith.constant dense<0.000000e+00> : vector<16x16xf32>
    %1148 = tpu.matmul %1146, %1147, %cst_233 {dimension_numbers = #tpu.dot_dimension_numbers<[1], [0], [0], [1], [0, 0, 1, 1], [], []>} : vector<16x16xf32>, vector<16x16xf32>, vector<16x16xf32> -> vector<16x16xf32>
    %c0_234 = arith.constant 0 : index
    %c0_235 = arith.constant 0 : index
    %1149 = vector.load %arg29[%c0_234, %c0_235] : memref<1x16xf32, #tpu.memory_space<vmem>>, vector<1x16xf32>
    %1150 = vector.broadcast %1149 : vector<1x16xf32> to vector<16x16xf32>
    %1151 = arith.addf %1148, %1150 : vector<16x16xf32>
    %1152 = vector.extract_strided_slice %1151 {offsets = [7, 0], sizes = [1, 16], strides = [1, 1]} : vector<16x16xf32> to vector<1x16xf32>
    %1153 = vector.extract_strided_slice %1151 {offsets = [15, 0], sizes = [1, 16], strides = [1, 1]} : vector<16x16xf32> to vector<1x16xf32>
    %1154 = tpu.concatenate %1152, %1153 in 0 : vector<1x16xf32>, vector<1x16xf32> -> vector<2x16xf32>
    %c0_236 = arith.constant 0 : index
    %c0_237 = arith.constant 0 : index
    %1155 = vector.load %arg30[%c0_236, %c0_237] : memref<16x32xf32, #tpu.memory_space<vmem>>, vector<16x32xf32>
    %cst_238 = arith.constant dense<0.000000e+00> : vector<2x32xf32>
    %1156 = tpu.matmul %1154, %1155, %cst_238 {dimension_numbers = #tpu.dot_dimension_numbers<[1], [0], [0], [1], [0, 0, 1, 1], [], []>} : vector<2x16xf32>, vector<16x32xf32>, vector<2x32xf32> -> vector<2x32xf32>
    %c0_239 = arith.constant 0 : index
    %c0_240 = arith.constant 0 : index
    %1157 = vector.load %arg31[%c0_239, %c0_240] : memref<1x32xf32, #tpu.memory_space<vmem>>, vector<1x32xf32>
    %1158 = vector.broadcast %1157 : vector<1x32xf32> to vector<2x32xf32>
    %1159 = arith.addf %1156, %1158 : vector<2x32xf32>
    %c0_241 = arith.constant 0 : index
    %c0_242 = arith.constant 0 : index
    %1160 = vector.load %arg32[%c0_241, %c0_242] : memref<32x16xf32, #tpu.memory_space<vmem>>, vector<32x16xf32>
    %cst_243 = arith.constant dense<0.000000e+00> : vector<2x16xf32>
    %1161 = tpu.matmul %1159, %1160, %cst_243 {dimension_numbers = #tpu.dot_dimension_numbers<[1], [0], [0], [1], [0, 0, 1, 1], [], []>} : vector<2x32xf32>, vector<32x16xf32>, vector<2x16xf32> -> vector<2x16xf32>
    %c0_244 = arith.constant 0 : index
    %c0_245 = arith.constant 0 : index
    %1162 = vector.load %arg33[%c0_244, %c0_245] : memref<1x16xf32, #tpu.memory_space<vmem>>, vector<1x16xf32>
    %1163 = vector.broadcast %1162 : vector<1x16xf32> to vector<2x16xf32>
    %1164 = arith.addf %1161, %1163 : vector<2x16xf32>
    %cst_246 = arith.constant dense<0.000000e+00> : vector<2xf32>
    %1165 = vector.multi_reduction <add>, %1164, %cst_246 [1] : vector<2x16xf32> to vector<2xf32>
    %1166 = vector.shape_cast %1165 : vector<2xf32> to vector<2x1xf32>
    %cst_247 = arith.constant 1.600000e+01 : f32
    %1167 = vector.broadcast %cst_247 : f32 to vector<2x1xf32>
    %1168 = arith.divf %1166, %1167 : vector<2x1xf32>
    %1169 = vector.broadcast %1168 : vector<2x1xf32> to vector<2x16xf32>
    %1170 = arith.subf %1164, %1169 : vector<2x16xf32>
    %1171 = arith.mulf %1170, %1170 : vector<2x16xf32>
    %cst_248 = arith.constant dense<0.000000e+00> : vector<2xf32>
    %1172 = vector.multi_reduction <add>, %1171, %cst_248 [1] : vector<2x16xf32> to vector<2xf32>
    %1173 = vector.shape_cast %1172 : vector<2xf32> to vector<2x1xf32>
    %cst_249 = arith.constant 1.600000e+01 : f32
    %1174 = vector.broadcast %cst_249 : f32 to vector<2x1xf32>
    %1175 = arith.divf %1173, %1174 : vector<2x1xf32>
    %1176 = vector.broadcast %1168 : vector<2x1xf32> to vector<2x16xf32>
    %1177 = arith.subf %1164, %1176 : vector<2x16xf32>
    %cst_250 = arith.constant 9.99999997E-7 : f32
    %1178 = vector.broadcast %cst_250 : f32 to vector<2x1xf32>
    %1179 = arith.addf %1175, %1178 : vector<2x1xf32>
    %1180 = math.rsqrt %1179 : vector<2x1xf32>
    %1181 = vector.broadcast %1180 : vector<2x1xf32> to vector<2x16xf32>
    %1182 = arith.mulf %1177, %1181 : vector<2x16xf32>
    %c0_251 = arith.constant 0 : index
    %c0_252 = arith.constant 0 : index
    %1183 = vector.load %arg34[%c0_251, %c0_252] : memref<1x16xf32, #tpu.memory_space<vmem>>, vector<1x16xf32>
    %1184 = vector.broadcast %1183 : vector<1x16xf32> to vector<2x16xf32>
    %1185 = arith.mulf %1182, %1184 : vector<2x16xf32>
    %c0_253 = arith.constant 0 : index
    %c0_254 = arith.constant 0 : index
    %1186 = vector.load %arg35[%c0_253, %c0_254] : memref<1x16xf32, #tpu.memory_space<vmem>>, vector<1x16xf32>
    %1187 = vector.broadcast %1186 : vector<1x16xf32> to vector<2x16xf32>
    %1188 = arith.addf %1185, %1187 : vector<2x16xf32>
    %cst_255 = arith.constant 0.000000e+00 : f32
    %1189 = vector.broadcast %cst_255 : f32 to vector<2x16xf32>
    %1190 = arith.cmpf oge, %1188, %1189 : vector<2x16xf32>
    %cst_256 = arith.constant 0.00999999977 : f32
    %1191 = vector.broadcast %cst_256 : f32 to vector<2x16xf32>
    %1192 = arith.mulf %1191, %1188 : vector<2x16xf32>
    %1193 = arith.select %1190, %1188, %1192 : vector<2x16xi1>, vector<2x16xf32>
    %c0_257 = arith.constant 0 : index
    %c0_258 = arith.constant 0 : index
    %1194 = vector.load %arg36[%c0_257, %c0_258] : memref<16x4xf32, #tpu.memory_space<vmem>>, vector<16x4xf32>
    %cst_259 = arith.constant dense<0.000000e+00> : vector<2x4xf32>
    %1195 = tpu.matmul %1193, %1194, %cst_259 {dimension_numbers = #tpu.dot_dimension_numbers<[1], [0], [0], [1], [0, 0, 1, 1], [], []>} : vector<2x16xf32>, vector<16x4xf32>, vector<2x4xf32> -> vector<2x4xf32>
    %c0_260 = arith.constant 0 : index
    %c0_261 = arith.constant 0 : index
    %1196 = vector.load %arg37[%c0_260, %c0_261] : memref<1x4xf32, #tpu.memory_space<vmem>>, vector<1x4xf32>
    %1197 = vector.broadcast %1196 : vector<1x4xf32> to vector<2x4xf32>
    %1198 = arith.addf %1195, %1197 : vector<2x4xf32>
    %c0_262 = arith.constant 0 : index
    %c0_263 = arith.constant 0 : index
    %1199 = vector.load %arg38[%c0_262, %c0_263] : memref<2x4xf32, #tpu.memory_space<vmem>>, vector<2x4xf32>
    tpu.vector_store %arg38[%c0_262, %c0_263], %1198 {strides = array<i32>} : memref<2x4xf32, #tpu.memory_space<vmem>>, vector<2x4xf32>,
    return
  }
}

</mosaic_0001>

<llo_original>
// kernel: cfc_net_forward.1
$region0: #{cfc_net_forward.1}
  #allocation0 [shape = 'u32[]', space=smem, size = 0x4, offset = 0x4, fixed_abs, tag = 'smem constant byte address 0x4 - core index']
  #allocation1 [shape = 'u32[72,128]{1,0:T(1,128)}', space=vmem, size = 0x9000, scoped, tag = 'internal scratch']
  %s0 = inlined_call_operand.smem [shape: u32[43], index: -1, kind: input, shape index: {}]
  %s1 = sld [smem:[%s0]]
  %s2 = scalar_lea.smem %s0, 1
  %s3 = sld [smem:[%s2]]
  %s4 = scalar_lea.smem %s0, 2
  %s5 = sld [smem:[%s4]]
  %s6 = scalar_lea.smem %s0, 3
  %s7 = sld [smem:[%s6]]
  %s8 = scalar_lea.smem %s0, 4
  %s9 = sld [smem:[%s8]]
  %s10 = scalar_lea.smem %s0, 5
  %s11 = sld [smem:[%s10]]
  %s12 = scalar_lea.smem %s0, 6
  %s13 = sld [smem:[%s12]]
  %s14 = scalar_lea.smem %s0, 7
  %s15 = sld [smem:[%s14]]
  %s16 = scalar_lea.smem %s0, 8
  %s17 = sld [smem:[%s16]]
  %s18 = scalar_lea.smem %s0, 9
  %s19 = sld [smem:[%s18]]
  %s20 = scalar_lea.smem %s0, 10
  %s21 = sld [smem:[%s20]]
  %s22 = scalar_lea.smem %s0, 11
  %s23 = sld [smem:[%s22]]
  %s24 = scalar_lea.smem %s0, 12
  %s25 = sld [smem:[%s24]]
  %s26 = scalar_lea.smem %s0, 13
  %s27 = sld [smem:[%s26]]
  %s28 = scalar_lea.smem %s0, 14
  %s29 = sld [smem:[%s28]]
  %s30 = scalar_lea.smem %s0, 15
  %s31 = sld [smem:[%s30]]
  %s32 = scalar_lea.smem %s0, 16
  %s33 = sld [smem:[%s32]]
  %s34 = scalar_lea.smem %s0, 17
  %s35 = sld [smem:[%s34]]
  %s36 = scalar_lea.smem %s0, 18
  %s37 = sld [smem:[%s36]]
  %s38 = scalar_lea.smem %s0, 19
  %s39 = sld [smem:[%s38]]
  %s40 = scalar_lea.smem %s0, 20
  %s41 = sld [smem:[%s40]]
  %s42 = scalar_lea.smem %s0, 21
  %s43 = sld [smem:[%s42]]
  %s44 = scalar_lea.smem %s0, 22
  %s45 = sld [smem:[%s44]]
  %s46 = scalar_lea.smem %s0, 23
  %s47 = sld [smem:[%s46]]
  %s48 = scalar_lea.smem %s0, 24
  %s49 = sld [smem:[%s48]]
  %s50 = scalar_lea.smem %s0, 25
  %s51 = sld [smem:[%s50]]
  %s52 = scalar_lea.smem %s0, 26
  %s53 = sld [smem:[%s52]]
  %s54 = scalar_lea.smem %s0, 27
  %s55 = sld [smem:[%s54]]
  %s56 = scalar_lea.smem %s0, 28
  %s57 = sld [smem:[%s56]]
  %s58 = scalar_lea.smem %s0, 29
  %s59 = sld [smem:[%s58]]
  %s60 = scalar_lea.smem %s0, 30
  %s61 = sld [smem:[%s60]]
  %s62 = scalar_lea.smem %s0, 31
  %s63 = sld [smem:[%s62]]
  %s64 = scalar_lea.smem %s0, 32
  %s65 = sld [smem:[%s64]]
  %s66 = scalar_lea.smem %s0, 33
  %s67 = sld [smem:[%s66]]
  %s68 = scalar_lea.smem %s0, 34
  %s69 = sld [smem:[%s68]]
  %s70 = scalar_lea.smem %s0, 35
  %s71 = sld [smem:[%s70]]
  %s72 = scalar_lea.smem %s0, 36
  %s73 = sld [smem:[%s72]]
  %s74 = scalar_lea.smem %s0, 37
  %s75 = sld [smem:[%s74]]
  %s76 = scalar_lea.smem %s0, 38
  %s77 = sld [smem:[%s76]]
  %s78 = scalar_lea.smem %s0, 39
  %s79 = sld [smem:[%s78]]
  %s80 = scalar_lea.smem %s0, 40
  %s81 = sld [smem:[%s80]]
  %s82 = scalar_lea.smem %s0, 41
  %s83 = sld [smem:[%s82]]
  %s84 = scalar_lea.smem %s0, 42
  %s85 = sld [smem:[%s84]]
  %86 = xla_tuple %s77, %s79, %s81, %s83, %s85
  %s87 = sld [smem:[#allocation0]]
  $region226: #{cfc_net_forward.1} parent=0
    _
  %s89 = ssub.s32 1, %s87
  %s90 = scalar_select 0, %s89, %s87
  $region1: #{cfc_net_forward.1} parent=0
    #allocation2 [shape = 'u8[8192]{0}', space=vmem, size = 0x2000, scoped, tag = 'input window, operand 10, single buffered']
    #allocation3 [shape = 's32[1]{0}', space=sflag, size = 0x4, scoped, tag = 'scoped memory for cfc_net_forward.1']
    #allocation4 [shape = 's32[1]{0}', space=sflag, size = 0x4, scoped, tag = 'scoped memory for cfc_net_forward.1']
    #allocation5 [shape = 'u8[8192]{0}', space=vmem, size = 0x2000, scoped, tag = 'input window, operand 12, single buffered']
    #allocation6 [shape = 's32[1]{0}', space=sflag, size = 0x4, scoped, tag = 'scoped memory for cfc_net_forward.1']
    #allocation7 [shape = 'u8[8192]{0}', space=vmem, size = 0x2000, scoped, tag = 'input window, operand 14, single buffered']
    #allocation8 [shape = 'u8[16384]{0}', space=vmem, size = 0x4000, scoped, tag = 'input window, operand 21, single buffered']
    #allocation9 [shape = 's32[1]{0}', space=sflag, size = 0x4, scoped, tag = 'scoped memory for cfc_net_forward.1']
    #allocation10 [shape = 'u8[8192]{0}', space=vmem, size = 0x2000, scoped, tag = 'input window, operand 22, single buffered']
    #allocation11 [shape = 'u8[8192]{0}', space=vmem, size = 0x2000, scoped, tag = 'input window, operand 24, single buffered']
    #allocation12 [shape = 's32[1]{0}', space=sflag, size = 0x4, scoped, tag = 'scoped memory for cfc_net_forward.1']
    #allocation13 [shape = 'u8[8192]{0}', space=vmem, size = 0x2000, scoped, tag = 'input window, operand 28, single buffered']
    #allocation14 [shape = 'u8[8192]{0}', space=vmem, size = 0x2000, scoped, tag = 'input window, operand 30, single buffered']
    #allocation15 [shape = 's32[1]{0}', space=sflag, size = 0x4, scoped, tag = 'scoped memory for cfc_net_forward.1']
    #allocation16 [shape = 'u8[1024]{0}', space=vmem, size = 0x400, scoped, tag = 'output window, operand 0, single buffered']
    %91 = vsyncpa [#allocation3], 0
    %92 = vsyncpa [#allocation6], 0
    %93 = vsyncpa [#allocation9], 0
    %94 = vsyncpa [#allocation12], 0
    %95 = vsyncpa [#allocation15], 0
    %96 = vsyncpa [#allocation4], 0
    // Predicated region
    $region2: #{cfc_net_forward.1} parent=1 // pred_check
      _
    $region3: #{cfc_net_forward.1} parent=1 // pred_check_branch
      %98 = sbr.rel (0) target = $region5
    $region4: #{cfc_net_forward.1} parent=1 // pred_region
      _
    $region5: #{cfc_net_forward.1} parent=1 // pred_fallthru
      _
    // Predicated region
    $region6: #{cfc_net_forward.1} parent=1 // pred_check
      _
    $region7: #{cfc_net_forward.1} parent=1 // pred_check_branch
      %100 = sbr.rel (0) target = $region9
    $region8: #{cfc_net_forward.1} parent=1 // pred_region
      _
    $region9: #{cfc_net_forward.1} parent=1 // pred_fallthru
      _
    // Predicated region
    $region10: #{cfc_net_forward.1} parent=1 // pred_check
      _
    $region11: #{cfc_net_forward.1} parent=1 // pred_check_branch
      %102 = sbr.rel (0) target = $region13
    $region12: #{cfc_net_forward.1} parent=1 // pred_region
      _
    $region13: #{cfc_net_forward.1} parent=1 // pred_fallthru
      _
    // Predicated region
    $region14: #{cfc_net_forward.1} parent=1 // pred_check
      _
    $region15: #{cfc_net_forward.1} parent=1 // pred_check_branch
      %104 = sbr.rel (0) target = $region17
    $region16: #{cfc_net_forward.1} parent=1 // pred_region
      _
    $region17: #{cfc_net_forward.1} parent=1 // pred_fallthru
      _
    // Predicated region
    $region18: #{cfc_net_forward.1} parent=1 // pred_check
      _
    $region19: #{cfc_net_forward.1} parent=1 // pred_check_branch
      %106 = sbr.rel (0) target = $region21
    $region20: #{cfc_net_forward.1} parent=1 // pred_region
      _
    $region21: #{cfc_net_forward.1} parent=1 // pred_fallthru
      _
    // Predicated region
    $region22: #{cfc_net_forward.1} parent=1 // pred_check
      _
    $region23: #{cfc_net_forward.1} parent=1 // pred_check_branch
      %108 = sbr.rel (0) target = $region25
    $region24: #{cfc_net_forward.1} parent=1 // pred_region
      _
    $region25: #{cfc_net_forward.1} parent=1 // pred_fallthru
      _
    // Predicated region
    $region26: #{cfc_net_forward.1} parent=1 // pred_check
      _
    $region27: #{cfc_net_forward.1} parent=1 // pred_check_branch
      %110 = sbr.rel (0) target = $region29
    $region28: #{cfc_net_forward.1} parent=1 // pred_region
      _
    $region29: #{cfc_net_forward.1} parent=1 // pred_fallthru
      _
    // Predicated region
    $region30: #{cfc_net_forward.1} parent=1 // pred_check
      _
    $region31: #{cfc_net_forward.1} parent=1 // pred_check_branch
      %112 = sbr.rel (0) target = $region33
    $region32: #{cfc_net_forward.1} parent=1 // pred_region
      _
    $region33: #{cfc_net_forward.1} parent=1 // pred_fallthru
      _
    // Predicated region
    $region34: #{cfc_net_forward.1} parent=1 // pred_check
      _
    $region35: #{cfc_net_forward.1} parent=1 // pred_check_branch
      %114 = sbr.rel (0) target = $region37
    $region36: #{cfc_net_forward.1} parent=1 // pred_region
      _
    $region37: #{cfc_net_forward.1} parent=1 // pred_fallthru
      _
    // Predicated region
    $region38: #{cfc_net_forward.1} parent=1 // pred_check
      _
    $region39: #{cfc_net_forward.1} parent=1 // pred_check_branch
      %116 = sbr.rel (0) target = $region41
    $region40: #{cfc_net_forward.1} parent=1 // pred_region
      _
    $region41: #{cfc_net_forward.1} parent=1 // pred_fallthru
      _
    // Predicated region
    $region42: #{cfc_net_forward.1} parent=1 // pred_check
      _
    $region43: #{cfc_net_forward.1} parent=1 // pred_check_branch
      %118 = sbr.rel (0) target = $region45
    $region44: #{cfc_net_forward.1} parent=1 // pred_region
      %120 = vsyncadd [#allocation3], 0
      %s121 = sshll.u32 %s21, 4
      %s122 = int_to_ptr.hbm [resolvable:$true] %s121
      %s123 = sshll.u32 [#allocation2], 4
      %s124 = int_to_ptr.vmem [resolvable:$true] %s123
      %129 = dma.hbm_to_vmem [thread:$0]  %s122, 256, %s124, [#allocation3], 128, 128, 8
    $region45: #{cfc_net_forward.1} parent=1 // pred_fallthru
      _
    // Predicated region
    $region46: #{cfc_net_forward.1} parent=1 // pred_check
      _
    $region47: #{cfc_net_forward.1} parent=1 // pred_check_branch
      %131 = sbr.rel (0) target = $region49
    $region48: #{cfc_net_forward.1} parent=1 // pred_region
      _
    $region49: #{cfc_net_forward.1} parent=1 // pred_fallthru
      _
    // Predicated region
    $region50: #{cfc_net_forward.1} parent=1 // pred_check
      _
    $region51: #{cfc_net_forward.1} parent=1 // pred_check_branch
      %133 = sbr.rel (0) target = $region53
    $region52: #{cfc_net_forward.1} parent=1 // pred_region
      %135 = vsyncadd [#allocation6], 0
      %s136 = sshll.u32 %s25, 4
      %s137 = int_to_ptr.hbm [resolvable:$true] %s136
      %s138 = sshll.u32 [#allocation5], 4
      %s139 = int_to_ptr.vmem [resolvable:$true] %s138
      %144 = dma.hbm_to_vmem [thread:$0]  %s137, 256, %s139, [#allocation6], 128, 128, 8
    $region53: #{cfc_net_forward.1} parent=1 // pred_fallthru
      _
    // Predicated region
    $region54: #{cfc_net_forward.1} parent=1 // pred_check
      _
    $region55: #{cfc_net_forward.1} parent=1 // pred_check_branch
      %146 = sbr.rel (0) target = $region57
    $region56: #{cfc_net_forward.1} parent=1 // pred_region
      _
    $region57: #{cfc_net_forward.1} parent=1 // pred_fallthru
      _
    // Predicated region
    $region58: #{cfc_net_forward.1} parent=1 // pred_check
      _
    $region59: #{cfc_net_forward.1} parent=1 // pred_check_branch
      %148 = sbr.rel (0) target = $region61
    $region60: #{cfc_net_forward.1} parent=1 // pred_region
      %150 = vsyncadd [#allocation6], 0
      %s151 = sshll.u32 %s29, 4
      %s152 = int_to_ptr.hbm [resolvable:$true] %s151
      %s153 = sshll.u32 [#allocation7], 4
      %s154 = int_to_ptr.vmem [resolvable:$true] %s153
      %159 = dma.hbm_to_vmem [thread:$0]  %s152, 256, %s154, [#allocation6], 128, 128, 8
    $region61: #{cfc_net_forward.1} parent=1 // pred_fallthru
      _
    // Predicated region
    $region62: #{cfc_net_forward.1} parent=1 // pred_check
      _
    $region63: #{cfc_net_forward.1} parent=1 // pred_check_branch
      %161 = sbr.rel (0) target = $region65
    $region64: #{cfc_net_forward.1} parent=1 // pred_region
      _
    $region65: #{cfc_net_forward.1} parent=1 // pred_fallthru
      _
    // Predicated region
    $region66: #{cfc_net_forward.1} parent=1 // pred_check
      _
    $region67: #{cfc_net_forward.1} parent=1 // pred_check_branch
      %163 = sbr.rel (0) target = $region69
    $region68: #{cfc_net_forward.1} parent=1 // pred_region
      _
    $region69: #{cfc_net_forward.1} parent=1 // pred_fallthru
      _
    // Predicated region
    $region70: #{cfc_net_forward.1} parent=1 // pred_check
      _
    $region71: #{cfc_net_forward.1} parent=1 // pred_check_branch
      %165 = sbr.rel (0) target = $region73
    $region72: #{cfc_net_forward.1} parent=1 // pred_region
      _
    $region73: #{cfc_net_forward.1} parent=1 // pred_fallthru
      _
    // Predicated region
    $region74: #{cfc_net_forward.1} parent=1 // pred_check
      _
    $region75: #{cfc_net_forward.1} parent=1 // pred_check_branch
      %167 = sbr.rel (0) target = $region77
    $region76: #{cfc_net_forward.1} parent=1 // pred_region
      _
    $region77: #{cfc_net_forward.1} parent=1 // pred_fallthru
      _
    // Predicated region
    $region78: #{cfc_net_forward.1} parent=1 // pred_check
      _
    $region79: #{cfc_net_forward.1} parent=1 // pred_check_branch
      %169 = sbr.rel (0) target = $region81
    $region80: #{cfc_net_forward.1} parent=1 // pred_region
      _
    $region81: #{cfc_net_forward.1} parent=1 // pred_fallthru
      _
    // Predicated region
    $region82: #{cfc_net_forward.1} parent=1 // pred_check
      _
    $region83: #{cfc_net_forward.1} parent=1 // pred_check_branch
      %171 = sbr.rel (0) target = $region85
    $region84: #{cfc_net_forward.1} parent=1 // pred_region
      _
    $region85: #{cfc_net_forward.1} parent=1 // pred_fallthru
      _
    // Predicated region
    $region86: #{cfc_net_forward.1} parent=1 // pred_check
      _
    $region87: #{cfc_net_forward.1} parent=1 // pred_check_branch
      %173 = sbr.rel (0) target = $region89
    $region88: #{cfc_net_forward.1} parent=1 // pred_region
      %175 = vsyncadd [#allocation9], 0
      %s176 = sshll.u32 %s43, 4
      %s177 = int_to_ptr.hbm [resolvable:$true] %s176
      %s178 = sshll.u32 [#allocation8], 4
      %s179 = int_to_ptr.vmem [resolvable:$true] %s178
      %184 = dma.hbm_to_vmem [thread:$0]  %s177, 512, %s179, [#allocation9], 128, 128, 8
    $region89: #{cfc_net_forward.1} parent=1 // pred_fallthru
      _
    // Predicated region
    $region90: #{cfc_net_forward.1} parent=1 // pred_check
      _
    $region91: #{cfc_net_forward.1} parent=1 // pred_check_branch
      %186 = sbr.rel (0) target = $region93
    $region92: #{cfc_net_forward.1} parent=1 // pred_region
      %188 = vsyncadd [#allocation9], 0
      %s189 = sshll.u32 %s45, 4
      %s190 = int_to_ptr.hbm [resolvable:$true] %s189
      %s191 = sshll.u32 [#allocation10], 4
      %s192 = int_to_ptr.vmem [resolvable:$true] %s191
      %197 = dma.hbm_to_vmem [thread:$0]  %s190, 256, %s192, [#allocation9], 128, 128, 8
    $region93: #{cfc_net_forward.1} parent=1 // pred_fallthru
      _
    // Predicated region
    $region94: #{cfc_net_forward.1} parent=1 // pred_check
      _
    $region95: #{cfc_net_forward.1} parent=1 // pred_check_branch
      %199 = sbr.rel (0) target = $region97
    $region96: #{cfc_net_forward.1} parent=1 // pred_region
      _
    $region97: #{cfc_net_forward.1} parent=1 // pred_fallthru
      _
    // Predicated region
    $region98: #{cfc_net_forward.1} parent=1 // pred_check
      _
    $region99: #{cfc_net_forward.1} parent=1 // pred_check_branch
      %201 = sbr.rel (0) target = $region101
    $region100: #{cfc_net_forward.1} parent=1 // pred_region
      %203 = vsyncadd [#allocation12], 0
      %s204 = sshll.u32 %s49, 4
      %s205 = int_to_ptr.hbm [resolvable:$true] %s204
      %s206 = sshll.u32 [#allocation11], 4
      %s207 = int_to_ptr.vmem [resolvable:$true] %s206
      %212 = dma.hbm_to_vmem [thread:$0]  %s205, 256, %s207, [#allocation12], 128, 128, 8
    $region101: #{cfc_net_forward.1} parent=1 // pred_fallthru
      _
    // Predicated region
    $region102: #{cfc_net_forward.1} parent=1 // pred_check
      _
    $region103: #{cfc_net_forward.1} parent=1 // pred_check_branch
      %214 = sbr.rel (0) target = $region105
    $region104: #{cfc_net_forward.1} parent=1 // pred_region
      _
    $region105: #{cfc_net_forward.1} parent=1 // pred_fallthru
      _
    // Predicated region
    $region106: #{cfc_net_forward.1} parent=1 // pred_check
      _
    $region107: #{cfc_net_forward.1} parent=1 // pred_check_branch
      %216 = sbr.rel (0) target = $region109
    $region108: #{cfc_net_forward.1} parent=1 // pred_region
      _
    $region109: #{cfc_net_forward.1} parent=1 // pred_fallthru
      _
    // Predicated region
    $region110: #{cfc_net_forward.1} parent=1 // pred_check
      _
    $region111: #{cfc_net_forward.1} parent=1 // pred_check_branch
      %218 = sbr.rel (0) target = $region113
    $region112: #{cfc_net_forward.1} parent=1 // pred_region
      _
    $region113: #{cfc_net_forward.1} parent=1 // pred_fallthru
      _
    // Predicated region
    $region114: #{cfc_net_forward.1} parent=1 // pred_check
      _
    $region115: #{cfc_net_forward.1} parent=1 // pred_check_branch
      %220 = sbr.rel (0) target = $region117
    $region116: #{cfc_net_forward.1} parent=1 // pred_region
      %222 = vsyncadd [#allocation12], 0
      %s223 = sshll.u32 %s57, 4
      %s224 = int_to_ptr.hbm [resolvable:$true] %s223
      %s225 = sshll.u32 [#allocation13], 4
      %s226 = int_to_ptr.vmem [resolvable:$true] %s225
      %231 = dma.hbm_to_vmem [thread:$0]  %s224, 256, %s226, [#allocation12], 128, 128, 8
    $region117: #{cfc_net_forward.1} parent=1 // pred_fallthru
      _
    // Predicated region
    $region118: #{cfc_net_forward.1} parent=1 // pred_check
      _
    $region119: #{cfc_net_forward.1} parent=1 // pred_check_branch
      %233 = sbr.rel (0) target = $region121
    $region120: #{cfc_net_forward.1} parent=1 // pred_region
      _
    $region121: #{cfc_net_forward.1} parent=1 // pred_fallthru
      _
    // Predicated region
    $region122: #{cfc_net_forward.1} parent=1 // pred_check
      _
    $region123: #{cfc_net_forward.1} parent=1 // pred_check_branch
      %235 = sbr.rel (0) target = $region125
    $region124: #{cfc_net_forward.1} parent=1 // pred_region
      %237 = vsyncadd [#allocation15], 0
      %s238 = sshll.u32 %s61, 4
      %s239 = int_to_ptr.hbm [resolvable:$true] %s238
      %s240 = sshll.u32 [#allocation14], 4
      %s241 = int_to_ptr.vmem [resolvable:$true] %s240
      %246 = dma.hbm_to_vmem [thread:$0]  %s239, 256, %s241, [#allocation15], 128, 128, 8
    $region125: #{cfc_net_forward.1} parent=1 // pred_fallthru
      _
    // Predicated region
    $region126: #{cfc_net_forward.1} parent=1 // pred_check
      _
    $region127: #{cfc_net_forward.1} parent=1 // pred_check_branch
      %248 = sbr.rel (0) target = $region129
    $region128: #{cfc_net_forward.1} parent=1 // pred_region
      _
    $region129: #{cfc_net_forward.1} parent=1 // pred_fallthru
      _
    // Predicated region
    $region130: #{cfc_net_forward.1} parent=1 // pred_check
      _
    $region131: #{cfc_net_forward.1} parent=1 // pred_check_branch
      %250 = sbr.rel (0) target = $region133
    $region132: #{cfc_net_forward.1} parent=1 // pred_region
      _
    $region133: #{cfc_net_forward.1} parent=1 // pred_fallthru
      _
    // Predicated region
    $region134: #{cfc_net_forward.1} parent=1 // pred_check
      _
    $region135: #{cfc_net_forward.1} parent=1 // pred_check_branch
      %252 = sbr.rel (0) target = $region137
    $region136: #{cfc_net_forward.1} parent=1 // pred_region
      _
    $region137: #{cfc_net_forward.1} parent=1 // pred_fallthru
      _
    // Predicated region
    $region138: #{cfc_net_forward.1} parent=1 // pred_check
      _
    $region139: #{cfc_net_forward.1} parent=1 // pred_check_branch
      %254 = sbr.rel (0) target = $region141
    $region140: #{cfc_net_forward.1} parent=1 // pred_region
      _
    $region141: #{cfc_net_forward.1} parent=1 // pred_fallthru
      _
    // Predicated region
    $region142: #{cfc_net_forward.1} parent=1 // pred_check
      _
    $region143: #{cfc_net_forward.1} parent=1 // pred_check_branch
      %256 = sbr.rel (0) target = $region145
    $region144: #{cfc_net_forward.1} parent=1 // pred_region
      _
    $region145: #{cfc_net_forward.1} parent=1 // pred_fallthru
      _
    // Predicated region
    $region146: #{cfc_net_forward.1} parent=1 // pred_check
      _
    $region147: #{cfc_net_forward.1} parent=1 // pred_check_branch
      %258 = sbr.rel (0) target = $region149
    $region148: #{cfc_net_forward.1} parent=1 // pred_region
      _
    $region149: #{cfc_net_forward.1} parent=1 // pred_fallthru
      _
    // Predicated region
    $region150: #{cfc_net_forward.1} parent=1 // pred_check
      _
    $region151: #{cfc_net_forward.1} parent=1 // pred_check_branch
      %260 = sbr.rel (0) target = $region153
    $region152: #{cfc_net_forward.1} parent=1 // pred_region
      _
    $region153: #{cfc_net_forward.1} parent=1 // pred_fallthru
      _
    // Predicated region
    $region154: #{cfc_net_forward.1} parent=1 // pred_check
      _
    $region155: #{cfc_net_forward.1} parent=1 // pred_check_branch
      %262 = sbr.rel (0) target = $region157
    $region156: #{cfc_net_forward.1} parent=1 // pred_region
      %264 = dma.done [#allocation3], 256
    $region157: #{cfc_net_forward.1} parent=1 // pred_fallthru
      _
    // Predicated region
    $region158: #{cfc_net_forward.1} parent=1 // pred_check
      _
    $region159: #{cfc_net_forward.1} parent=1 // pred_check_branch
      %266 = sbr.rel (0) target = $region161
    $region160: #{cfc_net_forward.1} parent=1 // pred_region
      %268 = dma.done [#allocation6], 256
    $region161: #{cfc_net_forward.1} parent=1 // pred_fallthru
      _
    // Predicated region
    $region162: #{cfc_net_forward.1} parent=1 // pred_check
      _
    $region163: #{cfc_net_forward.1} parent=1 // pred_check_branch
      %270 = sbr.rel (0) target = $region165
    $region164: #{cfc_net_forward.1} parent=1 // pred_region
      %272 = dma.done [#allocation6], 256
    $region165: #{cfc_net_forward.1} parent=1 // pred_fallthru
      _
    // Predicated region
    $region166: #{cfc_net_forward.1} parent=1 // pred_check
      _
    $region167: #{cfc_net_forward.1} parent=1 // pred_check_branch
      %274 = sbr.rel (0) target = $region169
    $region168: #{cfc_net_forward.1} parent=1 // pred_region
      %276 = dma.done [#allocation9], 512
    $region169: #{cfc_net_forward.1} parent=1 // pred_fallthru
      _
    // Predicated region
    $region170: #{cfc_net_forward.1} parent=1 // pred_check
      _
    $region171: #{cfc_net_forward.1} parent=1 // pred_check_branch
      %278 = sbr.rel (0) target = $region173
    $region172: #{cfc_net_forward.1} parent=1 // pred_region
      %280 = dma.done [#allocation9], 256
    $region173: #{cfc_net_forward.1} parent=1 // pred_fallthru
      _
    // Predicated region
    $region174: #{cfc_net_forward.1} parent=1 // pred_check
      _
    $region175: #{cfc_net_forward.1} parent=1 // pred_check_branch
      %282 = sbr.rel (0) target = $region177
    $region176: #{cfc_net_forward.1} parent=1 // pred_region
      %284 = dma.done [#allocation12], 256
    $region177: #{cfc_net_forward.1} parent=1 // pred_fallthru
      _
    // Predicated region
    $region178: #{cfc_net_forward.1} parent=1 // pred_check
      _
    $region179: #{cfc_net_forward.1} parent=1 // pred_check_branch
      %286 = sbr.rel (0) target = $region181
    $region180: #{cfc_net_forward.1} parent=1 // pred_region
      %288 = dma.done [#allocation12], 256
    $region181: #{cfc_net_forward.1} parent=1 // pred_fallthru
      _
    // Predicated region
    $region182: #{cfc_net_forward.1} parent=1 // pred_check
      _
    $region183: #{cfc_net_forward.1} parent=1 // pred_check_branch
      %290 = sbr.rel (0) target = $region185
    $region184: #{cfc_net_forward.1} parent=1 // pred_region
      %292 = dma.done [#allocation15], 256
    $region185: #{cfc_net_forward.1} parent=1 // pred_fallthru
      _
    %v293 = vld [vmem:[%s3] sm:$0xff]
    %v294 = vld [vmem:[%s3 + $0x8] sm:$0xff]
    %v296 = vrot.slane %v294, 7
    %vm298 = vcmask 1040384
    %v299 = vsel %vm298, %v293, %v296
    %v301 = vrot.slane %v293, 1
    %v303 = vsel %vm298, %v301, %v294
    %v304 = vrot.slane %v293, 2
    %v306 = vrot.slane %v294, 1
    %v308 = vsel %vm298, %v304, %v306
    %v309 = vrot.slane %v293, 3
    %v311 = vrot.slane %v294, 2
    %v313 = vsel %vm298, %v309, %v311
    %v314 = vrot.slane %v293, 4
    %v316 = vrot.slane %v294, 3
    %v318 = vsel %vm298, %v314, %v316
    %v319 = vrot.slane %v293, 5
    %v321 = vrot.slane %v294, 4
    %v323 = vsel %vm298, %v319, %v321
    %v324 = vrot.slane %v293, 6
    %v326 = vrot.slane %v294, 5
    %v328 = vsel %vm298, %v324, %v326
    %v329 = vrot.slane %v293, 7
    %v331 = vrot.slane %v294, 6
    %v333 = vsel %vm298, %v329, %v331
    %v334 = vld [vmem:[%s1] sm:$0xff]
    %v335 = vld [vmem:[%s1 + $0x8] sm:$0xff]
    %v336 = vld [vmem:[%s9] sm:$0xff]
    %v337 = vld [vmem:[%s9 + $0x8] sm:$0xff]
    %v338 = vld [vmem:[%s11] sm:$0x3]
    %v340 = vperm.slane %v338, 0
    %v341 = vperm.slane %v338, 1
    %vm344 = vcmask 64512
    %v346 = vsel %vm344, %v334, 0
    %v349 = vsel %vm344, %v335, 0
    %351 = vmatpush.msra.mxu0 0.0
    %352 = vmatpush.msra.mxu0 0.0
    %353 = vmatpush.msra.mxu0 0.0
    %354 = vmatpush.msra.mxu0 0.0
    %355 = vmatpush.msra.mxu0 0.0
    %356 = vmatpush.msra.mxu0 0.0
    %357 = vmatpush.msra.mxu0 0.0
    %358 = vmatpush.msra.mxu0 0.0
    %359 = vmatpush.msra.mxu0 0.0
    %360 = vmatpush.msra.mxu0 0.0
    %361 = vmatpush.msra.mxu0 0.0
    %362 = vmatpush.msra.mxu0 0.0
    %363 = vmatpush.msra.mxu0 0.0
    %364 = vmatpush.msra.mxu0 0.0
    %365 = vmatpush.msra.mxu0 0.0
    %366 = vmatpush.msra.mxu0 %v336
    %367 = vmatmul.f32.gmra.mxu0 %v346
    %v368 = vpop.f32.mrf.mxu0
    %v369 = vadd.f32 %v340, %v368
    %370 = vmatmul.f32.gmra.mxu0 %v349
    %v371 = vpop.f32.mrf.mxu0
    %v372 = vadd.f32 %v340, %v371
    %373 = vdwg.mxu0
    %374 = vmatpush.msra.mxu0 0.0
    %375 = vmatpush.msra.mxu0 0.0
    %376 = vmatpush.msra.mxu0 0.0
    %377 = vmatpush.msra.mxu0 0.0
    %378 = vmatpush.msra.mxu0 0.0
    %379 = vmatpush.msra.mxu0 0.0
    %380 = vmatpush.msra.mxu0 0.0
    %381 = vmatpush.msra.mxu0 0.0
    %382 = vmatpush.msra.mxu0 0.0
    %383 = vmatpush.msra.mxu0 0.0
    %384 = vmatpush.msra.mxu0 0.0
    %385 = vmatpush.msra.mxu0 0.0
    %386 = vmatpush.msra.mxu0 0.0
    %387 = vmatpush.msra.mxu0 0.0
    %388 = vmatpush.msra.mxu0 0.0
    %389 = vmatpush.msra.mxu0 %v337
    %390 = vmatmul.f32.gmra.mxu0 %v346
    %v391 = vpop.f32.mrf.mxu0
    %v392 = vadd.f32 %v341, %v391
    %393 = vmatmul.f32.gmra.mxu0 %v349
    %v394 = vpop.f32.mrf.mxu0
    %v395 = vadd.f32 %v341, %v394
    %396 = vdwg.mxu0
    %v397 = vld [vmem:[%s13] sm:$0xff]
    %v398 = vld [vmem:[%s13 + $0x8] sm:$0xff]
    %v399 = vld [vmem:[%s13 + $0x10] sm:$0xff]
    %v400 = vld [vmem:[%s13 + $0x18] sm:$0xff]
    %v401 = vld [vmem:[%s15] sm:$0xff]
    %v402 = vld [vmem:[%s15 + $0x8] sm:$0xff]
    %v403 = vld [vmem:[%s15 + $0x10] sm:$0xff]
    %v404 = vld [vmem:[%s15 + $0x18] sm:$0xff]
    %v405 = vld [vmem:[%s5] sm:$0x3]
    %v406 = vld [vmem:[%s7] sm:$0x3]
    %v409 = vrot.slane %v372, 7
    %v410 = vrot.slane %v395, 7
    %v413 = vsel %vm298, %v369, %v409
    %v414 = vsel %vm298, %v392, %v410
    %vm415 = vcmask 261120
    %v417 = vsel %vm415, %v405, 0
    %419 = vmatpush.msra.mxu0 0.0
    %420 = vmatpush.msra.mxu0 0.0
    %421 = vmatpush.msra.mxu0 0.0
    %422 = vmatpush.msra.mxu0 0.0
    %423 = vmatpush.msra.mxu0 0.0
    %424 = vmatpush.msra.mxu0 0.0
    %425 = vmatpush.msra.mxu0 0.0
    %426 = vmatpush.msra.mxu0 0.0
    %427 = vmatpush.msra.mxu0 0.0
    %428 = vmatpush.msra.mxu0 0.0
    %429 = vmatpush.msra.mxu0 0.0
    %430 = vmatpush.msra.mxu0 0.0
    %431 = vmatpush.msra.mxu0 %v400
    %432 = vmatpush.msra.mxu0 %v399
    %433 = vmatpush.msra.mxu0 %v398
    %434 = vmatpush.msra.mxu0 %v397
    %435 = vmatmul.f32.gmra.mxu0 %v417
    %v436 = vpop.f32.mrf.mxu0
    %v437 = vadd.f32 0.0, %v436
    %438 = vdwg.mxu0
    %v439 = vadd.f32 %v413, %v437
    %v440 = vxor.u32 %v439, 2147483648
    %v441 = vmul.f32 %v440, 1.442695
    %v442 = vpow.pop %v441
    %v443 = vadd.f32 %v442, 1.0
    %v444 = vrcp.pop %v443
    %v445 = vmul.f32 %v443, %v444
    %v446 = vsub.f32 1.0, %v445
    %v447 = vmul.f32 %v444, %v446
    %v448 = vadd.f32 %v444, %v447
    %vm449 = vweird.f32 %v443
    %vm450 = vweird.f32 %v444
    %vm451 = vmor %vm449, %vm450
    %v452 = vsel %vm451, %v444, %v448
    %v453 = vand.u32 2147483647, %v443
    %vm454 = vcmp.eq.f32.partialorder %v453, 8.507059e+37
    %v455 = vand.u32 %v443, 2147483648
    %v456 = vor.u32 1.1754944e-38, %v455
    %v457 = vsel %vm454, %v456, %v452
    %v458 = vmul.f32 1.0, %v457
    %v459 = vtanh.pop %v439
    %461 = vrot.lane.b32.xlu0 %v406, 32
    %v462 = vpop.permute.xlu0 %461
    %v464 = vmul.f32 %v458, %v462
    %466 = vrot.lane.b32.xlu0 %v459, 64
    %v467 = vpop.permute.xlu0 %466
    %v469 = vmul.f32 %v458, %v467
    %471 = vrot.lane.b32.xlu0 %v469, 32
    %v472 = vpop.permute.xlu0 %471
    %v474 = vadd.f32 %v464, %v472
    %v475 = vtanh.pop %v474
    %477 = vrot.lane.b32.xlu0 %v475, 64
    %v478 = vpop.permute.xlu0 %477
    %v480 = vmul.f32 %v458, %v478
    %482 = vrot.lane.b32.xlu0 %v480, 32
    %v483 = vpop.permute.xlu0 %482
    %v484 = vsel %vm415, %v483, 0
    %486 = vmatpush.msra.mxu0 0.0
    %487 = vmatpush.msra.mxu0 0.0
    %488 = vmatpush.msra.mxu0 0.0
    %489 = vmatpush.msra.mxu0 0.0
    %490 = vmatpush.msra.mxu0 0.0
    %491 = vmatpush.msra.mxu0 0.0
    %492 = vmatpush.msra.mxu0 0.0
    %493 = vmatpush.msra.mxu0 0.0
    %494 = vmatpush.msra.mxu0 0.0
    %495 = vmatpush.msra.mxu0 0.0
    %496 = vmatpush.msra.mxu0 0.0
    %497 = vmatpush.msra.mxu0 0.0
    %498 = vmatpush.msra.mxu0 %v404
    %499 = vmatpush.msra.mxu0 %v403
    %500 = vmatpush.msra.mxu0 %v402
    %501 = vmatpush.msra.mxu0 %v401
    %502 = vmatmul.f32.gmra.mxu0 %v484
    %v503 = vpop.f32.mrf.mxu0
    %v504 = vadd.f32 0.0, %v503
    %505 = vdwg.mxu0
    %v506 = vadd.f32 %v414, %v504
    %v507 = vtanh.pop %v506
    %509 = vset.pattern.permute.xlu0 0
    %510 = vperm.xlu0 %509, %v299
    %v511 = vpop.permute.xlu0 %510
    %v513 = vmul.f32 %v506, %v511
    %515 = vrot.lane.b32.xlu0 %v506, 96
    %v516 = vpop.permute.xlu0 %515
    %v518 = vadd.f32 %v513, %v516
    %v519 = vxor.u32 %v518, 2147483648
    %v520 = vmul.f32 %v519, 1.442695
    %v521 = vpow.pop %v520
    %v522 = vadd.f32 %v521, 1.0
    %v523 = vrcp.pop %v522
    %v524 = vmul.f32 %v522, %v523
    %v525 = vsub.f32 1.0, %v524
    %v526 = vmul.f32 %v523, %v525
    %v527 = vadd.f32 %v523, %v526
    %vm528 = vweird.f32 %v522
    %vm529 = vweird.f32 %v523
    %vm530 = vmor %vm528, %vm529
    %v531 = vsel %vm530, %v523, %v527
    %v532 = vand.u32 2147483647, %v522
    %vm533 = vcmp.eq.f32.partialorder %v532, 8.507059e+37
    %v534 = vand.u32 %v522, 2147483648
    %v535 = vor.u32 1.1754944e-38, %v534
    %v536 = vsel %vm533, %v535, %v531
    %v537 = vmul.f32 1.0, %v536
    %v538 = vsub.f32 1.0, %v537
    %540 = vrot.lane.b32.xlu0 %v538, 64
    %v541 = vpop.permute.xlu0 %540
    %v543 = vmul.f32 %v507, %v541
    %545 = vrot.lane.b32.xlu0 %v507, 32
    %v546 = vpop.permute.xlu0 %545
    %v548 = vmul.f32 %v537, %v546
    %550 = vrot.lane.b32.xlu0 %v548, 64
    %v551 = vpop.permute.xlu0 %550
    %v553 = vadd.f32 %v543, %v551
    %v556 = vrot.slane %v369, 1
    %v557 = vrot.slane %v392, 1
    %v560 = vsel %vm298, %v556, %v372
    %v561 = vsel %vm298, %v557, %v395
    %v563 = vsel %vm415, %v553, 0
    %565 = vmatpush.msra.mxu0 0.0
    %566 = vmatpush.msra.mxu0 0.0
    %567 = vmatpush.msra.mxu0 0.0
    %568 = vmatpush.msra.mxu0 0.0
    %569 = vmatpush.msra.mxu0 0.0
    %570 = vmatpush.msra.mxu0 0.0
    %571 = vmatpush.msra.mxu0 0.0
    %572 = vmatpush.msra.mxu0 0.0
    %573 = vmatpush.msra.mxu0 0.0
    %574 = vmatpush.msra.mxu0 0.0
    %575 = vmatpush.msra.mxu0 0.0
    %576 = vmatpush.msra.mxu0 0.0
    %577 = vmatpush.msra.mxu0 %v400
    %578 = vmatpush.msra.mxu0 %v399
    %579 = vmatpush.msra.mxu0 %v398
    %580 = vmatpush.msra.mxu0 %v397
    %581 = vmatmul.f32.gmra.mxu0 %v563
    %v582 = vpop.f32.mrf.mxu0
    %v583 = vadd.f32 0.0, %v582
    %584 = vdwg.mxu0
    %v585 = vadd.f32 %v560, %v583
    %v586 = vxor.u32 %v585, 2147483648
    %v587 = vmul.f32 %v586, 1.442695
    %v588 = vpow.pop %v587
    %v589 = vadd.f32 %v588, 1.0
    %v590 = vrcp.pop %v589
    %v591 = vmul.f32 %v589, %v590
    %v592 = vsub.f32 1.0, %v591
    %v593 = vmul.f32 %v590, %v592
    %v594 = vadd.f32 %v590, %v593
    %vm595 = vweird.f32 %v589
    %vm596 = vweird.f32 %v590
    %vm597 = vmor %vm595, %vm596
    %v598 = vsel %vm597, %v590, %v594
    %v599 = vand.u32 2147483647, %v589
    %vm600 = vcmp.eq.f32.partialorder %v599, 8.507059e+37
    %v601 = vand.u32 %v589, 2147483648
    %v602 = vor.u32 1.1754944e-38, %v601
    %v603 = vsel %vm600, %v602, %v598
    %v604 = vmul.f32 1.0, %v603
    %v605 = vtanh.pop %v585
    %v606 = vmul.f32 %v604, %v474
    %608 = vrot.lane.b32.xlu0 %v605, 64
    %v609 = vpop.permute.xlu0 %608
    %v611 = vmul.f32 %v604, %v609
    %613 = vrot.lane.b32.xlu0 %v611, 32
    %v614 = vpop.permute.xlu0 %613
    %v616 = vadd.f32 %v606, %v614
    %v617 = vtanh.pop %v616
    %619 = vrot.lane.b32.xlu0 %v617, 64
    %v620 = vpop.permute.xlu0 %619
    %v622 = vmul.f32 %v604, %v620
    %624 = vrot.lane.b32.xlu0 %v622, 32
    %v625 = vpop.permute.xlu0 %624
    %v626 = vsel %vm415, %v625, 0
    %628 = vmatpush.msra.mxu0 0.0
    %629 = vmatpush.msra.mxu0 0.0
    %630 = vmatpush.msra.mxu0 0.0
    %631 = vmatpush.msra.mxu0 0.0
    %632 = vmatpush.msra.mxu0 0.0
    %633 = vmatpush.msra.mxu0 0.0
    %634 = vmatpush.msra.mxu0 0.0
    %635 = vmatpush.msra.mxu0 0.0
    %636 = vmatpush.msra.mxu0 0.0
    %637 = vmatpush.msra.mxu0 0.0
    %638 = vmatpush.msra.mxu0 0.0
    %639 = vmatpush.msra.mxu0 0.0
    %640 = vmatpush.msra.mxu0 %v404
    %641 = vmatpush.msra.mxu0 %v403
    %642 = vmatpush.msra.mxu0 %v402
    %643 = vmatpush.msra.mxu0 %v401
    %644 = vmatmul.f32.gmra.mxu0 %v626
    %v645 = vpop.f32.mrf.mxu0
    %v646 = vadd.f32 0.0, %v645
    %647 = vdwg.mxu0
    %v648 = vadd.f32 %v561, %v646
    %v649 = vtanh.pop %v648
    %651 = vset.pattern.permute.xlu0 0
    %652 = vperm.xlu0 %651, %v303
    %v653 = vpop.permute.xlu0 %652
    %v655 = vmul.f32 %v648, %v653
    %657 = vrot.lane.b32.xlu0 %v648, 96
    %v658 = vpop.permute.xlu0 %657
    %v660 = vadd.f32 %v655, %v658
    %v661 = vxor.u32 %v660, 2147483648
    %v662 = vmul.f32 %v661, 1.442695
    %v663 = vpow.pop %v662
    %v664 = vadd.f32 %v663, 1.0
    %v665 = vrcp.pop %v664
    %v666 = vmul.f32 %v664, %v665
    %v667 = vsub.f32 1.0, %v666
    %v668 = vmul.f32 %v665, %v667
    %v669 = vadd.f32 %v665, %v668
    %vm670 = vweird.f32 %v664
    %vm671 = vweird.f32 %v665
    %vm672 = vmor %vm670, %vm671
    %v673 = vsel %vm672, %v665, %v669
    %v674 = vand.u32 2147483647, %v664
    %vm675 = vcmp.eq.f32.partialorder %v674, 8.507059e+37
    %v676 = vand.u32 %v664, 2147483648
    %v677 = vor.u32 1.1754944e-38, %v676
    %v678 = vsel %vm675, %v677, %v673
    %v679 = vmul.f32 1.0, %v678
    %v680 = vsub.f32 1.0, %v679
    %682 = vrot.lane.b32.xlu0 %v680, 64
    %v683 = vpop.permute.xlu0 %682
    %v685 = vmul.f32 %v649, %v683
    %687 = vrot.lane.b32.xlu0 %v649, 32
    %v688 = vpop.permute.xlu0 %687
    %v690 = vmul.f32 %v679, %v688
    %692 = vrot.lane.b32.xlu0 %v690, 64
    %v693 = vpop.permute.xlu0 %692
    %v695 = vadd.f32 %v685, %v693
    %v696 = vrot.slane %v369, 2
    %v697 = vrot.slane %v392, 2
    %v700 = vrot.slane %v372, 1
    %v701 = vrot.slane %v395, 1
    %v704 = vsel %vm298, %v696, %v700
    %v705 = vsel %vm298, %v697, %v701
    %v707 = vsel %vm415, %v695, 0
    %709 = vmatpush.msra.mxu0 0.0
    %710 = vmatpush.msra.mxu0 0.0
    %711 = vmatpush.msra.mxu0 0.0
    %712 = vmatpush.msra.mxu0 0.0
    %713 = vmatpush.msra.mxu0 0.0
    %714 = vmatpush.msra.mxu0 0.0
    %715 = vmatpush.msra.mxu0 0.0
    %716 = vmatpush.msra.mxu0 0.0
    %717 = vmatpush.msra.mxu0 0.0
    %718 = vmatpush.msra.mxu0 0.0
    %719 = vmatpush.msra.mxu0 0.0
    %720 = vmatpush.msra.mxu0 0.0
    %721 = vmatpush.msra.mxu0 %v400
    %722 = vmatpush.msra.mxu0 %v399
    %723 = vmatpush.msra.mxu0 %v398
    %724 = vmatpush.msra.mxu0 %v397
    %725 = vmatmul.f32.gmra.mxu0 %v707
    %v726 = vpop.f32.mrf.mxu0
    %v727 = vadd.f32 0.0, %v726
    %728 = vdwg.mxu0
    %v729 = vadd.f32 %v704, %v727
    %v730 = vxor.u32 %v729, 2147483648
    %v731 = vmul.f32 %v730, 1.442695
    %v732 = vpow.pop %v731
    %v733 = vadd.f32 %v732, 1.0
    %v734 = vrcp.pop %v733
    %v735 = vmul.f32 %v733, %v734
    %v736 = vsub.f32 1.0, %v735
    %v737 = vmul.f32 %v734, %v736
    %v738 = vadd.f32 %v734, %v737
    %vm739 = vweird.f32 %v733
    %vm740 = vweird.f32 %v734
    %vm741 = vmor %vm739, %vm740
    %v742 = vsel %vm741, %v734, %v738
    %v743 = vand.u32 2147483647, %v733
    %vm744 = vcmp.eq.f32.partialorder %v743, 8.507059e+37
    %v745 = vand.u32 %v733, 2147483648
    %v746 = vor.u32 1.1754944e-38, %v745
    %v747 = vsel %vm744, %v746, %v742
    %v748 = vmul.f32 1.0, %v747
    %v749 = vtanh.pop %v729
    %v750 = vmul.f32 %v748, %v616
    %752 = vrot.lane.b32.xlu0 %v749, 64
    %v753 = vpop.permute.xlu0 %752
    %v755 = vmul.f32 %v748, %v753
    %757 = vrot.lane.b32.xlu0 %v755, 32
    %v758 = vpop.permute.xlu0 %757
    %v760 = vadd.f32 %v750, %v758
    %v761 = vtanh.pop %v760
    %763 = vrot.lane.b32.xlu0 %v761, 64
    %v764 = vpop.permute.xlu0 %763
    %v766 = vmul.f32 %v748, %v764
    %768 = vrot.lane.b32.xlu0 %v766, 32
    %v769 = vpop.permute.xlu0 %768
    %v770 = vsel %vm415, %v769, 0
    %772 = vmatpush.msra.mxu0 0.0
    %773 = vmatpush.msra.mxu0 0.0
    %774 = vmatpush.msra.mxu0 0.0
    %775 = vmatpush.msra.mxu0 0.0
    %776 = vmatpush.msra.mxu0 0.0
    %777 = vmatpush.msra.mxu0 0.0
    %778 = vmatpush.msra.mxu0 0.0
    %779 = vmatpush.msra.mxu0 0.0
    %780 = vmatpush.msra.mxu0 0.0
    %781 = vmatpush.msra.mxu0 0.0
    %782 = vmatpush.msra.mxu0 0.0
    %783 = vmatpush.msra.mxu0 0.0
    %784 = vmatpush.msra.mxu0 %v404
    %785 = vmatpush.msra.mxu0 %v403
    %786 = vmatpush.msra.mxu0 %v402
    %787 = vmatpush.msra.mxu0 %v401
    %788 = vmatmul.f32.gmra.mxu0 %v770
    %v789 = vpop.f32.mrf.mxu0
    %v790 = vadd.f32 0.0, %v789
    %791 = vdwg.mxu0
    %v792 = vadd.f32 %v705, %v790
    %v793 = vtanh.pop %v792
    %795 = vset.pattern.permute.xlu0 0
    %796 = vperm.xlu0 %795, %v308
    %v797 = vpop.permute.xlu0 %796
    %v799 = vmul.f32 %v792, %v797
    %801 = vrot.lane.b32.xlu0 %v792, 96
    %v802 = vpop.permute.xlu0 %801
    %v804 = vadd.f32 %v799, %v802
    %v805 = vxor.u32 %v804, 2147483648
    %v806 = vmul.f32 %v805, 1.442695
    %v807 = vpow.pop %v806
    %v808 = vadd.f32 %v807, 1.0
    %v809 = vrcp.pop %v808
    %v810 = vmul.f32 %v808, %v809
    %v811 = vsub.f32 1.0, %v810
    %v812 = vmul.f32 %v809, %v811
    %v813 = vadd.f32 %v809, %v812
    %vm814 = vweird.f32 %v808
    %vm815 = vweird.f32 %v809
    %vm816 = vmor %vm814, %vm815
    %v817 = vsel %vm816, %v809, %v813
    %v818 = vand.u32 2147483647, %v808
    %vm819 = vcmp.eq.f32.partialorder %v818, 8.507059e+37
    %v820 = vand.u32 %v808, 2147483648
    %v821 = vor.u32 1.1754944e-38, %v820
    %v822 = vsel %vm819, %v821, %v817
    %v823 = vmul.f32 1.0, %v822
    %v824 = vsub.f32 1.0, %v823
    %826 = vrot.lane.b32.xlu0 %v824, 64
    %v827 = vpop.permute.xlu0 %826
    %v829 = vmul.f32 %v793, %v827
    %831 = vrot.lane.b32.xlu0 %v793, 32
    %v832 = vpop.permute.xlu0 %831
    %v834 = vmul.f32 %v823, %v832
    %836 = vrot.lane.b32.xlu0 %v834, 64
    %v837 = vpop.permute.xlu0 %836
    %v839 = vadd.f32 %v829, %v837
    %v840 = vrot.slane %v369, 3
    %v841 = vrot.slane %v392, 3
    %v844 = vrot.slane %v372, 2
    %v845 = vrot.slane %v395, 2
    %v848 = vsel %vm298, %v840, %v844
    %v849 = vsel %vm298, %v841, %v845
    %v851 = vsel %vm415, %v839, 0
    %853 = vmatpush.msra.mxu0 0.0
    %854 = vmatpush.msra.mxu0 0.0
    %855 = vmatpush.msra.mxu0 0.0
    %856 = vmatpush.msra.mxu0 0.0
    %857 = vmatpush.msra.mxu0 0.0
    %858 = vmatpush.msra.mxu0 0.0
    %859 = vmatpush.msra.mxu0 0.0
    %860 = vmatpush.msra.mxu0 0.0
    %861 = vmatpush.msra.mxu0 0.0
    %862 = vmatpush.msra.mxu0 0.0
    %863 = vmatpush.msra.mxu0 0.0
    %864 = vmatpush.msra.mxu0 0.0
    %865 = vmatpush.msra.mxu0 %v400
    %866 = vmatpush.msra.mxu0 %v399
    %867 = vmatpush.msra.mxu0 %v398
    %868 = vmatpush.msra.mxu0 %v397
    %869 = vmatmul.f32.gmra.mxu0 %v851
    %v870 = vpop.f32.mrf.mxu0
    %v871 = vadd.f32 0.0, %v870
    %872 = vdwg.mxu0
    %v873 = vadd.f32 %v848, %v871
    %v874 = vxor.u32 %v873, 2147483648
    %v875 = vmul.f32 %v874, 1.442695
    %v876 = vpow.pop %v875
    %v877 = vadd.f32 %v876, 1.0
    %v878 = vrcp.pop %v877
    %v879 = vmul.f32 %v877, %v878
    %v880 = vsub.f32 1.0, %v879
    %v881 = vmul.f32 %v878, %v880
    %v882 = vadd.f32 %v878, %v881
    %vm883 = vweird.f32 %v877
    %vm884 = vweird.f32 %v878
    %vm885 = vmor %vm883, %vm884
    %v886 = vsel %vm885, %v878, %v882
    %v887 = vand.u32 2147483647, %v877
    %vm888 = vcmp.eq.f32.partialorder %v887, 8.507059e+37
    %v889 = vand.u32 %v877, 2147483648
    %v890 = vor.u32 1.1754944e-38, %v889
    %v891 = vsel %vm888, %v890, %v886
    %v892 = vmul.f32 1.0, %v891
    %v893 = vtanh.pop %v873
    %v894 = vmul.f32 %v892, %v760
    %896 = vrot.lane.b32.xlu0 %v893, 64
    %v897 = vpop.permute.xlu0 %896
    %v899 = vmul.f32 %v892, %v897
    %901 = vrot.lane.b32.xlu0 %v899, 32
    %v902 = vpop.permute.xlu0 %901
    %v904 = vadd.f32 %v894, %v902
    %v905 = vtanh.pop %v904
    %907 = vrot.lane.b32.xlu0 %v905, 64
    %v908 = vpop.permute.xlu0 %907
    %v910 = vmul.f32 %v892, %v908
    %912 = vrot.lane.b32.xlu0 %v910, 32
    %v913 = vpop.permute.xlu0 %912
    %v914 = vsel %vm415, %v913, 0
    %916 = vmatpush.msra.mxu0 0.0
    %917 = vmatpush.msra.mxu0 0.0
    %918 = vmatpush.msra.mxu0 0.0
    %919 = vmatpush.msra.mxu0 0.0
    %920 = vmatpush.msra.mxu0 0.0
    %921 = vmatpush.msra.mxu0 0.0
    %922 = vmatpush.msra.mxu0 0.0
    %923 = vmatpush.msra.mxu0 0.0
    %924 = vmatpush.msra.mxu0 0.0
    %925 = vmatpush.msra.mxu0 0.0
    %926 = vmatpush.msra.mxu0 0.0
    %927 = vmatpush.msra.mxu0 0.0
    %928 = vmatpush.msra.mxu0 %v404
    %929 = vmatpush.msra.mxu0 %v403
    %930 = vmatpush.msra.mxu0 %v402
    %931 = vmatpush.msra.mxu0 %v401
    %932 = vmatmul.f32.gmra.mxu0 %v914
    %v933 = vpop.f32.mrf.mxu0
    %v934 = vadd.f32 0.0, %v933
    %935 = vdwg.mxu0
    %v936 = vadd.f32 %v849, %v934
    %v937 = vtanh.pop %v936
    %939 = vset.pattern.permute.xlu0 0
    %940 = vperm.xlu0 %939, %v313
    %v941 = vpop.permute.xlu0 %940
    %v943 = vmul.f32 %v936, %v941
    %945 = vrot.lane.b32.xlu0 %v936, 96
    %v946 = vpop.permute.xlu0 %945
    %v948 = vadd.f32 %v943, %v946
    %v949 = vxor.u32 %v948, 2147483648
    %v950 = vmul.f32 %v949, 1.442695
    %v951 = vpow.pop %v950
    %v952 = vadd.f32 %v951, 1.0
    %v953 = vrcp.pop %v952
    %v954 = vmul.f32 %v952, %v953
    %v955 = vsub.f32 1.0, %v954
    %v956 = vmul.f32 %v953, %v955
    %v957 = vadd.f32 %v953, %v956
    %vm958 = vweird.f32 %v952
    %vm959 = vweird.f32 %v953
    %vm960 = vmor %vm958, %vm959
    %v961 = vsel %vm960, %v953, %v957
    %v962 = vand.u32 2147483647, %v952
    %vm963 = vcmp.eq.f32.partialorder %v962, 8.507059e+37
    %v964 = vand.u32 %v952, 2147483648
    %v965 = vor.u32 1.1754944e-38, %v964
    %v966 = vsel %vm963, %v965, %v961
    %v967 = vmul.f32 1.0, %v966
    %v968 = vsub.f32 1.0, %v967
    %970 = vrot.lane.b32.xlu0 %v968, 64
    %v971 = vpop.permute.xlu0 %970
    %v973 = vmul.f32 %v937, %v971
    %975 = vrot.lane.b32.xlu0 %v937, 32
    %v976 = vpop.permute.xlu0 %975
    %v978 = vmul.f32 %v967, %v976
    %980 = vrot.lane.b32.xlu0 %v978, 64
    %v981 = vpop.permute.xlu0 %980
    %v983 = vadd.f32 %v973, %v981
    %v984 = vrot.slane %v369, 4
    %v985 = vrot.slane %v392, 4
    %v988 = vrot.slane %v372, 3
    %v989 = vrot.slane %v395, 3
    %v992 = vsel %vm298, %v984, %v988
    %v993 = vsel %vm298, %v985, %v989
    %v995 = vsel %vm415, %v983, 0
    %997 = vmatpush.msra.mxu0 0.0
    %998 = vmatpush.msra.mxu0 0.0
    %999 = vmatpush.msra.mxu0 0.0
    %1000 = vmatpush.msra.mxu0 0.0
    %1001 = vmatpush.msra.mxu0 0.0
    %1002 = vmatpush.msra.mxu0 0.0
    %1003 = vmatpush.msra.mxu0 0.0
    %1004 = vmatpush.msra.mxu0 0.0
    %1005 = vmatpush.msra.mxu0 0.0
    %1006 = vmatpush.msra.mxu0 0.0
    %1007 = vmatpush.msra.mxu0 0.0
    %1008 = vmatpush.msra.mxu0 0.0
    %1009 = vmatpush.msra.mxu0 %v400
    %1010 = vmatpush.msra.mxu0 %v399
    %1011 = vmatpush.msra.mxu0 %v398
    %1012 = vmatpush.msra.mxu0 %v397
    %1013 = vmatmul.f32.gmra.mxu0 %v995
    %v1014 = vpop.f32.mrf.mxu0
    %v1015 = vadd.f32 0.0, %v1014
    %1016 = vdwg.mxu0
    %v1017 = vadd.f32 %v992, %v1015
    %v1018 = vxor.u32 %v1017, 2147483648
    %v1019 = vmul.f32 %v1018, 1.442695
    %v1020 = vpow.pop %v1019
    %v1021 = vadd.f32 %v1020, 1.0
    %v1022 = vrcp.pop %v1021
    %v1023 = vmul.f32 %v1021, %v1022
    %v1024 = vsub.f32 1.0, %v1023
    %v1025 = vmul.f32 %v1022, %v1024
    %v1026 = vadd.f32 %v1022, %v1025
    %vm1027 = vweird.f32 %v1021
    %vm1028 = vweird.f32 %v1022
    %vm1029 = vmor %vm1027, %vm1028
    %v1030 = vsel %vm1029, %v1022, %v1026
    %v1031 = vand.u32 2147483647, %v1021
    %vm1032 = vcmp.eq.f32.partialorder %v1031, 8.507059e+37
    %v1033 = vand.u32 %v1021, 2147483648
    %v1034 = vor.u32 1.1754944e-38, %v1033
    %v1035 = vsel %vm1032, %v1034, %v1030
    %v1036 = vmul.f32 1.0, %v1035
    %v1037 = vtanh.pop %v1017
    %v1038 = vmul.f32 %v1036, %v904
    %1040 = vrot.lane.b32.xlu0 %v1037, 64
    %v1041 = vpop.permute.xlu0 %1040
    %v1043 = vmul.f32 %v1036, %v1041
    %1045 = vrot.lane.b32.xlu0 %v1043, 32
    %v1046 = vpop.permute.xlu0 %1045
    %v1048 = vadd.f32 %v1038, %v1046
    %v1049 = vtanh.pop %v1048
    %1051 = vrot.lane.b32.xlu0 %v1049, 64
    %v1052 = vpop.permute.xlu0 %1051
    %v1054 = vmul.f32 %v1036, %v1052
    %1056 = vrot.lane.b32.xlu0 %v1054, 32
    %v1057 = vpop.permute.xlu0 %1056
    %v1058 = vsel %vm415, %v1057, 0
    %1060 = vmatpush.msra.mxu0 0.0
    %1061 = vmatpush.msra.mxu0 0.0
    %1062 = vmatpush.msra.mxu0 0.0
    %1063 = vmatpush.msra.mxu0 0.0
    %1064 = vmatpush.msra.mxu0 0.0
    %1065 = vmatpush.msra.mxu0 0.0
    %1066 = vmatpush.msra.mxu0 0.0
    %1067 = vmatpush.msra.mxu0 0.0
    %1068 = vmatpush.msra.mxu0 0.0
    %1069 = vmatpush.msra.mxu0 0.0
    %1070 = vmatpush.msra.mxu0 0.0
    %1071 = vmatpush.msra.mxu0 0.0
    %1072 = vmatpush.msra.mxu0 %v404
    %1073 = vmatpush.msra.mxu0 %v403
    %1074 = vmatpush.msra.mxu0 %v402
    %1075 = vmatpush.msra.mxu0 %v401
    %1076 = vmatmul.f32.gmra.mxu0 %v1058
    %v1077 = vpop.f32.mrf.mxu0
    %v1078 = vadd.f32 0.0, %v1077
    %1079 = vdwg.mxu0
    %v1080 = vadd.f32 %v993, %v1078
    %v1081 = vtanh.pop %v1080
    %1083 = vset.pattern.permute.xlu0 0
    %1084 = vperm.xlu0 %1083, %v318
    %v1085 = vpop.permute.xlu0 %1084
    %v1087 = vmul.f32 %v1080, %v1085
    %1089 = vrot.lane.b32.xlu0 %v1080, 96
    %v1090 = vpop.permute.xlu0 %1089
    %v1092 = vadd.f32 %v1087, %v1090
    %v1093 = vxor.u32 %v1092, 2147483648
    %v1094 = vmul.f32 %v1093, 1.442695
    %v1095 = vpow.pop %v1094
    %v1096 = vadd.f32 %v1095, 1.0
    %v1097 = vrcp.pop %v1096
    %v1098 = vmul.f32 %v1096, %v1097
    %v1099 = vsub.f32 1.0, %v1098
    %v1100 = vmul.f32 %v1097, %v1099
    %v1101 = vadd.f32 %v1097, %v1100
    %vm1102 = vweird.f32 %v1096
    %vm1103 = vweird.f32 %v1097
    %vm1104 = vmor %vm1102, %vm1103
    %v1105 = vsel %vm1104, %v1097, %v1101
    %v1106 = vand.u32 2147483647, %v1096
    %vm1107 = vcmp.eq.f32.partialorder %v1106, 8.507059e+37
    %v1108 = vand.u32 %v1096, 2147483648
    %v1109 = vor.u32 1.1754944e-38, %v1108
    %v1110 = vsel %vm1107, %v1109, %v1105
    %v1111 = vmul.f32 1.0, %v1110
    %v1112 = vsub.f32 1.0, %v1111
    %1114 = vrot.lane.b32.xlu0 %v1112, 64
    %v1115 = vpop.permute.xlu0 %1114
    %v1117 = vmul.f32 %v1081, %v1115
    %1119 = vrot.lane.b32.xlu0 %v1081, 32
    %v1120 = vpop.permute.xlu0 %1119
    %v1122 = vmul.f32 %v1111, %v1120
    %1124 = vrot.lane.b32.xlu0 %v1122, 64
    %v1125 = vpop.permute.xlu0 %1124
    %v1127 = vadd.f32 %v1117, %v1125
    %v1128 = vrot.slane %v369, 5
    %v1129 = vrot.slane %v392, 5
    %v1132 = vrot.slane %v372, 4
    %v1133 = vrot.slane %v395, 4
    %v1136 = vsel %vm298, %v1128, %v1132
    %v1137 = vsel %vm298, %v1129, %v1133
    %v1139 = vsel %vm415, %v1127, 0
    %1141 = vmatpush.msra.mxu0 0.0
    %1142 = vmatpush.msra.mxu0 0.0
    %1143 = vmatpush.msra.mxu0 0.0
    %1144 = vmatpush.msra.mxu0 0.0
    %1145 = vmatpush.msra.mxu0 0.0
    %1146 = vmatpush.msra.mxu0 0.0
    %1147 = vmatpush.msra.mxu0 0.0
    %1148 = vmatpush.msra.mxu0 0.0
    %1149 = vmatpush.msra.mxu0 0.0
    %1150 = vmatpush.msra.mxu0 0.0
    %1151 = vmatpush.msra.mxu0 0.0
    %1152 = vmatpush.msra.mxu0 0.0
    %1153 = vmatpush.msra.mxu0 %v400
    %1154 = vmatpush.msra.mxu0 %v399
    %1155 = vmatpush.msra.mxu0 %v398
    %1156 = vmatpush.msra.mxu0 %v397
    %1157 = vmatmul.f32.gmra.mxu0 %v1139
    %v1158 = vpop.f32.mrf.mxu0
    %v1159 = vadd.f32 0.0, %v1158
    %1160 = vdwg.mxu0
    %v1161 = vadd.f32 %v1136, %v1159
    %v1162 = vxor.u32 %v1161, 2147483648
    %v1163 = vmul.f32 %v1162, 1.442695
    %v1164 = vpow.pop %v1163
    %v1165 = vadd.f32 %v1164, 1.0
    %v1166 = vrcp.pop %v1165
    %v1167 = vmul.f32 %v1165, %v1166
    %v1168 = vsub.f32 1.0, %v1167
    %v1169 = vmul.f32 %v1166, %v1168
    %v1170 = vadd.f32 %v1166, %v1169
    %vm1171 = vweird.f32 %v1165
    %vm1172 = vweird.f32 %v1166
    %vm1173 = vmor %vm1171, %vm1172
    %v1174 = vsel %vm1173, %v1166, %v1170
    %v1175 = vand.u32 2147483647, %v1165
    %vm1176 = vcmp.eq.f32.partialorder %v1175, 8.507059e+37
    %v1177 = vand.u32 %v1165, 2147483648
    %v1178 = vor.u32 1.1754944e-38, %v1177
    %v1179 = vsel %vm1176, %v1178, %v1174
    %v1180 = vmul.f32 1.0, %v1179
    %v1181 = vtanh.pop %v1161
    %v1182 = vmul.f32 %v1180, %v1048
    %1184 = vrot.lane.b32.xlu0 %v1181, 64
    %v1185 = vpop.permute.xlu0 %1184
    %v1187 = vmul.f32 %v1180, %v1185
    %1189 = vrot.lane.b32.xlu0 %v1187, 32
    %v1190 = vpop.permute.xlu0 %1189
    %v1192 = vadd.f32 %v1182, %v1190
    %v1193 = vtanh.pop %v1192
    %1195 = vrot.lane.b32.xlu0 %v1193, 64
    %v1196 = vpop.permute.xlu0 %1195
    %v1198 = vmul.f32 %v1180, %v1196
    %1200 = vrot.lane.b32.xlu0 %v1198, 32
    %v1201 = vpop.permute.xlu0 %1200
    %v1202 = vsel %vm415, %v1201, 0
    %1204 = vmatpush.msra.mxu0 0.0
    %1205 = vmatpush.msra.mxu0 0.0
    %1206 = vmatpush.msra.mxu0 0.0
    %1207 = vmatpush.msra.mxu0 0.0
    %1208 = vmatpush.msra.mxu0 0.0
    %1209 = vmatpush.msra.mxu0 0.0
    %1210 = vmatpush.msra.mxu0 0.0
    %1211 = vmatpush.msra.mxu0 0.0
    %1212 = vmatpush.msra.mxu0 0.0
    %1213 = vmatpush.msra.mxu0 0.0
    %1214 = vmatpush.msra.mxu0 0.0
    %1215 = vmatpush.msra.mxu0 0.0
    %1216 = vmatpush.msra.mxu0 %v404
    %1217 = vmatpush.msra.mxu0 %v403
    %1218 = vmatpush.msra.mxu0 %v402
    %1219 = vmatpush.msra.mxu0 %v401
    %1220 = vmatmul.f32.gmra.mxu0 %v1202
    %v1221 = vpop.f32.mrf.mxu0
    %v1222 = vadd.f32 0.0, %v1221
    %1223 = vdwg.mxu0
    %v1224 = vadd.f32 %v1137, %v1222
    %v1225 = vtanh.pop %v1224
    %1227 = vset.pattern.permute.xlu0 0
    %1228 = vperm.xlu0 %1227, %v323
    %v1229 = vpop.permute.xlu0 %1228
    %v1231 = vmul.f32 %v1224, %v1229
    %1233 = vrot.lane.b32.xlu0 %v1224, 96
    %v1234 = vpop.permute.xlu0 %1233
    %v1236 = vadd.f32 %v1231, %v1234
    %v1237 = vxor.u32 %v1236, 2147483648
    %v1238 = vmul.f32 %v1237, 1.442695
    %v1239 = vpow.pop %v1238
    %v1240 = vadd.f32 %v1239, 1.0
    %v1241 = vrcp.pop %v1240
    %v1242 = vmul.f32 %v1240, %v1241
    %v1243 = vsub.f32 1.0, %v1242
    %v1244 = vmul.f32 %v1241, %v1243
    %v1245 = vadd.f32 %v1241, %v1244
    %vm1246 = vweird.f32 %v1240
    %vm1247 = vweird.f32 %v1241
    %vm1248 = vmor %vm1246, %vm1247
    %v1249 = vsel %vm1248, %v1241, %v1245
    %v1250 = vand.u32 2147483647, %v1240
    %vm1251 = vcmp.eq.f32.partialorder %v1250, 8.507059e+37
    %v1252 = vand.u32 %v1240, 2147483648
    %v1253 = vor.u32 1.1754944e-38, %v1252
    %v1254 = vsel %vm1251, %v1253, %v1249
    %v1255 = vmul.f32 1.0, %v1254
    %v1256 = vsub.f32 1.0, %v1255
    %1258 = vrot.lane.b32.xlu0 %v1256, 64
    %v1259 = vpop.permute.xlu0 %1258
    %v1261 = vmul.f32 %v1225, %v1259
    %1263 = vrot.lane.b32.xlu0 %v1225, 32
    %v1264 = vpop.permute.xlu0 %1263
    %v1266 = vmul.f32 %v1255, %v1264
    %1268 = vrot.lane.b32.xlu0 %v1266, 64
    %v1269 = vpop.permute.xlu0 %1268
    %v1271 = vadd.f32 %v1261, %v1269
    %v1272 = vrot.slane %v369, 6
    %v1273 = vrot.slane %v392, 6
    %v1276 = vrot.slane %v372, 5
    %v1277 = vrot.slane %v395, 5
    %v1280 = vsel %vm298, %v1272, %v1276
    %v1281 = vsel %vm298, %v1273, %v1277
    %v1283 = vsel %vm415, %v1271, 0
    %1285 = vmatpush.msra.mxu0 0.0
    %1286 = vmatpush.msra.mxu0 0.0
    %1287 = vmatpush.msra.mxu0 0.0
    %1288 = vmatpush.msra.mxu0 0.0
    %1289 = vmatpush.msra.mxu0 0.0
    %1290 = vmatpush.msra.mxu0 0.0
    %1291 = vmatpush.msra.mxu0 0.0
    %1292 = vmatpush.msra.mxu0 0.0
    %1293 = vmatpush.msra.mxu0 0.0
    %1294 = vmatpush.msra.mxu0 0.0
    %1295 = vmatpush.msra.mxu0 0.0
    %1296 = vmatpush.msra.mxu0 0.0
    %1297 = vmatpush.msra.mxu0 %v400
    %1298 = vmatpush.msra.mxu0 %v399
    %1299 = vmatpush.msra.mxu0 %v398
    %1300 = vmatpush.msra.mxu0 %v397
    %1301 = vmatmul.f32.gmra.mxu0 %v1283
    %v1302 = vpop.f32.mrf.mxu0
    %v1303 = vadd.f32 0.0, %v1302
    %1304 = vdwg.mxu0
    %v1305 = vadd.f32 %v1280, %v1303
    %v1306 = vxor.u32 %v1305, 2147483648
    %v1307 = vmul.f32 %v1306, 1.442695
    %v1308 = vpow.pop %v1307
    %v1309 = vadd.f32 %v1308, 1.0
    %v1310 = vrcp.pop %v1309
    %v1311 = vmul.f32 %v1309, %v1310
    %v1312 = vsub.f32 1.0, %v1311
    %v1313 = vmul.f32 %v1310, %v1312
    %v1314 = vadd.f32 %v1310, %v1313
    %vm1315 = vweird.f32 %v1309
    %vm1316 = vweird.f32 %v1310
    %vm1317 = vmor %vm1315, %vm1316
    %v1318 = vsel %vm1317, %v1310, %v1314
    %v1319 = vand.u32 2147483647, %v1309
    %vm1320 = vcmp.eq.f32.partialorder %v1319, 8.507059e+37
    %v1321 = vand.u32 %v1309, 2147483648
    %v1322 = vor.u32 1.1754944e-38, %v1321
    %v1323 = vsel %vm1320, %v1322, %v1318
    %v1324 = vmul.f32 1.0, %v1323
    %v1325 = vtanh.pop %v1305
    %v1326 = vmul.f32 %v1324, %v1192
    %1328 = vrot.lane.b32.xlu0 %v1325, 64
    %v1329 = vpop.permute.xlu0 %1328
    %v1331 = vmul.f32 %v1324, %v1329
    %1333 = vrot.lane.b32.xlu0 %v1331, 32
    %v1334 = vpop.permute.xlu0 %1333
    %v1336 = vadd.f32 %v1326, %v1334
    %v1337 = vtanh.pop %v1336
    %1339 = vrot.lane.b32.xlu0 %v1337, 64
    %v1340 = vpop.permute.xlu0 %1339
    %v1342 = vmul.f32 %v1324, %v1340
    %1344 = vrot.lane.b32.xlu0 %v1342, 32
    %v1345 = vpop.permute.xlu0 %1344
    %v1346 = vsel %vm415, %v1345, 0
    %1348 = vmatpush.msra.mxu0 0.0
    %1349 = vmatpush.msra.mxu0 0.0
    %1350 = vmatpush.msra.mxu0 0.0
    %1351 = vmatpush.msra.mxu0 0.0
    %1352 = vmatpush.msra.mxu0 0.0
    %1353 = vmatpush.msra.mxu0 0.0
    %1354 = vmatpush.msra.mxu0 0.0
    %1355 = vmatpush.msra.mxu0 0.0
    %1356 = vmatpush.msra.mxu0 0.0
    %1357 = vmatpush.msra.mxu0 0.0
    %1358 = vmatpush.msra.mxu0 0.0
    %1359 = vmatpush.msra.mxu0 0.0
    %1360 = vmatpush.msra.mxu0 %v404
    %1361 = vmatpush.msra.mxu0 %v403
    %1362 = vmatpush.msra.mxu0 %v402
    %1363 = vmatpush.msra.mxu0 %v401
    %1364 = vmatmul.f32.gmra.mxu0 %v1346
    %v1365 = vpop.f32.mrf.mxu0
    %v1366 = vadd.f32 0.0, %v1365
    %1367 = vdwg.mxu0
    %v1368 = vadd.f32 %v1281, %v1366
    %v1369 = vtanh.pop %v1368
    %1371 = vset.pattern.permute.xlu0 0
    %1372 = vperm.xlu0 %1371, %v328
    %v1373 = vpop.permute.xlu0 %1372
    %v1375 = vmul.f32 %v1368, %v1373
    %1377 = vrot.lane.b32.xlu0 %v1368, 96
    %v1378 = vpop.permute.xlu0 %1377
    %v1380 = vadd.f32 %v1375, %v1378
    %v1381 = vxor.u32 %v1380, 2147483648
    %v1382 = vmul.f32 %v1381, 1.442695
    %v1383 = vpow.pop %v1382
    %v1384 = vadd.f32 %v1383, 1.0
    %v1385 = vrcp.pop %v1384
    %v1386 = vmul.f32 %v1384, %v1385
    %v1387 = vsub.f32 1.0, %v1386
    %v1388 = vmul.f32 %v1385, %v1387
    %v1389 = vadd.f32 %v1385, %v1388
    %vm1390 = vweird.f32 %v1384
    %vm1391 = vweird.f32 %v1385
    %vm1392 = vmor %vm1390, %vm1391
    %v1393 = vsel %vm1392, %v1385, %v1389
    %v1394 = vand.u32 2147483647, %v1384
    %vm1395 = vcmp.eq.f32.partialorder %v1394, 8.507059e+37
    %v1396 = vand.u32 %v1384, 2147483648
    %v1397 = vor.u32 1.1754944e-38, %v1396
    %v1398 = vsel %vm1395, %v1397, %v1393
    %v1399 = vmul.f32 1.0, %v1398
    %v1400 = vsub.f32 1.0, %v1399
    %1402 = vrot.lane.b32.xlu0 %v1400, 64
    %v1403 = vpop.permute.xlu0 %1402
    %v1405 = vmul.f32 %v1369, %v1403
    %1407 = vrot.lane.b32.xlu0 %v1369, 32
    %v1408 = vpop.permute.xlu0 %1407
    %v1410 = vmul.f32 %v1399, %v1408
    %1412 = vrot.lane.b32.xlu0 %v1410, 64
    %v1413 = vpop.permute.xlu0 %1412
    %v1415 = vadd.f32 %v1405, %v1413
    %v1416 = vrot.slane %v369, 7
    %v1417 = vrot.slane %v392, 7
    %v1420 = vrot.slane %v372, 6
    %v1421 = vrot.slane %v395, 6
    %v1424 = vsel %vm298, %v1416, %v1420
    %v1425 = vsel %vm298, %v1417, %v1421
    %v1427 = vsel %vm415, %v1415, 0
    %1429 = vmatpush.msra.mxu0 0.0
    %1430 = vmatpush.msra.mxu0 0.0
    %1431 = vmatpush.msra.mxu0 0.0
    %1432 = vmatpush.msra.mxu0 0.0
    %1433 = vmatpush.msra.mxu0 0.0
    %1434 = vmatpush.msra.mxu0 0.0
    %1435 = vmatpush.msra.mxu0 0.0
    %1436 = vmatpush.msra.mxu0 0.0
    %1437 = vmatpush.msra.mxu0 0.0
    %1438 = vmatpush.msra.mxu0 0.0
    %1439 = vmatpush.msra.mxu0 0.0
    %1440 = vmatpush.msra.mxu0 0.0
    %1441 = vmatpush.msra.mxu0 %v400
    %1442 = vmatpush.msra.mxu0 %v399
    %1443 = vmatpush.msra.mxu0 %v398
    %1444 = vmatpush.msra.mxu0 %v397
    %1445 = vmatmul.f32.gmra.mxu0 %v1427
    %v1446 = vpop.f32.mrf.mxu0
    %v1447 = vadd.f32 0.0, %v1446
    %1448 = vdwg.mxu0
    %v1449 = vadd.f32 %v1424, %v1447
    %v1450 = vxor.u32 %v1449, 2147483648
    %v1451 = vmul.f32 %v1450, 1.442695
    %v1452 = vpow.pop %v1451
    %v1453 = vadd.f32 %v1452, 1.0
    %v1454 = vrcp.pop %v1453
    %v1455 = vmul.f32 %v1453, %v1454
    %v1456 = vsub.f32 1.0, %v1455
    %v1457 = vmul.f32 %v1454, %v1456
    %v1458 = vadd.f32 %v1454, %v1457
    %vm1459 = vweird.f32 %v1453
    %vm1460 = vweird.f32 %v1454
    %vm1461 = vmor %vm1459, %vm1460
    %v1462 = vsel %vm1461, %v1454, %v1458
    %v1463 = vand.u32 2147483647, %v1453
    %vm1464 = vcmp.eq.f32.partialorder %v1463, 8.507059e+37
    %v1465 = vand.u32 %v1453, 2147483648
    %v1466 = vor.u32 1.1754944e-38, %v1465
    %v1467 = vsel %vm1464, %v1466, %v1462
    %v1468 = vmul.f32 1.0, %v1467
    %v1469 = vtanh.pop %v1449
    %v1470 = vmul.f32 %v1468, %v1336
    %1472 = vrot.lane.b32.xlu0 %v1469, 64
    %v1473 = vpop.permute.xlu0 %1472
    %v1475 = vmul.f32 %v1468, %v1473
    %1477 = vrot.lane.b32.xlu0 %v1475, 32
    %v1478 = vpop.permute.xlu0 %1477
    %v1480 = vadd.f32 %v1470, %v1478
    %v1481 = vtanh.pop %v1480
    %1483 = vrot.lane.b32.xlu0 %v1481, 64
    %v1484 = vpop.permute.xlu0 %1483
    %v1486 = vmul.f32 %v1468, %v1484
    %1488 = vrot.lane.b32.xlu0 %v1486, 32
    %v1489 = vpop.permute.xlu0 %1488
    %v1490 = vsel %vm415, %v1489, 0
    %1492 = vmatpush.msra.mxu0 0.0
    %1493 = vmatpush.msra.mxu0 0.0
    %1494 = vmatpush.msra.mxu0 0.0
    %1495 = vmatpush.msra.mxu0 0.0
    %1496 = vmatpush.msra.mxu0 0.0
    %1497 = vmatpush.msra.mxu0 0.0
    %1498 = vmatpush.msra.mxu0 0.0
    %1499 = vmatpush.msra.mxu0 0.0
    %1500 = vmatpush.msra.mxu0 0.0
    %1501 = vmatpush.msra.mxu0 0.0
    %1502 = vmatpush.msra.mxu0 0.0
    %1503 = vmatpush.msra.mxu0 0.0
    %1504 = vmatpush.msra.mxu0 %v404
    %1505 = vmatpush.msra.mxu0 %v403
    %1506 = vmatpush.msra.mxu0 %v402
    %1507 = vmatpush.msra.mxu0 %v401
    %1508 = vmatmul.f32.gmra.mxu0 %v1490
    %v1509 = vpop.f32.mrf.mxu0
    %v1510 = vadd.f32 0.0, %v1509
    %1511 = vdwg.mxu0
    %v1512 = vadd.f32 %v1425, %v1510
    %v1513 = vtanh.pop %v1512
    %1515 = vset.pattern.permute.xlu0 0
    %1516 = vperm.xlu0 %1515, %v333
    %v1517 = vpop.permute.xlu0 %1516
    %v1519 = vmul.f32 %v1512, %v1517
    %1521 = vrot.lane.b32.xlu0 %v1512, 96
    %v1522 = vpop.permute.xlu0 %1521
    %v1524 = vadd.f32 %v1519, %v1522
    %v1525 = vxor.u32 %v1524, 2147483648
    %v1526 = vmul.f32 %v1525, 1.442695
    %v1527 = vpow.pop %v1526
    %v1528 = vadd.f32 %v1527, 1.0
    %v1529 = vrcp.pop %v1528
    %v1530 = vmul.f32 %v1528, %v1529
    %v1531 = vsub.f32 1.0, %v1530
    %v1532 = vmul.f32 %v1529, %v1531
    %v1533 = vadd.f32 %v1529, %v1532
    %vm1534 = vweird.f32 %v1528
    %vm1535 = vweird.f32 %v1529
    %vm1536 = vmor %vm1534, %vm1535
    %v1537 = vsel %vm1536, %v1529, %v1533
    %v1538 = vand.u32 2147483647, %v1528
    %vm1539 = vcmp.eq.f32.partialorder %v1538, 8.507059e+37
    %v1540 = vand.u32 %v1528, 2147483648
    %v1541 = vor.u32 1.1754944e-38, %v1540
    %v1542 = vsel %vm1539, %v1541, %v1537
    %v1543 = vmul.f32 1.0, %v1542
    %v1544 = vsub.f32 1.0, %v1543
    %1546 = vrot.lane.b32.xlu0 %v1544, 64
    %v1547 = vpop.permute.xlu0 %1546
    %v1549 = vmul.f32 %v1513, %v1547
    %1551 = vrot.lane.b32.xlu0 %v1513, 32
    %v1552 = vpop.permute.xlu0 %1551
    %v1554 = vmul.f32 %v1543, %v1552
    %1556 = vrot.lane.b32.xlu0 %v1554, 64
    %v1557 = vpop.permute.xlu0 %1556
    %v1559 = vadd.f32 %v1549, %v1557
    %vm1560 = vcmask 254976
    %1561 = vst.msk [vmem:[%s79] sm:$0x3] %vm1560, %v1559
    %1563 = vrot.lane.b32.xlu0 %v1480, 96
    %v1564 = vpop.permute.xlu0 %1563
    %1566 = vst.msk [vmem:[%s83] sm:$0x3] %vm1560, %v1564
    %v1567 = vrot.slane %v695, 7
    %v1569 = vrot.slane %v839, 6
    %v1571 = vrot.slane %v983, 5
    %v1573 = vrot.slane %v1127, 4
    %v1575 = vrot.slane %v1271, 3
    %v1577 = vrot.slane %v1415, 2
    %v1580 = vrot.slane %v1559, 1
    %v1582 = vsel %vm298, %v553, %v1567
    %vm1583 = vcmask 1041408
    %v1584 = vsel %vm1583, %v1582, %v1569
    %vm1585 = vcmask 1042432
    %v1586 = vsel %vm1585, %v1584, %v1571
    %vm1587 = vcmask 1043456
    %v1588 = vsel %vm1587, %v1586, %v1573
    %vm1589 = vcmask 1044480
    %v1590 = vsel %vm1589, %v1588, %v1575
    %vm1591 = vcmask 1045504
    %v1592 = vsel %vm1591, %v1590, %v1577
    %vm1593 = vcmask 1046528
    %v1594 = vsel %vm1593, %v1592, %v1580
    %v1595 = vrot.slane %v553, 1
    %v1597 = vrot.slane %v839, 7
    %v1599 = vrot.slane %v983, 6
    %v1601 = vrot.slane %v1127, 5
    %v1603 = vrot.slane %v1271, 4
    %v1605 = vrot.slane %v1415, 3
    %v1607 = vrot.slane %v1559, 2
    %v1609 = vsel %vm298, %v1595, %v695
    %v1610 = vsel %vm1583, %v1609, %v1597
    %v1611 = vsel %vm1585, %v1610, %v1599
    %v1612 = vsel %vm1587, %v1611, %v1601
    %v1613 = vsel %vm1589, %v1612, %v1603
    %v1614 = vsel %vm1591, %v1613, %v1605
    %v1615 = vsel %vm1593, %v1614, %v1607
    %v1616 = vld [vmem:[%s17] sm:$0xff]
    %v1617 = vld [vmem:[%s17 + $0x8] sm:$0xff]
    %v1618 = vld [vmem:[%s19] sm:$0x1]
    %v1620 = vperm.slane %v1618, 0
    %vm1622 = vcmask 130048
    %v1624 = vsel %vm1622, %v1594, 0
    %v1627 = vsel %vm1622, %v1615, 0
    %1629 = vmatpush.msra.mxu0 0.0
    %1630 = vmatpush.msra.mxu0 0.0
    %1631 = vmatpush.msra.mxu0 0.0
    %1632 = vmatpush.msra.mxu0 0.0
    %1633 = vmatpush.msra.mxu0 0.0
    %1634 = vmatpush.msra.mxu0 0.0
    %1635 = vmatpush.msra.mxu0 0.0
    %1636 = vmatpush.msra.mxu0 0.0
    %1637 = vmatpush.msra.mxu0 0.0
    %1638 = vmatpush.msra.mxu0 0.0
    %1639 = vmatpush.msra.mxu0 0.0
    %1640 = vmatpush.msra.mxu0 0.0
    %1641 = vmatpush.msra.mxu0 0.0
    %1642 = vmatpush.msra.mxu0 0.0
    %1643 = vmatpush.msra.mxu0 %v1617
    %1644 = vmatpush.msra.mxu0 %v1616
    %1645 = vmatmul.f32.gmra.mxu0 %v1624
    %v1646 = vpop.f32.mrf.mxu0
    %v1647 = vadd.f32 %v1620, %v1646
    %1648 = vmatmul.f32.gmra.mxu0 %v1627
    %v1649 = vpop.f32.mrf.mxu0
    %v1650 = vadd.f32 %v1620, %v1649
    %1651 = vdwg.mxu0
    %v1652 = vld [vmem:[#allocation2] sm:$0xff]
    %v1653 = vld [vmem:[#allocation2 + $0x8] sm:$0xff]
    %v1654 = vld [vmem:[%s23] sm:$0x1]
    %v1656 = vperm.slane %v1654, 0
    %1658 = vmatpush.msra.mxu0 0.0
    %1659 = vmatpush.msra.mxu0 0.0
    %1660 = vmatpush.msra.mxu0 0.0
    %1661 = vmatpush.msra.mxu0 0.0
    %1662 = vmatpush.msra.mxu0 0.0
    %1663 = vmatpush.msra.mxu0 0.0
    %1664 = vmatpush.msra.mxu0 0.0
    %1665 = vmatpush.msra.mxu0 0.0
    %1666 = vmatpush.msra.mxu0 0.0
    %1667 = vmatpush.msra.mxu0 0.0
    %1668 = vmatpush.msra.mxu0 0.0
    %1669 = vmatpush.msra.mxu0 0.0
    %1670 = vmatpush.msra.mxu0 0.0
    %1671 = vmatpush.msra.mxu0 0.0
    %1672 = vmatpush.msra.mxu0 %v1653
    %1673 = vmatpush.msra.mxu0 %v1652
    %1674 = vmatmul.f32.gmra.mxu0 %v1624
    %v1675 = vpop.f32.mrf.mxu0
    %v1676 = vadd.f32 %v1656, %v1675
    %1677 = vmatmul.f32.gmra.mxu0 %v1627
    %v1678 = vpop.f32.mrf.mxu0
    %v1679 = vadd.f32 %v1656, %v1678
    %1680 = vdwg.mxu0
    %v1681 = vld [vmem:[#allocation5] sm:$0xff]
    %v1682 = vld [vmem:[#allocation5 + $0x8] sm:$0xff]
    %v1683 = vld [vmem:[%s27] sm:$0x1]
    %v1685 = vperm.slane %v1683, 0
    %1687 = vmatpush.msra.mxu0 0.0
    %1688 = vmatpush.msra.mxu0 0.0
    %1689 = vmatpush.msra.mxu0 0.0
    %1690 = vmatpush.msra.mxu0 0.0
    %1691 = vmatpush.msra.mxu0 0.0
    %1692 = vmatpush.msra.mxu0 0.0
    %1693 = vmatpush.msra.mxu0 0.0
    %1694 = vmatpush.msra.mxu0 0.0
    %1695 = vmatpush.msra.mxu0 0.0
    %1696 = vmatpush.msra.mxu0 0.0
    %1697 = vmatpush.msra.mxu0 0.0
    %1698 = vmatpush.msra.mxu0 0.0
    %1699 = vmatpush.msra.mxu0 0.0
    %1700 = vmatpush.msra.mxu0 0.0
    %1701 = vmatpush.msra.mxu0 %v1682
    %1702 = vmatpush.msra.mxu0 %v1681
    %1703 = vmatmul.f32.gmra.mxu0 %v1624
    %v1704 = vpop.f32.mrf.mxu0
    %v1705 = vadd.f32 %v1685, %v1704
    %1706 = vmatmul.f32.gmra.mxu0 %v1627
    %v1707 = vpop.f32.mrf.mxu0
    %v1708 = vadd.f32 %v1685, %v1707
    %1709 = vdwg.mxu0
    %v1711 = vsel %vm344, %v1647, 0
    %v1714 = vsel %vm344, %v1676, 0
    %1716 = vmatpush.xpose.msra.mxu0 0.0
    %1717 = vmatpush.xpose.msra.mxu0 0.0
    %1718 = vmatpush.xpose.msra.mxu0 0.0
    %1719 = vmatpush.xpose.msra.mxu0 0.0
    %1720 = vmatpush.xpose.msra.mxu0 0.0
    %1721 = vmatpush.xpose.msra.mxu0 0.0
    %1722 = vmatpush.xpose.msra.mxu0 0.0
    %1723 = vmatpush.xpose.msra.mxu0 0.0
    %1724 = vmatpush.xpose.msra.mxu0 0.0
    %1725 = vmatpush.xpose.msra.mxu0 0.0
    %1726 = vmatpush.xpose.msra.mxu0 0.0
    %1727 = vmatpush.xpose.msra.mxu0 0.0
    %1728 = vmatpush.xpose.msra.mxu0 0.0
    %1729 = vmatpush.xpose.msra.mxu0 0.0
    %1730 = vmatpush.xpose.msra.mxu0 0.0
    %1731 = vmatpush.xpose.msra.mxu0 %v1714
    %1732 = vmatmul.f32.gmra.mxu0 %v1711
    %v1733 = vpop.f32.mrf.mxu0
    %v1734 = vadd.f32 0.0, %v1733
    %1735 = vdwg.mxu0
    %v1736 = vmul.f32 %v1734, 0.35355338
    %v1737 = vsel %vm344, %v1736, -inf
    %1738 = vmax.xlane.f32.xlu0 %v1737
    %v1739 = vpop.xlane.xlu0 %1738
    %v1740 = vsub.f32 %v1736, %v1739
    %v1741 = vmul.f32 %v1740, 1.442695
    %v1742 = vpow.pop %v1741
    %v1743 = vsel %vm344, %v1742, 0.0
    %1744 = vadd.xlane.f32.xlu0 %v1743
    %v1745 = vpop.xlane.xlu0 %1744
    %v1746 = vrcp.pop %v1745
    %v1747 = vmul.f32 %v1745, %v1746
    %v1748 = vsub.f32 1.0, %v1747
    %v1749 = vmul.f32 %v1746, %v1748
    %v1750 = vadd.f32 %v1746, %v1749
    %vm1751 = vweird.f32 %v1745
    %vm1752 = vweird.f32 %v1746
    %vm1753 = vmor %vm1751, %vm1752
    %v1754 = vsel %vm1753, %v1746, %v1750
    %v1755 = vand.u32 2147483647, %v1745
    %vm1756 = vcmp.eq.f32.partialorder %v1755, 8.507059e+37
    %v1757 = vand.u32 %v1745, 2147483648
    %v1758 = vor.u32 1.1754944e-38, %v1757
    %v1759 = vsel %vm1756, %v1758, %v1754
    %v1760 = vmul.f32 %v1742, %v1759
    %v1762 = vsel %vm344, %v1760, 0
    %1764 = vmatpush.msra.mxu0 0.0
    %1765 = vmatpush.msra.mxu0 0.0
    %1766 = vmatpush.msra.mxu0 0.0
    %1767 = vmatpush.msra.mxu0 0.0
    %1768 = vmatpush.msra.mxu0 0.0
    %1769 = vmatpush.msra.mxu0 0.0
    %1770 = vmatpush.msra.mxu0 0.0
    %1771 = vmatpush.msra.mxu0 0.0
    %1772 = vmatpush.msra.mxu0 0.0
    %1773 = vmatpush.msra.mxu0 0.0
    %1774 = vmatpush.msra.mxu0 0.0
    %1775 = vmatpush.msra.mxu0 0.0
    %1776 = vmatpush.msra.mxu0 0.0
    %1777 = vmatpush.msra.mxu0 0.0
    %1778 = vmatpush.msra.mxu0 0.0
    %1779 = vmatpush.msra.mxu0 %v1705
    %1780 = vmatmul.f32.gmra.mxu0 %v1762
    %v1781 = vpop.f32.mrf.mxu0
    %v1782 = vadd.f32 0.0, %v1781
    %1783 = vdwg.mxu0
    %1784 = vrot.lane.b32.xlu0 %v1647, 120
    %v1785 = vpop.permute.xlu0 %1784
    %1786 = vrot.lane.b32.xlu0 %v1676, 120
    %v1787 = vpop.permute.xlu0 %1786
    %v1788 = vsel %vm344, %v1785, 0
    %v1790 = vsel %vm344, %v1787, 0
    %1792 = vmatpush.xpose.msra.mxu0 0.0
    %1793 = vmatpush.xpose.msra.mxu0 0.0
    %1794 = vmatpush.xpose.msra.mxu0 0.0
    %1795 = vmatpush.xpose.msra.mxu0 0.0
    %1796 = vmatpush.xpose.msra.mxu0 0.0
    %1797 = vmatpush.xpose.msra.mxu0 0.0
    %1798 = vmatpush.xpose.msra.mxu0 0.0
    %1799 = vmatpush.xpose.msra.mxu0 0.0
    %1800 = vmatpush.xpose.msra.mxu0 0.0
    %1801 = vmatpush.xpose.msra.mxu0 0.0
    %1802 = vmatpush.xpose.msra.mxu0 0.0
    %1803 = vmatpush.xpose.msra.mxu0 0.0
    %1804 = vmatpush.xpose.msra.mxu0 0.0
    %1805 = vmatpush.xpose.msra.mxu0 0.0
    %1806 = vmatpush.xpose.msra.mxu0 0.0
    %1807 = vmatpush.xpose.msra.mxu0 %v1790
    %1808 = vmatmul.f32.gmra.mxu0 %v1788
    %v1809 = vpop.f32.mrf.mxu0
    %v1810 = vadd.f32 0.0, %v1809
    %1811 = vdwg.mxu0
    %v1812 = vmul.f32 %v1810, 0.35355338
    %v1813 = vsel %vm344, %v1812, -inf
    %1814 = vmax.xlane.f32.xlu0 %v1813
    %v1815 = vpop.xlane.xlu0 %1814
    %v1816 = vsub.f32 %v1812, %v1815
    %v1817 = vmul.f32 %v1816, 1.442695
    %v1818 = vpow.pop %v1817
    %v1819 = vsel %vm344, %v1818, 0.0
    %1820 = vadd.xlane.f32.xlu0 %v1819
    %v1821 = vpop.xlane.xlu0 %1820
    %v1822 = vrcp.pop %v1821
    %v1823 = vmul.f32 %v1821, %v1822
    %v1824 = vsub.f32 1.0, %v1823
    %v1825 = vmul.f32 %v1822, %v1824
    %v1826 = vadd.f32 %v1822, %v1825
    %vm1827 = vweird.f32 %v1821
    %vm1828 = vweird.f32 %v1822
    %vm1829 = vmor %vm1827, %vm1828
    %v1830 = vsel %vm1829, %v1822, %v1826
    %v1831 = vand.u32 2147483647, %v1821
    %vm1832 = vcmp.eq.f32.partialorder %v1831, 8.507059e+37
    %v1833 = vand.u32 %v1821, 2147483648
    %v1834 = vor.u32 1.1754944e-38, %v1833
    %v1835 = vsel %vm1832, %v1834, %v1830
    %v1836 = vmul.f32 %v1818, %v1835
    %1838 = vrot.lane.b32.xlu0 %v1705, 120
    %v1839 = vpop.permute.xlu0 %1838
    %v1842 = vsel %vm344, %v1836, 0
    %1844 = vmatpush.msra.mxu0 0.0
    %1845 = vmatpush.msra.mxu0 0.0
    %1846 = vmatpush.msra.mxu0 0.0
    %1847 = vmatpush.msra.mxu0 0.0
    %1848 = vmatpush.msra.mxu0 0.0
    %1849 = vmatpush.msra.mxu0 0.0
    %1850 = vmatpush.msra.mxu0 0.0
    %1851 = vmatpush.msra.mxu0 0.0
    %1852 = vmatpush.msra.mxu0 0.0
    %1853 = vmatpush.msra.mxu0 0.0
    %1854 = vmatpush.msra.mxu0 0.0
    %1855 = vmatpush.msra.mxu0 0.0
    %1856 = vmatpush.msra.mxu0 0.0
    %1857 = vmatpush.msra.mxu0 0.0
    %1858 = vmatpush.msra.mxu0 0.0
    %1859 = vmatpush.msra.mxu0 %v1839
    %1860 = vmatmul.f32.gmra.mxu0 %v1842
    %v1861 = vpop.f32.mrf.mxu0
    %v1862 = vadd.f32 0.0, %v1861
    %1863 = vdwg.mxu0
    %1865 = vrot.lane.b32.xlu0 %v1862, 8
    %v1866 = vpop.permute.xlu0 %1865
    %v1868 = vsel %vm344, %v1782, %v1866
    %v1870 = vsel %vm344, %v1650, 0
    %v1873 = vsel %vm344, %v1679, 0
    %1875 = vmatpush.xpose.msra.mxu0 0.0
    %1876 = vmatpush.xpose.msra.mxu0 0.0
    %1877 = vmatpush.xpose.msra.mxu0 0.0
    %1878 = vmatpush.xpose.msra.mxu0 0.0
    %1879 = vmatpush.xpose.msra.mxu0 0.0
    %1880 = vmatpush.xpose.msra.mxu0 0.0
    %1881 = vmatpush.xpose.msra.mxu0 0.0
    %1882 = vmatpush.xpose.msra.mxu0 0.0
    %1883 = vmatpush.xpose.msra.mxu0 0.0
    %1884 = vmatpush.xpose.msra.mxu0 0.0
    %1885 = vmatpush.xpose.msra.mxu0 0.0
    %1886 = vmatpush.xpose.msra.mxu0 0.0
    %1887 = vmatpush.xpose.msra.mxu0 0.0
    %1888 = vmatpush.xpose.msra.mxu0 0.0
    %1889 = vmatpush.xpose.msra.mxu0 0.0
    %1890 = vmatpush.xpose.msra.mxu0 %v1873
    %1891 = vmatmul.f32.gmra.mxu0 %v1870
    %v1892 = vpop.f32.mrf.mxu0
    %v1893 = vadd.f32 0.0, %v1892
    %1894 = vdwg.mxu0
    %v1895 = vmul.f32 %v1893, 0.35355338
    %v1896 = vsel %vm344, %v1895, -inf
    %1897 = vmax.xlane.f32.xlu0 %v1896
    %v1898 = vpop.xlane.xlu0 %1897
    %v1899 = vsub.f32 %v1895, %v1898
    %v1900 = vmul.f32 %v1899, 1.442695
    %v1901 = vpow.pop %v1900
    %v1902 = vsel %vm344, %v1901, 0.0
    %1903 = vadd.xlane.f32.xlu0 %v1902
    %v1904 = vpop.xlane.xlu0 %1903
    %v1905 = vrcp.pop %v1904
    %v1906 = vmul.f32 %v1904, %v1905
    %v1907 = vsub.f32 1.0, %v1906
    %v1908 = vmul.f32 %v1905, %v1907
    %v1909 = vadd.f32 %v1905, %v1908
    %vm1910 = vweird.f32 %v1904
    %vm1911 = vweird.f32 %v1905
    %vm1912 = vmor %vm1910, %vm1911
    %v1913 = vsel %vm1912, %v1905, %v1909
    %v1914 = vand.u32 2147483647, %v1904
    %vm1915 = vcmp.eq.f32.partialorder %v1914, 8.507059e+37
    %v1916 = vand.u32 %v1904, 2147483648
    %v1917 = vor.u32 1.1754944e-38, %v1916
    %v1918 = vsel %vm1915, %v1917, %v1913
    %v1919 = vmul.f32 %v1901, %v1918
    %v1921 = vsel %vm344, %v1919, 0
    %1923 = vmatpush.msra.mxu0 0.0
    %1924 = vmatpush.msra.mxu0 0.0
    %1925 = vmatpush.msra.mxu0 0.0
    %1926 = vmatpush.msra.mxu0 0.0
    %1927 = vmatpush.msra.mxu0 0.0
    %1928 = vmatpush.msra.mxu0 0.0
    %1929 = vmatpush.msra.mxu0 0.0
    %1930 = vmatpush.msra.mxu0 0.0
    %1931 = vmatpush.msra.mxu0 0.0
    %1932 = vmatpush.msra.mxu0 0.0
    %1933 = vmatpush.msra.mxu0 0.0
    %1934 = vmatpush.msra.mxu0 0.0
    %1935 = vmatpush.msra.mxu0 0.0
    %1936 = vmatpush.msra.mxu0 0.0
    %1937 = vmatpush.msra.mxu0 0.0
    %1938 = vmatpush.msra.mxu0 %v1708
    %1939 = vmatmul.f32.gmra.mxu0 %v1921
    %v1940 = vpop.f32.mrf.mxu0
    %v1941 = vadd.f32 0.0, %v1940
    %1942 = vdwg.mxu0
    %1943 = vrot.lane.b32.xlu0 %v1650, 120
    %v1944 = vpop.permute.xlu0 %1943
    %1945 = vrot.lane.b32.xlu0 %v1679, 120
    %v1946 = vpop.permute.xlu0 %1945
    %v1947 = vsel %vm344, %v1944, 0
    %v1949 = vsel %vm344, %v1946, 0
    %1951 = vmatpush.xpose.msra.mxu0 0.0
    %1952 = vmatpush.xpose.msra.mxu0 0.0
    %1953 = vmatpush.xpose.msra.mxu0 0.0
    %1954 = vmatpush.xpose.msra.mxu0 0.0
    %1955 = vmatpush.xpose.msra.mxu0 0.0
    %1956 = vmatpush.xpose.msra.mxu0 0.0
    %1957 = vmatpush.xpose.msra.mxu0 0.0
    %1958 = vmatpush.xpose.msra.mxu0 0.0
    %1959 = vmatpush.xpose.msra.mxu0 0.0
    %1960 = vmatpush.xpose.msra.mxu0 0.0
    %1961 = vmatpush.xpose.msra.mxu0 0.0
    %1962 = vmatpush.xpose.msra.mxu0 0.0
    %1963 = vmatpush.xpose.msra.mxu0 0.0
    %1964 = vmatpush.xpose.msra.mxu0 0.0
    %1965 = vmatpush.xpose.msra.mxu0 0.0
    %1966 = vmatpush.xpose.msra.mxu0 %v1949
    %1967 = vmatmul.f32.gmra.mxu0 %v1947
    %v1968 = vpop.f32.mrf.mxu0
    %v1969 = vadd.f32 0.0, %v1968
    %1970 = vdwg.mxu0
    %v1971 = vmul.f32 %v1969, 0.35355338
    %v1972 = vsel %vm344, %v1971, -inf
    %1973 = vmax.xlane.f32.xlu0 %v1972
    %v1974 = vpop.xlane.xlu0 %1973
    %v1975 = vsub.f32 %v1971, %v1974
    %v1976 = vmul.f32 %v1975, 1.442695
    %v1977 = vpow.pop %v1976
    %v1978 = vsel %vm344, %v1977, 0.0
    %1979 = vadd.xlane.f32.xlu0 %v1978
    %v1980 = vpop.xlane.xlu0 %1979
    %v1981 = vrcp.pop %v1980
    %v1982 = vmul.f32 %v1980, %v1981
    %v1983 = vsub.f32 1.0, %v1982
    %v1984 = vmul.f32 %v1981, %v1983
    %v1985 = vadd.f32 %v1981, %v1984
    %vm1986 = vweird.f32 %v1980
    %vm1987 = vweird.f32 %v1981
    %vm1988 = vmor %vm1986, %vm1987
    %v1989 = vsel %vm1988, %v1981, %v1985
    %v1990 = vand.u32 2147483647, %v1980
    %vm1991 = vcmp.eq.f32.partialorder %v1990, 8.507059e+37
    %v1992 = vand.u32 %v1980, 2147483648
    %v1993 = vor.u32 1.1754944e-38, %v1992
    %v1994 = vsel %vm1991, %v1993, %v1989
    %v1995 = vmul.f32 %v1977, %v1994
    %1997 = vrot.lane.b32.xlu0 %v1708, 120
    %v1998 = vpop.permute.xlu0 %1997
    %v2001 = vsel %vm344, %v1995, 0
    %2003 = vmatpush.msra.mxu0 0.0
    %2004 = vmatpush.msra.mxu0 0.0
    %2005 = vmatpush.msra.mxu0 0.0
    %2006 = vmatpush.msra.mxu0 0.0
    %2007 = vmatpush.msra.mxu0 0.0
    %2008 = vmatpush.msra.mxu0 0.0
    %2009 = vmatpush.msra.mxu0 0.0
    %2010 = vmatpush.msra.mxu0 0.0
    %2011 = vmatpush.msra.mxu0 0.0
    %2012 = vmatpush.msra.mxu0 0.0
    %2013 = vmatpush.msra.mxu0 0.0
    %2014 = vmatpush.msra.mxu0 0.0
    %2015 = vmatpush.msra.mxu0 0.0
    %2016 = vmatpush.msra.mxu0 0.0
    %2017 = vmatpush.msra.mxu0 0.0
    %2018 = vmatpush.msra.mxu0 %v1998
    %2019 = vmatmul.f32.gmra.mxu0 %v2001
    %v2020 = vpop.f32.mrf.mxu0
    %v2021 = vadd.f32 0.0, %v2020
    %2022 = vdwg.mxu0
    %2024 = vrot.lane.b32.xlu0 %v2021, 8
    %v2025 = vpop.permute.xlu0 %2024
    %v2027 = vsel %vm344, %v1941, %v2025
    %v2028 = vld [vmem:[#allocation7] sm:$0xff]
    %v2029 = vld [vmem:[#allocation7 + $0x8] sm:$0xff]
    %v2030 = vld [vmem:[%s31] sm:$0x1]
    %v2032 = vperm.slane %v2030, 0
    %v2035 = vsel %vm1622, %v1868, 0
    %v2038 = vsel %vm1622, %v2027, 0
    %2040 = vmatpush.msra.mxu0 0.0
    %2041 = vmatpush.msra.mxu0 0.0
    %2042 = vmatpush.msra.mxu0 0.0
    %2043 = vmatpush.msra.mxu0 0.0
    %2044 = vmatpush.msra.mxu0 0.0
    %2045 = vmatpush.msra.mxu0 0.0
    %2046 = vmatpush.msra.mxu0 0.0
    %2047 = vmatpush.msra.mxu0 0.0
    %2048 = vmatpush.msra.mxu0 0.0
    %2049 = vmatpush.msra.mxu0 0.0
    %2050 = vmatpush.msra.mxu0 0.0
    %2051 = vmatpush.msra.mxu0 0.0
    %2052 = vmatpush.msra.mxu0 0.0
    %2053 = vmatpush.msra.mxu0 0.0
    %2054 = vmatpush.msra.mxu0 %v2029
    %2055 = vmatpush.msra.mxu0 %v2028
    %2056 = vmatmul.f32.gmra.mxu0 %v2035
    %v2057 = vpop.f32.mrf.mxu0
    %v2058 = vadd.f32 %v2032, %v2057
    %2059 = vmatmul.f32.gmra.mxu0 %v2038
    %v2060 = vpop.f32.mrf.mxu0
    %v2061 = vadd.f32 %v2032, %v2060
    %2062 = vdwg.mxu0
    %v2063 = vld [vmem:[%s37] sm:$0xff]
    %v2064 = vld [vmem:[%s37 + $0x8] sm:$0xff]
    %v2065 = vld [vmem:[%s37 + $0x10] sm:$0xff]
    %v2066 = vld [vmem:[%s37 + $0x18] sm:$0xff]
    %v2067 = vld [vmem:[%s39] sm:$0x3]
    %v2069 = vperm.slane %v2067, 0
    %v2070 = vperm.slane %v2067, 1
    %v2074 = vsel %vm1622, %v2058, 0
    %v2077 = vsel %vm1622, %v2061, 0
    %2079 = vmatpush.msra.mxu0 0.0
    %2080 = vmatpush.msra.mxu0 0.0
    %2081 = vmatpush.msra.mxu0 0.0
    %2082 = vmatpush.msra.mxu0 0.0
    %2083 = vmatpush.msra.mxu0 0.0
    %2084 = vmatpush.msra.mxu0 0.0
    %2085 = vmatpush.msra.mxu0 0.0
    %2086 = vmatpush.msra.mxu0 0.0
    %2087 = vmatpush.msra.mxu0 0.0
    %2088 = vmatpush.msra.mxu0 0.0
    %2089 = vmatpush.msra.mxu0 0.0
    %2090 = vmatpush.msra.mxu0 0.0
    %2091 = vmatpush.msra.mxu0 0.0
    %2092 = vmatpush.msra.mxu0 0.0
    %2093 = vmatpush.msra.mxu0 %v2065
    %2094 = vmatpush.msra.mxu0 %v2063
    %2095 = vmatmul.f32.gmra.mxu0 %v2074
    %v2096 = vpop.f32.mrf.mxu0
    %v2097 = vadd.f32 %v2069, %v2096
    %2098 = vmatmul.f32.gmra.mxu0 %v2077
    %v2099 = vpop.f32.mrf.mxu0
    %v2100 = vadd.f32 %v2069, %v2099
    %2101 = vdwg.mxu0
    %2102 = vmatpush.msra.mxu0 0.0
    %2103 = vmatpush.msra.mxu0 0.0
    %2104 = vmatpush.msra.mxu0 0.0
    %2105 = vmatpush.msra.mxu0 0.0
    %2106 = vmatpush.msra.mxu0 0.0
    %2107 = vmatpush.msra.mxu0 0.0
    %2108 = vmatpush.msra.mxu0 0.0
    %2109 = vmatpush.msra.mxu0 0.0
    %2110 = vmatpush.msra.mxu0 0.0
    %2111 = vmatpush.msra.mxu0 0.0
    %2112 = vmatpush.msra.mxu0 0.0
    %2113 = vmatpush.msra.mxu0 0.0
    %2114 = vmatpush.msra.mxu0 0.0
    %2115 = vmatpush.msra.mxu0 0.0
    %2116 = vmatpush.msra.mxu0 %v2066
    %2117 = vmatpush.msra.mxu0 %v2064
    %2118 = vmatmul.f32.gmra.mxu0 %v2074
    %v2119 = vpop.f32.mrf.mxu0
    %v2120 = vadd.f32 %v2070, %v2119
    %2121 = vmatmul.f32.gmra.mxu0 %v2077
    %v2122 = vpop.f32.mrf.mxu0
    %v2123 = vadd.f32 %v2070, %v2122
    %2124 = vdwg.mxu0
    %v2125 = vld [vmem:[%s41] sm:$0xff]
    %v2126 = vld [vmem:[%s41 + $0x8] sm:$0xff]
    %v2127 = vld [vmem:[%s41 + $0x10] sm:$0xff]
    %v2128 = vld [vmem:[%s41 + $0x18] sm:$0xff]
    %v2129 = vld [vmem:[#allocation8] sm:$0xff]
    %v2130 = vld [vmem:[#allocation8 + $0x8] sm:$0xff]
    %v2131 = vld [vmem:[#allocation8 + $0x10] sm:$0xff]
    %v2132 = vld [vmem:[#allocation8 + $0x18] sm:$0xff]
    %v2133 = vld [vmem:[%s33] sm:$0x3]
    %v2134 = vld [vmem:[%s35] sm:$0x3]
    %v2137 = vrot.slane %v2100, 7
    %v2138 = vrot.slane %v2123, 7
    %v2141 = vsel %vm298, %v2097, %v2137
    %v2142 = vsel %vm298, %v2120, %v2138
    %v2144 = vsel %vm415, %v2133, 0
    %2146 = vmatpush.msra.mxu0 0.0
    %2147 = vmatpush.msra.mxu0 0.0
    %2148 = vmatpush.msra.mxu0 0.0
    %2149 = vmatpush.msra.mxu0 0.0
    %2150 = vmatpush.msra.mxu0 0.0
    %2151 = vmatpush.msra.mxu0 0.0
    %2152 = vmatpush.msra.mxu0 0.0
    %2153 = vmatpush.msra.mxu0 0.0
    %2154 = vmatpush.msra.mxu0 0.0
    %2155 = vmatpush.msra.mxu0 0.0
    %2156 = vmatpush.msra.mxu0 0.0
    %2157 = vmatpush.msra.mxu0 0.0
    %2158 = vmatpush.msra.mxu0 %v2128
    %2159 = vmatpush.msra.mxu0 %v2127
    %2160 = vmatpush.msra.mxu0 %v2126
    %2161 = vmatpush.msra.mxu0 %v2125
    %2162 = vmatmul.f32.gmra.mxu0 %v2144
    %v2163 = vpop.f32.mrf.mxu0
    %v2164 = vadd.f32 0.0, %v2163
    %2165 = vdwg.mxu0
    %v2166 = vadd.f32 %v2141, %v2164
    %v2167 = vxor.u32 %v2166, 2147483648
    %v2168 = vmul.f32 %v2167, 1.442695
    %v2169 = vpow.pop %v2168
    %v2170 = vadd.f32 %v2169, 1.0
    %v2171 = vrcp.pop %v2170
    %v2172 = vmul.f32 %v2170, %v2171
    %v2173 = vsub.f32 1.0, %v2172
    %v2174 = vmul.f32 %v2171, %v2173
    %v2175 = vadd.f32 %v2171, %v2174
    %vm2176 = vweird.f32 %v2170
    %vm2177 = vweird.f32 %v2171
    %vm2178 = vmor %vm2176, %vm2177
    %v2179 = vsel %vm2178, %v2171, %v2175
    %v2180 = vand.u32 2147483647, %v2170
    %vm2181 = vcmp.eq.f32.partialorder %v2180, 8.507059e+37
    %v2182 = vand.u32 %v2170, 2147483648
    %v2183 = vor.u32 1.1754944e-38, %v2182
    %v2184 = vsel %vm2181, %v2183, %v2179
    %v2185 = vmul.f32 1.0, %v2184
    %v2186 = vtanh.pop %v2166
    %2188 = vrot.lane.b32.xlu0 %v2134, 32
    %v2189 = vpop.permute.xlu0 %2188
    %v2191 = vmul.f32 %v2185, %v2189
    %2193 = vrot.lane.b32.xlu0 %v2186, 64
    %v2194 = vpop.permute.xlu0 %2193
    %v2196 = vmul.f32 %v2185, %v2194
    %2198 = vrot.lane.b32.xlu0 %v2196, 32
    %v2199 = vpop.permute.xlu0 %2198
    %v2201 = vadd.f32 %v2191, %v2199
    %v2202 = vtanh.pop %v2201
    %2204 = vrot.lane.b32.xlu0 %v2202, 64
    %v2205 = vpop.permute.xlu0 %2204
    %v2207 = vmul.f32 %v2185, %v2205
    %2209 = vrot.lane.b32.xlu0 %v2207, 32
    %v2210 = vpop.permute.xlu0 %2209
    %v2211 = vsel %vm415, %v2210, 0
    %2213 = vmatpush.msra.mxu0 0.0
    %2214 = vmatpush.msra.mxu0 0.0
    %2215 = vmatpush.msra.mxu0 0.0
    %2216 = vmatpush.msra.mxu0 0.0
    %2217 = vmatpush.msra.mxu0 0.0
    %2218 = vmatpush.msra.mxu0 0.0
    %2219 = vmatpush.msra.mxu0 0.0
    %2220 = vmatpush.msra.mxu0 0.0
    %2221 = vmatpush.msra.mxu0 0.0
    %2222 = vmatpush.msra.mxu0 0.0
    %2223 = vmatpush.msra.mxu0 0.0
    %2224 = vmatpush.msra.mxu0 0.0
    %2225 = vmatpush.msra.mxu0 %v2132
    %2226 = vmatpush.msra.mxu0 %v2131
    %2227 = vmatpush.msra.mxu0 %v2130
    %2228 = vmatpush.msra.mxu0 %v2129
    %2229 = vmatmul.f32.gmra.mxu0 %v2211
    %v2230 = vpop.f32.mrf.mxu0
    %v2231 = vadd.f32 0.0, %v2230
    %2232 = vdwg.mxu0
    %v2233 = vadd.f32 %v2142, %v2231
    %v2234 = vtanh.pop %v2233
    %v2235 = vmul.f32 %v2233, %v511
    %2237 = vrot.lane.b32.xlu0 %v2233, 96
    %v2238 = vpop.permute.xlu0 %2237
    %v2240 = vadd.f32 %v2235, %v2238
    %v2241 = vxor.u32 %v2240, 2147483648
    %v2242 = vmul.f32 %v2241, 1.442695
    %v2243 = vpow.pop %v2242
    %v2244 = vadd.f32 %v2243, 1.0
    %v2245 = vrcp.pop %v2244
    %v2246 = vmul.f32 %v2244, %v2245
    %v2247 = vsub.f32 1.0, %v2246
    %v2248 = vmul.f32 %v2245, %v2247
    %v2249 = vadd.f32 %v2245, %v2248
    %vm2250 = vweird.f32 %v2244
    %vm2251 = vweird.f32 %v2245
    %vm2252 = vmor %vm2250, %vm2251
    %v2253 = vsel %vm2252, %v2245, %v2249
    %v2254 = vand.u32 2147483647, %v2244
    %vm2255 = vcmp.eq.f32.partialorder %v2254, 8.507059e+37
    %v2256 = vand.u32 %v2244, 2147483648
    %v2257 = vor.u32 1.1754944e-38, %v2256
    %v2258 = vsel %vm2255, %v2257, %v2253
    %v2259 = vmul.f32 1.0, %v2258
    %v2260 = vsub.f32 1.0, %v2259
    %2262 = vrot.lane.b32.xlu0 %v2260, 64
    %v2263 = vpop.permute.xlu0 %2262
    %v2265 = vmul.f32 %v2234, %v2263
    %2267 = vrot.lane.b32.xlu0 %v2234, 32
    %v2268 = vpop.permute.xlu0 %2267
    %v2270 = vmul.f32 %v2259, %v2268
    %2272 = vrot.lane.b32.xlu0 %v2270, 64
    %v2273 = vpop.permute.xlu0 %2272
    %v2275 = vadd.f32 %v2265, %v2273
    %v2278 = vrot.slane %v2097, 1
    %v2279 = vrot.slane %v2120, 1
    %v2282 = vsel %vm298, %v2278, %v2100
    %v2283 = vsel %vm298, %v2279, %v2123
    %v2285 = vsel %vm415, %v2275, 0
    %2287 = vmatpush.msra.mxu0 0.0
    %2288 = vmatpush.msra.mxu0 0.0
    %2289 = vmatpush.msra.mxu0 0.0
    %2290 = vmatpush.msra.mxu0 0.0
    %2291 = vmatpush.msra.mxu0 0.0
    %2292 = vmatpush.msra.mxu0 0.0
    %2293 = vmatpush.msra.mxu0 0.0
    %2294 = vmatpush.msra.mxu0 0.0
    %2295 = vmatpush.msra.mxu0 0.0
    %2296 = vmatpush.msra.mxu0 0.0
    %2297 = vmatpush.msra.mxu0 0.0
    %2298 = vmatpush.msra.mxu0 0.0
    %2299 = vmatpush.msra.mxu0 %v2128
    %2300 = vmatpush.msra.mxu0 %v2127
    %2301 = vmatpush.msra.mxu0 %v2126
    %2302 = vmatpush.msra.mxu0 %v2125
    %2303 = vmatmul.f32.gmra.mxu0 %v2285
    %v2304 = vpop.f32.mrf.mxu0
    %v2305 = vadd.f32 0.0, %v2304
    %2306 = vdwg.mxu0
    %v2307 = vadd.f32 %v2282, %v2305
    %v2308 = vxor.u32 %v2307, 2147483648
    %v2309 = vmul.f32 %v2308, 1.442695
    %v2310 = vpow.pop %v2309
    %v2311 = vadd.f32 %v2310, 1.0
    %v2312 = vrcp.pop %v2311
    %v2313 = vmul.f32 %v2311, %v2312
    %v2314 = vsub.f32 1.0, %v2313
    %v2315 = vmul.f32 %v2312, %v2314
    %v2316 = vadd.f32 %v2312, %v2315
    %vm2317 = vweird.f32 %v2311
    %vm2318 = vweird.f32 %v2312
    %vm2319 = vmor %vm2317, %vm2318
    %v2320 = vsel %vm2319, %v2312, %v2316
    %v2321 = vand.u32 2147483647, %v2311
    %vm2322 = vcmp.eq.f32.partialorder %v2321, 8.507059e+37
    %v2323 = vand.u32 %v2311, 2147483648
    %v2324 = vor.u32 1.1754944e-38, %v2323
    %v2325 = vsel %vm2322, %v2324, %v2320
    %v2326 = vmul.f32 1.0, %v2325
    %v2327 = vtanh.pop %v2307
    %v2328 = vmul.f32 %v2326, %v2201
    %2330 = vrot.lane.b32.xlu0 %v2327, 64
    %v2331 = vpop.permute.xlu0 %2330
    %v2333 = vmul.f32 %v2326, %v2331
    %2335 = vrot.lane.b32.xlu0 %v2333, 32
    %v2336 = vpop.permute.xlu0 %2335
    %v2338 = vadd.f32 %v2328, %v2336
    %v2339 = vtanh.pop %v2338
    %2341 = vrot.lane.b32.xlu0 %v2339, 64
    %v2342 = vpop.permute.xlu0 %2341
    %v2344 = vmul.f32 %v2326, %v2342
    %2346 = vrot.lane.b32.xlu0 %v2344, 32
    %v2347 = vpop.permute.xlu0 %2346
    %v2348 = vsel %vm415, %v2347, 0
    %2350 = vmatpush.msra.mxu0 0.0
    %2351 = vmatpush.msra.mxu0 0.0
    %2352 = vmatpush.msra.mxu0 0.0
    %2353 = vmatpush.msra.mxu0 0.0
    %2354 = vmatpush.msra.mxu0 0.0
    %2355 = vmatpush.msra.mxu0 0.0
    %2356 = vmatpush.msra.mxu0 0.0
    %2357 = vmatpush.msra.mxu0 0.0
    %2358 = vmatpush.msra.mxu0 0.0
    %2359 = vmatpush.msra.mxu0 0.0
    %2360 = vmatpush.msra.mxu0 0.0
    %2361 = vmatpush.msra.mxu0 0.0
    %2362 = vmatpush.msra.mxu0 %v2132
    %2363 = vmatpush.msra.mxu0 %v2131
    %2364 = vmatpush.msra.mxu0 %v2130
    %2365 = vmatpush.msra.mxu0 %v2129
    %2366 = vmatmul.f32.gmra.mxu0 %v2348
    %v2367 = vpop.f32.mrf.mxu0
    %v2368 = vadd.f32 0.0, %v2367
    %2369 = vdwg.mxu0
    %v2370 = vadd.f32 %v2283, %v2368
    %v2371 = vtanh.pop %v2370
    %v2372 = vmul.f32 %v2370, %v653
    %2374 = vrot.lane.b32.xlu0 %v2370, 96
    %v2375 = vpop.permute.xlu0 %2374
    %v2377 = vadd.f32 %v2372, %v2375
    %v2378 = vxor.u32 %v2377, 2147483648
    %v2379 = vmul.f32 %v2378, 1.442695
    %v2380 = vpow.pop %v2379
    %v2381 = vadd.f32 %v2380, 1.0
    %v2382 = vrcp.pop %v2381
    %v2383 = vmul.f32 %v2381, %v2382
    %v2384 = vsub.f32 1.0, %v2383
    %v2385 = vmul.f32 %v2382, %v2384
    %v2386 = vadd.f32 %v2382, %v2385
    %vm2387 = vweird.f32 %v2381
    %vm2388 = vweird.f32 %v2382
    %vm2389 = vmor %vm2387, %vm2388
    %v2390 = vsel %vm2389, %v2382, %v2386
    %v2391 = vand.u32 2147483647, %v2381
    %vm2392 = vcmp.eq.f32.partialorder %v2391, 8.507059e+37
    %v2393 = vand.u32 %v2381, 2147483648
    %v2394 = vor.u32 1.1754944e-38, %v2393
    %v2395 = vsel %vm2392, %v2394, %v2390
    %v2396 = vmul.f32 1.0, %v2395
    %v2397 = vsub.f32 1.0, %v2396
    %2399 = vrot.lane.b32.xlu0 %v2397, 64
    %v2400 = vpop.permute.xlu0 %2399
    %v2402 = vmul.f32 %v2371, %v2400
    %2404 = vrot.lane.b32.xlu0 %v2371, 32
    %v2405 = vpop.permute.xlu0 %2404
    %v2407 = vmul.f32 %v2396, %v2405
    %2409 = vrot.lane.b32.xlu0 %v2407, 64
    %v2410 = vpop.permute.xlu0 %2409
    %v2412 = vadd.f32 %v2402, %v2410
    %v2413 = vrot.slane %v2097, 2
    %v2414 = vrot.slane %v2120, 2
    %v2417 = vrot.slane %v2100, 1
    %v2418 = vrot.slane %v2123, 1
    %v2421 = vsel %vm298, %v2413, %v2417
    %v2422 = vsel %vm298, %v2414, %v2418
    %v2424 = vsel %vm415, %v2412, 0
    %2426 = vmatpush.msra.mxu0 0.0
    %2427 = vmatpush.msra.mxu0 0.0
    %2428 = vmatpush.msra.mxu0 0.0
    %2429 = vmatpush.msra.mxu0 0.0
    %2430 = vmatpush.msra.mxu0 0.0
    %2431 = vmatpush.msra.mxu0 0.0
    %2432 = vmatpush.msra.mxu0 0.0
    %2433 = vmatpush.msra.mxu0 0.0
    %2434 = vmatpush.msra.mxu0 0.0
    %2435 = vmatpush.msra.mxu0 0.0
    %2436 = vmatpush.msra.mxu0 0.0
    %2437 = vmatpush.msra.mxu0 0.0
    %2438 = vmatpush.msra.mxu0 %v2128
    %2439 = vmatpush.msra.mxu0 %v2127
    %2440 = vmatpush.msra.mxu0 %v2126
    %2441 = vmatpush.msra.mxu0 %v2125
    %2442 = vmatmul.f32.gmra.mxu0 %v2424
    %v2443 = vpop.f32.mrf.mxu0
    %v2444 = vadd.f32 0.0, %v2443
    %2445 = vdwg.mxu0
    %v2446 = vadd.f32 %v2421, %v2444
    %v2447 = vxor.u32 %v2446, 2147483648
    %v2448 = vmul.f32 %v2447, 1.442695
    %v2449 = vpow.pop %v2448
    %v2450 = vadd.f32 %v2449, 1.0
    %v2451 = vrcp.pop %v2450
    %v2452 = vmul.f32 %v2450, %v2451
    %v2453 = vsub.f32 1.0, %v2452
    %v2454 = vmul.f32 %v2451, %v2453
    %v2455 = vadd.f32 %v2451, %v2454
    %vm2456 = vweird.f32 %v2450
    %vm2457 = vweird.f32 %v2451
    %vm2458 = vmor %vm2456, %vm2457
    %v2459 = vsel %vm2458, %v2451, %v2455
    %v2460 = vand.u32 2147483647, %v2450
    %vm2461 = vcmp.eq.f32.partialorder %v2460, 8.507059e+37
    %v2462 = vand.u32 %v2450, 2147483648
    %v2463 = vor.u32 1.1754944e-38, %v2462
    %v2464 = vsel %vm2461, %v2463, %v2459
    %v2465 = vmul.f32 1.0, %v2464
    %v2466 = vtanh.pop %v2446
    %v2467 = vmul.f32 %v2465, %v2338
    %2469 = vrot.lane.b32.xlu0 %v2466, 64
    %v2470 = vpop.permute.xlu0 %2469
    %v2472 = vmul.f32 %v2465, %v2470
    %2474 = vrot.lane.b32.xlu0 %v2472, 32
    %v2475 = vpop.permute.xlu0 %2474
    %v2477 = vadd.f32 %v2467, %v2475
    %v2478 = vtanh.pop %v2477
    %2480 = vrot.lane.b32.xlu0 %v2478, 64
    %v2481 = vpop.permute.xlu0 %2480
    %v2483 = vmul.f32 %v2465, %v2481
    %2485 = vrot.lane.b32.xlu0 %v2483, 32
    %v2486 = vpop.permute.xlu0 %2485
    %v2487 = vsel %vm415, %v2486, 0
    %2489 = vmatpush.msra.mxu0 0.0
    %2490 = vmatpush.msra.mxu0 0.0
    %2491 = vmatpush.msra.mxu0 0.0
    %2492 = vmatpush.msra.mxu0 0.0
    %2493 = vmatpush.msra.mxu0 0.0
    %2494 = vmatpush.msra.mxu0 0.0
    %2495 = vmatpush.msra.mxu0 0.0
    %2496 = vmatpush.msra.mxu0 0.0
    %2497 = vmatpush.msra.mxu0 0.0
    %2498 = vmatpush.msra.mxu0 0.0
    %2499 = vmatpush.msra.mxu0 0.0
    %2500 = vmatpush.msra.mxu0 0.0
    %2501 = vmatpush.msra.mxu0 %v2132
    %2502 = vmatpush.msra.mxu0 %v2131
    %2503 = vmatpush.msra.mxu0 %v2130
    %2504 = vmatpush.msra.mxu0 %v2129
    %2505 = vmatmul.f32.gmra.mxu0 %v2487
    %v2506 = vpop.f32.mrf.mxu0
    %v2507 = vadd.f32 0.0, %v2506
    %2508 = vdwg.mxu0
    %v2509 = vadd.f32 %v2422, %v2507
    %v2510 = vtanh.pop %v2509
    %v2511 = vmul.f32 %v2509, %v797
    %2513 = vrot.lane.b32.xlu0 %v2509, 96
    %v2514 = vpop.permute.xlu0 %2513
    %v2516 = vadd.f32 %v2511, %v2514
    %v2517 = vxor.u32 %v2516, 2147483648
    %v2518 = vmul.f32 %v2517, 1.442695
    %v2519 = vpow.pop %v2518
    %v2520 = vadd.f32 %v2519, 1.0
    %v2521 = vrcp.pop %v2520
    %v2522 = vmul.f32 %v2520, %v2521
    %v2523 = vsub.f32 1.0, %v2522
    %v2524 = vmul.f32 %v2521, %v2523
    %v2525 = vadd.f32 %v2521, %v2524
    %vm2526 = vweird.f32 %v2520
    %vm2527 = vweird.f32 %v2521
    %vm2528 = vmor %vm2526, %vm2527
    %v2529 = vsel %vm2528, %v2521, %v2525
    %v2530 = vand.u32 2147483647, %v2520
    %vm2531 = vcmp.eq.f32.partialorder %v2530, 8.507059e+37
    %v2532 = vand.u32 %v2520, 2147483648
    %v2533 = vor.u32 1.1754944e-38, %v2532
    %v2534 = vsel %vm2531, %v2533, %v2529
    %v2535 = vmul.f32 1.0, %v2534
    %v2536 = vsub.f32 1.0, %v2535
    %2538 = vrot.lane.b32.xlu0 %v2536, 64
    %v2539 = vpop.permute.xlu0 %2538
    %v2541 = vmul.f32 %v2510, %v2539
    %2543 = vrot.lane.b32.xlu0 %v2510, 32
    %v2544 = vpop.permute.xlu0 %2543
    %v2546 = vmul.f32 %v2535, %v2544
    %2548 = vrot.lane.b32.xlu0 %v2546, 64
    %v2549 = vpop.permute.xlu0 %2548
    %v2551 = vadd.f32 %v2541, %v2549
    %v2552 = vrot.slane %v2097, 3
    %v2553 = vrot.slane %v2120, 3
    %v2556 = vrot.slane %v2100, 2
    %v2557 = vrot.slane %v2123, 2
    %v2560 = vsel %vm298, %v2552, %v2556
    %v2561 = vsel %vm298, %v2553, %v2557
    %v2563 = vsel %vm415, %v2551, 0
    %2565 = vmatpush.msra.mxu0 0.0
    %2566 = vmatpush.msra.mxu0 0.0
    %2567 = vmatpush.msra.mxu0 0.0
    %2568 = vmatpush.msra.mxu0 0.0
    %2569 = vmatpush.msra.mxu0 0.0
    %2570 = vmatpush.msra.mxu0 0.0
    %2571 = vmatpush.msra.mxu0 0.0
    %2572 = vmatpush.msra.mxu0 0.0
    %2573 = vmatpush.msra.mxu0 0.0
    %2574 = vmatpush.msra.mxu0 0.0
    %2575 = vmatpush.msra.mxu0 0.0
    %2576 = vmatpush.msra.mxu0 0.0
    %2577 = vmatpush.msra.mxu0 %v2128
    %2578 = vmatpush.msra.mxu0 %v2127
    %2579 = vmatpush.msra.mxu0 %v2126
    %2580 = vmatpush.msra.mxu0 %v2125
    %2581 = vmatmul.f32.gmra.mxu0 %v2563
    %v2582 = vpop.f32.mrf.mxu0
    %v2583 = vadd.f32 0.0, %v2582
    %2584 = vdwg.mxu0
    %v2585 = vadd.f32 %v2560, %v2583
    %v2586 = vxor.u32 %v2585, 2147483648
    %v2587 = vmul.f32 %v2586, 1.442695
    %v2588 = vpow.pop %v2587
    %v2589 = vadd.f32 %v2588, 1.0
    %v2590 = vrcp.pop %v2589
    %v2591 = vmul.f32 %v2589, %v2590
    %v2592 = vsub.f32 1.0, %v2591
    %v2593 = vmul.f32 %v2590, %v2592
    %v2594 = vadd.f32 %v2590, %v2593
    %vm2595 = vweird.f32 %v2589
    %vm2596 = vweird.f32 %v2590
    %vm2597 = vmor %vm2595, %vm2596
    %v2598 = vsel %vm2597, %v2590, %v2594
    %v2599 = vand.u32 2147483647, %v2589
    %vm2600 = vcmp.eq.f32.partialorder %v2599, 8.507059e+37
    %v2601 = vand.u32 %v2589, 2147483648
    %v2602 = vor.u32 1.1754944e-38, %v2601
    %v2603 = vsel %vm2600, %v2602, %v2598
    %v2604 = vmul.f32 1.0, %v2603
    %v2605 = vtanh.pop %v2585
    %v2606 = vmul.f32 %v2604, %v2477
    %2608 = vrot.lane.b32.xlu0 %v2605, 64
    %v2609 = vpop.permute.xlu0 %2608
    %v2611 = vmul.f32 %v2604, %v2609
    %2613 = vrot.lane.b32.xlu0 %v2611, 32
    %v2614 = vpop.permute.xlu0 %2613
    %v2616 = vadd.f32 %v2606, %v2614
    %v2617 = vtanh.pop %v2616
    %2619 = vrot.lane.b32.xlu0 %v2617, 64
    %v2620 = vpop.permute.xlu0 %2619
    %v2622 = vmul.f32 %v2604, %v2620
    %2624 = vrot.lane.b32.xlu0 %v2622, 32
    %v2625 = vpop.permute.xlu0 %2624
    %v2626 = vsel %vm415, %v2625, 0
    %2628 = vmatpush.msra.mxu0 0.0
    %2629 = vmatpush.msra.mxu0 0.0
    %2630 = vmatpush.msra.mxu0 0.0
    %2631 = vmatpush.msra.mxu0 0.0
    %2632 = vmatpush.msra.mxu0 0.0
    %2633 = vmatpush.msra.mxu0 0.0
    %2634 = vmatpush.msra.mxu0 0.0
    %2635 = vmatpush.msra.mxu0 0.0
    %2636 = vmatpush.msra.mxu0 0.0
    %2637 = vmatpush.msra.mxu0 0.0
    %2638 = vmatpush.msra.mxu0 0.0
    %2639 = vmatpush.msra.mxu0 0.0
    %2640 = vmatpush.msra.mxu0 %v2132
    %2641 = vmatpush.msra.mxu0 %v2131
    %2642 = vmatpush.msra.mxu0 %v2130
    %2643 = vmatpush.msra.mxu0 %v2129
    %2644 = vmatmul.f32.gmra.mxu0 %v2626
    %v2645 = vpop.f32.mrf.mxu0
    %v2646 = vadd.f32 0.0, %v2645
    %2647 = vdwg.mxu0
    %v2648 = vadd.f32 %v2561, %v2646
    %v2649 = vtanh.pop %v2648
    %v2650 = vmul.f32 %v2648, %v941
    %2652 = vrot.lane.b32.xlu0 %v2648, 96
    %v2653 = vpop.permute.xlu0 %2652
    %v2655 = vadd.f32 %v2650, %v2653
    %v2656 = vxor.u32 %v2655, 2147483648
    %v2657 = vmul.f32 %v2656, 1.442695
    %v2658 = vpow.pop %v2657
    %v2659 = vadd.f32 %v2658, 1.0
    %v2660 = vrcp.pop %v2659
    %v2661 = vmul.f32 %v2659, %v2660
    %v2662 = vsub.f32 1.0, %v2661
    %v2663 = vmul.f32 %v2660, %v2662
    %v2664 = vadd.f32 %v2660, %v2663
    %vm2665 = vweird.f32 %v2659
    %vm2666 = vweird.f32 %v2660
    %vm2667 = vmor %vm2665, %vm2666
    %v2668 = vsel %vm2667, %v2660, %v2664
    %v2669 = vand.u32 2147483647, %v2659
    %vm2670 = vcmp.eq.f32.partialorder %v2669, 8.507059e+37
    %v2671 = vand.u32 %v2659, 2147483648
    %v2672 = vor.u32 1.1754944e-38, %v2671
    %v2673 = vsel %vm2670, %v2672, %v2668
    %v2674 = vmul.f32 1.0, %v2673
    %v2675 = vsub.f32 1.0, %v2674
    %2677 = vrot.lane.b32.xlu0 %v2675, 64
    %v2678 = vpop.permute.xlu0 %2677
    %v2680 = vmul.f32 %v2649, %v2678
    %2682 = vrot.lane.b32.xlu0 %v2649, 32
    %v2683 = vpop.permute.xlu0 %2682
    %v2685 = vmul.f32 %v2674, %v2683
    %2687 = vrot.lane.b32.xlu0 %v2685, 64
    %v2688 = vpop.permute.xlu0 %2687
    %v2690 = vadd.f32 %v2680, %v2688
    %v2691 = vrot.slane %v2097, 4
    %v2692 = vrot.slane %v2120, 4
    %v2695 = vrot.slane %v2100, 3
    %v2696 = vrot.slane %v2123, 3
    %v2699 = vsel %vm298, %v2691, %v2695
    %v2700 = vsel %vm298, %v2692, %v2696
    %v2702 = vsel %vm415, %v2690, 0
    %2704 = vmatpush.msra.mxu0 0.0
    %2705 = vmatpush.msra.mxu0 0.0
    %2706 = vmatpush.msra.mxu0 0.0
    %2707 = vmatpush.msra.mxu0 0.0
    %2708 = vmatpush.msra.mxu0 0.0
    %2709 = vmatpush.msra.mxu0 0.0
    %2710 = vmatpush.msra.mxu0 0.0
    %2711 = vmatpush.msra.mxu0 0.0
    %2712 = vmatpush.msra.mxu0 0.0
    %2713 = vmatpush.msra.mxu0 0.0
    %2714 = vmatpush.msra.mxu0 0.0
    %2715 = vmatpush.msra.mxu0 0.0
    %2716 = vmatpush.msra.mxu0 %v2128
    %2717 = vmatpush.msra.mxu0 %v2127
    %2718 = vmatpush.msra.mxu0 %v2126
    %2719 = vmatpush.msra.mxu0 %v2125
    %2720 = vmatmul.f32.gmra.mxu0 %v2702
    %v2721 = vpop.f32.mrf.mxu0
    %v2722 = vadd.f32 0.0, %v2721
    %2723 = vdwg.mxu0
    %v2724 = vadd.f32 %v2699, %v2722
    %v2725 = vxor.u32 %v2724, 2147483648
    %v2726 = vmul.f32 %v2725, 1.442695
    %v2727 = vpow.pop %v2726
    %v2728 = vadd.f32 %v2727, 1.0
    %v2729 = vrcp.pop %v2728
    %v2730 = vmul.f32 %v2728, %v2729
    %v2731 = vsub.f32 1.0, %v2730
    %v2732 = vmul.f32 %v2729, %v2731
    %v2733 = vadd.f32 %v2729, %v2732
    %vm2734 = vweird.f32 %v2728
    %vm2735 = vweird.f32 %v2729
    %vm2736 = vmor %vm2734, %vm2735
    %v2737 = vsel %vm2736, %v2729, %v2733
    %v2738 = vand.u32 2147483647, %v2728
    %vm2739 = vcmp.eq.f32.partialorder %v2738, 8.507059e+37
    %v2740 = vand.u32 %v2728, 2147483648
    %v2741 = vor.u32 1.1754944e-38, %v2740
    %v2742 = vsel %vm2739, %v2741, %v2737
    %v2743 = vmul.f32 1.0, %v2742
    %v2744 = vtanh.pop %v2724
    %v2745 = vmul.f32 %v2743, %v2616
    %2747 = vrot.lane.b32.xlu0 %v2744, 64
    %v2748 = vpop.permute.xlu0 %2747
    %v2750 = vmul.f32 %v2743, %v2748
    %2752 = vrot.lane.b32.xlu0 %v2750, 32
    %v2753 = vpop.permute.xlu0 %2752
    %v2755 = vadd.f32 %v2745, %v2753
    %v2756 = vtanh.pop %v2755
    %2758 = vrot.lane.b32.xlu0 %v2756, 64
    %v2759 = vpop.permute.xlu0 %2758
    %v2761 = vmul.f32 %v2743, %v2759
    %2763 = vrot.lane.b32.xlu0 %v2761, 32
    %v2764 = vpop.permute.xlu0 %2763
    %v2765 = vsel %vm415, %v2764, 0
    %2767 = vmatpush.msra.mxu0 0.0
    %2768 = vmatpush.msra.mxu0 0.0
    %2769 = vmatpush.msra.mxu0 0.0
    %2770 = vmatpush.msra.mxu0 0.0
    %2771 = vmatpush.msra.mxu0 0.0
    %2772 = vmatpush.msra.mxu0 0.0
    %2773 = vmatpush.msra.mxu0 0.0
    %2774 = vmatpush.msra.mxu0 0.0
    %2775 = vmatpush.msra.mxu0 0.0
    %2776 = vmatpush.msra.mxu0 0.0
    %2777 = vmatpush.msra.mxu0 0.0
    %2778 = vmatpush.msra.mxu0 0.0
    %2779 = vmatpush.msra.mxu0 %v2132
    %2780 = vmatpush.msra.mxu0 %v2131
    %2781 = vmatpush.msra.mxu0 %v2130
    %2782 = vmatpush.msra.mxu0 %v2129
    %2783 = vmatmul.f32.gmra.mxu0 %v2765
    %v2784 = vpop.f32.mrf.mxu0
    %v2785 = vadd.f32 0.0, %v2784
    %2786 = vdwg.mxu0
    %v2787 = vadd.f32 %v2700, %v2785
    %v2788 = vtanh.pop %v2787
    %v2789 = vmul.f32 %v2787, %v1085
    %2791 = vrot.lane.b32.xlu0 %v2787, 96
    %v2792 = vpop.permute.xlu0 %2791
    %v2794 = vadd.f32 %v2789, %v2792
    %v2795 = vxor.u32 %v2794, 2147483648
    %v2796 = vmul.f32 %v2795, 1.442695
    %v2797 = vpow.pop %v2796
    %v2798 = vadd.f32 %v2797, 1.0
    %v2799 = vrcp.pop %v2798
    %v2800 = vmul.f32 %v2798, %v2799
    %v2801 = vsub.f32 1.0, %v2800
    %v2802 = vmul.f32 %v2799, %v2801
    %v2803 = vadd.f32 %v2799, %v2802
    %vm2804 = vweird.f32 %v2798
    %vm2805 = vweird.f32 %v2799
    %vm2806 = vmor %vm2804, %vm2805
    %v2807 = vsel %vm2806, %v2799, %v2803
    %v2808 = vand.u32 2147483647, %v2798
    %vm2809 = vcmp.eq.f32.partialorder %v2808, 8.507059e+37
    %v2810 = vand.u32 %v2798, 2147483648
    %v2811 = vor.u32 1.1754944e-38, %v2810
    %v2812 = vsel %vm2809, %v2811, %v2807
    %v2813 = vmul.f32 1.0, %v2812
    %v2814 = vsub.f32 1.0, %v2813
    %2816 = vrot.lane.b32.xlu0 %v2814, 64
    %v2817 = vpop.permute.xlu0 %2816
    %v2819 = vmul.f32 %v2788, %v2817
    %2821 = vrot.lane.b32.xlu0 %v2788, 32
    %v2822 = vpop.permute.xlu0 %2821
    %v2824 = vmul.f32 %v2813, %v2822
    %2826 = vrot.lane.b32.xlu0 %v2824, 64
    %v2827 = vpop.permute.xlu0 %2826
    %v2829 = vadd.f32 %v2819, %v2827
    %v2830 = vrot.slane %v2097, 5
    %v2831 = vrot.slane %v2120, 5
    %v2834 = vrot.slane %v2100, 4
    %v2835 = vrot.slane %v2123, 4
    %v2838 = vsel %vm298, %v2830, %v2834
    %v2839 = vsel %vm298, %v2831, %v2835
    %v2841 = vsel %vm415, %v2829, 0
    %2843 = vmatpush.msra.mxu0 0.0
    %2844 = vmatpush.msra.mxu0 0.0
    %2845 = vmatpush.msra.mxu0 0.0
    %2846 = vmatpush.msra.mxu0 0.0
    %2847 = vmatpush.msra.mxu0 0.0
    %2848 = vmatpush.msra.mxu0 0.0
    %2849 = vmatpush.msra.mxu0 0.0
    %2850 = vmatpush.msra.mxu0 0.0
    %2851 = vmatpush.msra.mxu0 0.0
    %2852 = vmatpush.msra.mxu0 0.0
    %2853 = vmatpush.msra.mxu0 0.0
    %2854 = vmatpush.msra.mxu0 0.0
    %2855 = vmatpush.msra.mxu0 %v2128
    %2856 = vmatpush.msra.mxu0 %v2127
    %2857 = vmatpush.msra.mxu0 %v2126
    %2858 = vmatpush.msra.mxu0 %v2125
    %2859 = vmatmul.f32.gmra.mxu0 %v2841
    %v2860 = vpop.f32.mrf.mxu0
    %v2861 = vadd.f32 0.0, %v2860
    %2862 = vdwg.mxu0
    %v2863 = vadd.f32 %v2838, %v2861
    %v2864 = vxor.u32 %v2863, 2147483648
    %v2865 = vmul.f32 %v2864, 1.442695
    %v2866 = vpow.pop %v2865
    %v2867 = vadd.f32 %v2866, 1.0
    %v2868 = vrcp.pop %v2867
    %v2869 = vmul.f32 %v2867, %v2868
    %v2870 = vsub.f32 1.0, %v2869
    %v2871 = vmul.f32 %v2868, %v2870
    %v2872 = vadd.f32 %v2868, %v2871
    %vm2873 = vweird.f32 %v2867
    %vm2874 = vweird.f32 %v2868
    %vm2875 = vmor %vm2873, %vm2874
    %v2876 = vsel %vm2875, %v2868, %v2872
    %v2877 = vand.u32 2147483647, %v2867
    %vm2878 = vcmp.eq.f32.partialorder %v2877, 8.507059e+37
    %v2879 = vand.u32 %v2867, 2147483648
    %v2880 = vor.u32 1.1754944e-38, %v2879
    %v2881 = vsel %vm2878, %v2880, %v2876
    %v2882 = vmul.f32 1.0, %v2881
    %v2883 = vtanh.pop %v2863
    %v2884 = vmul.f32 %v2882, %v2755
    %2886 = vrot.lane.b32.xlu0 %v2883, 64
    %v2887 = vpop.permute.xlu0 %2886
    %v2889 = vmul.f32 %v2882, %v2887
    %2891 = vrot.lane.b32.xlu0 %v2889, 32
    %v2892 = vpop.permute.xlu0 %2891
    %v2894 = vadd.f32 %v2884, %v2892
    %v2895 = vtanh.pop %v2894
    %2897 = vrot.lane.b32.xlu0 %v2895, 64
    %v2898 = vpop.permute.xlu0 %2897
    %v2900 = vmul.f32 %v2882, %v2898
    %2902 = vrot.lane.b32.xlu0 %v2900, 32
    %v2903 = vpop.permute.xlu0 %2902
    %v2904 = vsel %vm415, %v2903, 0
    %2906 = vmatpush.msra.mxu0 0.0
    %2907 = vmatpush.msra.mxu0 0.0
    %2908 = vmatpush.msra.mxu0 0.0
    %2909 = vmatpush.msra.mxu0 0.0
    %2910 = vmatpush.msra.mxu0 0.0
    %2911 = vmatpush.msra.mxu0 0.0
    %2912 = vmatpush.msra.mxu0 0.0
    %2913 = vmatpush.msra.mxu0 0.0
    %2914 = vmatpush.msra.mxu0 0.0
    %2915 = vmatpush.msra.mxu0 0.0
    %2916 = vmatpush.msra.mxu0 0.0
    %2917 = vmatpush.msra.mxu0 0.0
    %2918 = vmatpush.msra.mxu0 %v2132
    %2919 = vmatpush.msra.mxu0 %v2131
    %2920 = vmatpush.msra.mxu0 %v2130
    %2921 = vmatpush.msra.mxu0 %v2129
    %2922 = vmatmul.f32.gmra.mxu0 %v2904
    %v2923 = vpop.f32.mrf.mxu0
    %v2924 = vadd.f32 0.0, %v2923
    %2925 = vdwg.mxu0
    %v2926 = vadd.f32 %v2839, %v2924
    %v2927 = vtanh.pop %v2926
    %v2928 = vmul.f32 %v2926, %v1229
    %2930 = vrot.lane.b32.xlu0 %v2926, 96
    %v2931 = vpop.permute.xlu0 %2930
    %v2933 = vadd.f32 %v2928, %v2931
    %v2934 = vxor.u32 %v2933, 2147483648
    %v2935 = vmul.f32 %v2934, 1.442695
    %v2936 = vpow.pop %v2935
    %v2937 = vadd.f32 %v2936, 1.0
    %v2938 = vrcp.pop %v2937
    %v2939 = vmul.f32 %v2937, %v2938
    %v2940 = vsub.f32 1.0, %v2939
    %v2941 = vmul.f32 %v2938, %v2940
    %v2942 = vadd.f32 %v2938, %v2941
    %vm2943 = vweird.f32 %v2937
    %vm2944 = vweird.f32 %v2938
    %vm2945 = vmor %vm2943, %vm2944
    %v2946 = vsel %vm2945, %v2938, %v2942
    %v2947 = vand.u32 2147483647, %v2937
    %vm2948 = vcmp.eq.f32.partialorder %v2947, 8.507059e+37
    %v2949 = vand.u32 %v2937, 2147483648
    %v2950 = vor.u32 1.1754944e-38, %v2949
    %v2951 = vsel %vm2948, %v2950, %v2946
    %v2952 = vmul.f32 1.0, %v2951
    %v2953 = vsub.f32 1.0, %v2952
    %2955 = vrot.lane.b32.xlu0 %v2953, 64
    %v2956 = vpop.permute.xlu0 %2955
    %v2958 = vmul.f32 %v2927, %v2956
    %2960 = vrot.lane.b32.xlu0 %v2927, 32
    %v2961 = vpop.permute.xlu0 %2960
    %v2963 = vmul.f32 %v2952, %v2961
    %2965 = vrot.lane.b32.xlu0 %v2963, 64
    %v2966 = vpop.permute.xlu0 %2965
    %v2968 = vadd.f32 %v2958, %v2966
    %v2969 = vrot.slane %v2097, 6
    %v2970 = vrot.slane %v2120, 6
    %v2973 = vrot.slane %v2100, 5
    %v2974 = vrot.slane %v2123, 5
    %v2977 = vsel %vm298, %v2969, %v2973
    %v2978 = vsel %vm298, %v2970, %v2974
    %v2980 = vsel %vm415, %v2968, 0
    %2982 = vmatpush.msra.mxu0 0.0
    %2983 = vmatpush.msra.mxu0 0.0
    %2984 = vmatpush.msra.mxu0 0.0
    %2985 = vmatpush.msra.mxu0 0.0
    %2986 = vmatpush.msra.mxu0 0.0
    %2987 = vmatpush.msra.mxu0 0.0
    %2988 = vmatpush.msra.mxu0 0.0
    %2989 = vmatpush.msra.mxu0 0.0
    %2990 = vmatpush.msra.mxu0 0.0
    %2991 = vmatpush.msra.mxu0 0.0
    %2992 = vmatpush.msra.mxu0 0.0
    %2993 = vmatpush.msra.mxu0 0.0
    %2994 = vmatpush.msra.mxu0 %v2128
    %2995 = vmatpush.msra.mxu0 %v2127
    %2996 = vmatpush.msra.mxu0 %v2126
    %2997 = vmatpush.msra.mxu0 %v2125
    %2998 = vmatmul.f32.gmra.mxu0 %v2980
    %v2999 = vpop.f32.mrf.mxu0
    %v3000 = vadd.f32 0.0, %v2999
    %3001 = vdwg.mxu0
    %v3002 = vadd.f32 %v2977, %v3000
    %v3003 = vxor.u32 %v3002, 2147483648
    %v3004 = vmul.f32 %v3003, 1.442695
    %v3005 = vpow.pop %v3004
    %v3006 = vadd.f32 %v3005, 1.0
    %v3007 = vrcp.pop %v3006
    %v3008 = vmul.f32 %v3006, %v3007
    %v3009 = vsub.f32 1.0, %v3008
    %v3010 = vmul.f32 %v3007, %v3009
    %v3011 = vadd.f32 %v3007, %v3010
    %vm3012 = vweird.f32 %v3006
    %vm3013 = vweird.f32 %v3007
    %vm3014 = vmor %vm3012, %vm3013
    %v3015 = vsel %vm3014, %v3007, %v3011
    %v3016 = vand.u32 2147483647, %v3006
    %vm3017 = vcmp.eq.f32.partialorder %v3016, 8.507059e+37
    %v3018 = vand.u32 %v3006, 2147483648
    %v3019 = vor.u32 1.1754944e-38, %v3018
    %v3020 = vsel %vm3017, %v3019, %v3015
    %v3021 = vmul.f32 1.0, %v3020
    %v3022 = vtanh.pop %v3002
    %v3023 = vmul.f32 %v3021, %v2894
    %3025 = vrot.lane.b32.xlu0 %v3022, 64
    %v3026 = vpop.permute.xlu0 %3025
    %v3028 = vmul.f32 %v3021, %v3026
    %3030 = vrot.lane.b32.xlu0 %v3028, 32
    %v3031 = vpop.permute.xlu0 %3030
    %v3033 = vadd.f32 %v3023, %v3031
    %v3034 = vtanh.pop %v3033
    %3036 = vrot.lane.b32.xlu0 %v3034, 64
    %v3037 = vpop.permute.xlu0 %3036
    %v3039 = vmul.f32 %v3021, %v3037
    %3041 = vrot.lane.b32.xlu0 %v3039, 32
    %v3042 = vpop.permute.xlu0 %3041
    %v3043 = vsel %vm415, %v3042, 0
    %3045 = vmatpush.msra.mxu0 0.0
    %3046 = vmatpush.msra.mxu0 0.0
    %3047 = vmatpush.msra.mxu0 0.0
    %3048 = vmatpush.msra.mxu0 0.0
    %3049 = vmatpush.msra.mxu0 0.0
    %3050 = vmatpush.msra.mxu0 0.0
    %3051 = vmatpush.msra.mxu0 0.0
    %3052 = vmatpush.msra.mxu0 0.0
    %3053 = vmatpush.msra.mxu0 0.0
    %3054 = vmatpush.msra.mxu0 0.0
    %3055 = vmatpush.msra.mxu0 0.0
    %3056 = vmatpush.msra.mxu0 0.0
    %3057 = vmatpush.msra.mxu0 %v2132
    %3058 = vmatpush.msra.mxu0 %v2131
    %3059 = vmatpush.msra.mxu0 %v2130
    %3060 = vmatpush.msra.mxu0 %v2129
    %3061 = vmatmul.f32.gmra.mxu0 %v3043
    %v3062 = vpop.f32.mrf.mxu0
    %v3063 = vadd.f32 0.0, %v3062
    %3064 = vdwg.mxu0
    %v3065 = vadd.f32 %v2978, %v3063
    %v3066 = vtanh.pop %v3065
    %v3067 = vmul.f32 %v3065, %v1373
    %3069 = vrot.lane.b32.xlu0 %v3065, 96
    %v3070 = vpop.permute.xlu0 %3069
    %v3072 = vadd.f32 %v3067, %v3070
    %v3073 = vxor.u32 %v3072, 2147483648
    %v3074 = vmul.f32 %v3073, 1.442695
    %v3075 = vpow.pop %v3074
    %v3076 = vadd.f32 %v3075, 1.0
    %v3077 = vrcp.pop %v3076
    %v3078 = vmul.f32 %v3076, %v3077
    %v3079 = vsub.f32 1.0, %v3078
    %v3080 = vmul.f32 %v3077, %v3079
    %v3081 = vadd.f32 %v3077, %v3080
    %vm3082 = vweird.f32 %v3076
    %vm3083 = vweird.f32 %v3077
    %vm3084 = vmor %vm3082, %vm3083
    %v3085 = vsel %vm3084, %v3077, %v3081
    %v3086 = vand.u32 2147483647, %v3076
    %vm3087 = vcmp.eq.f32.partialorder %v3086, 8.507059e+37
    %v3088 = vand.u32 %v3076, 2147483648
    %v3089 = vor.u32 1.1754944e-38, %v3088
    %v3090 = vsel %vm3087, %v3089, %v3085
    %v3091 = vmul.f32 1.0, %v3090
    %v3092 = vsub.f32 1.0, %v3091
    %3094 = vrot.lane.b32.xlu0 %v3092, 64
    %v3095 = vpop.permute.xlu0 %3094
    %v3097 = vmul.f32 %v3066, %v3095
    %3099 = vrot.lane.b32.xlu0 %v3066, 32
    %v3100 = vpop.permute.xlu0 %3099
    %v3102 = vmul.f32 %v3091, %v3100
    %3104 = vrot.lane.b32.xlu0 %v3102, 64
    %v3105 = vpop.permute.xlu0 %3104
    %v3107 = vadd.f32 %v3097, %v3105
    %v3108 = vrot.slane %v2097, 7
    %v3109 = vrot.slane %v2120, 7
    %v3112 = vrot.slane %v2100, 6
    %v3113 = vrot.slane %v2123, 6
    %v3116 = vsel %vm298, %v3108, %v3112
    %v3117 = vsel %vm298, %v3109, %v3113
    %v3119 = vsel %vm415, %v3107, 0
    %3121 = vmatpush.msra.mxu0 0.0
    %3122 = vmatpush.msra.mxu0 0.0
    %3123 = vmatpush.msra.mxu0 0.0
    %3124 = vmatpush.msra.mxu0 0.0
    %3125 = vmatpush.msra.mxu0 0.0
    %3126 = vmatpush.msra.mxu0 0.0
    %3127 = vmatpush.msra.mxu0 0.0
    %3128 = vmatpush.msra.mxu0 0.0
    %3129 = vmatpush.msra.mxu0 0.0
    %3130 = vmatpush.msra.mxu0 0.0
    %3131 = vmatpush.msra.mxu0 0.0
    %3132 = vmatpush.msra.mxu0 0.0
    %3133 = vmatpush.msra.mxu0 %v2128
    %3134 = vmatpush.msra.mxu0 %v2127
    %3135 = vmatpush.msra.mxu0 %v2126
    %3136 = vmatpush.msra.mxu0 %v2125
    %3137 = vmatmul.f32.gmra.mxu0 %v3119
    %v3138 = vpop.f32.mrf.mxu0
    %v3139 = vadd.f32 0.0, %v3138
    %3140 = vdwg.mxu0
    %v3141 = vadd.f32 %v3116, %v3139
    %v3142 = vxor.u32 %v3141, 2147483648
    %v3143 = vmul.f32 %v3142, 1.442695
    %v3144 = vpow.pop %v3143
    %v3145 = vadd.f32 %v3144, 1.0
    %v3146 = vrcp.pop %v3145
    %v3147 = vmul.f32 %v3145, %v3146
    %v3148 = vsub.f32 1.0, %v3147
    %v3149 = vmul.f32 %v3146, %v3148
    %v3150 = vadd.f32 %v3146, %v3149
    %vm3151 = vweird.f32 %v3145
    %vm3152 = vweird.f32 %v3146
    %vm3153 = vmor %vm3151, %vm3152
    %v3154 = vsel %vm3153, %v3146, %v3150
    %v3155 = vand.u32 2147483647, %v3145
    %vm3156 = vcmp.eq.f32.partialorder %v3155, 8.507059e+37
    %v3157 = vand.u32 %v3145, 2147483648
    %v3158 = vor.u32 1.1754944e-38, %v3157
    %v3159 = vsel %vm3156, %v3158, %v3154
    %v3160 = vmul.f32 1.0, %v3159
    %v3161 = vtanh.pop %v3141
    %v3162 = vmul.f32 %v3160, %v3033
    %3164 = vrot.lane.b32.xlu0 %v3161, 64
    %v3165 = vpop.permute.xlu0 %3164
    %v3167 = vmul.f32 %v3160, %v3165
    %3169 = vrot.lane.b32.xlu0 %v3167, 32
    %v3170 = vpop.permute.xlu0 %3169
    %v3172 = vadd.f32 %v3162, %v3170
    %v3173 = vtanh.pop %v3172
    %3175 = vrot.lane.b32.xlu0 %v3173, 64
    %v3176 = vpop.permute.xlu0 %3175
    %v3178 = vmul.f32 %v3160, %v3176
    %3180 = vrot.lane.b32.xlu0 %v3178, 32
    %v3181 = vpop.permute.xlu0 %3180
    %v3182 = vsel %vm415, %v3181, 0
    %3184 = vmatpush.msra.mxu0 0.0
    %3185 = vmatpush.msra.mxu0 0.0
    %3186 = vmatpush.msra.mxu0 0.0
    %3187 = vmatpush.msra.mxu0 0.0
    %3188 = vmatpush.msra.mxu0 0.0
    %3189 = vmatpush.msra.mxu0 0.0
    %3190 = vmatpush.msra.mxu0 0.0
    %3191 = vmatpush.msra.mxu0 0.0
    %3192 = vmatpush.msra.mxu0 0.0
    %3193 = vmatpush.msra.mxu0 0.0
    %3194 = vmatpush.msra.mxu0 0.0
    %3195 = vmatpush.msra.mxu0 0.0
    %3196 = vmatpush.msra.mxu0 %v2132
    %3197 = vmatpush.msra.mxu0 %v2131
    %3198 = vmatpush.msra.mxu0 %v2130
    %3199 = vmatpush.msra.mxu0 %v2129
    %3200 = vmatmul.f32.gmra.mxu0 %v3182
    %v3201 = vpop.f32.mrf.mxu0
    %v3202 = vadd.f32 0.0, %v3201
    %3203 = vdwg.mxu0
    %v3204 = vadd.f32 %v3117, %v3202
    %v3205 = vtanh.pop %v3204
    %v3206 = vmul.f32 %v3204, %v1517
    %3208 = vrot.lane.b32.xlu0 %v3204, 96
    %v3209 = vpop.permute.xlu0 %3208
    %v3211 = vadd.f32 %v3206, %v3209
    %v3212 = vxor.u32 %v3211, 2147483648
    %v3213 = vmul.f32 %v3212, 1.442695
    %v3214 = vpow.pop %v3213
    %v3215 = vadd.f32 %v3214, 1.0
    %v3216 = vrcp.pop %v3215
    %v3217 = vmul.f32 %v3215, %v3216
    %v3218 = vsub.f32 1.0, %v3217
    %v3219 = vmul.f32 %v3216, %v3218
    %v3220 = vadd.f32 %v3216, %v3219
    %vm3221 = vweird.f32 %v3215
    %vm3222 = vweird.f32 %v3216
    %vm3223 = vmor %vm3221, %vm3222
    %v3224 = vsel %vm3223, %v3216, %v3220
    %v3225 = vand.u32 2147483647, %v3215
    %vm3226 = vcmp.eq.f32.partialorder %v3225, 8.507059e+37
    %v3227 = vand.u32 %v3215, 2147483648
    %v3228 = vor.u32 1.1754944e-38, %v3227
    %v3229 = vsel %vm3226, %v3228, %v3224
    %v3230 = vmul.f32 1.0, %v3229
    %v3231 = vsub.f32 1.0, %v3230
    %3233 = vrot.lane.b32.xlu0 %v3231, 64
    %v3234 = vpop.permute.xlu0 %3233
    %v3236 = vmul.f32 %v3205, %v3234
    %3238 = vrot.lane.b32.xlu0 %v3205, 32
    %v3239 = vpop.permute.xlu0 %3238
    %v3241 = vmul.f32 %v3230, %v3239
    %3243 = vrot.lane.b32.xlu0 %v3241, 64
    %v3244 = vpop.permute.xlu0 %3243
    %v3246 = vadd.f32 %v3236, %v3244
    %3247 = vst.msk [vmem:[%s81] sm:$0x3] %vm1560, %v3246
    %3249 = vrot.lane.b32.xlu0 %v3172, 96
    %v3250 = vpop.permute.xlu0 %3249
    %3252 = vst.msk [vmem:[%s85] sm:$0x3] %vm1560, %v3250
    %v3253 = vrot.slane %v2412, 7
    %v3255 = vrot.slane %v2551, 6
    %v3257 = vrot.slane %v2690, 5
    %v3259 = vrot.slane %v2829, 4
    %v3261 = vrot.slane %v2968, 3
    %v3263 = vrot.slane %v3107, 2
    %v3266 = vrot.slane %v3246, 1
    %v3268 = vsel %vm298, %v2275, %v3253
    %v3269 = vsel %vm1583, %v3268, %v3255
    %v3270 = vsel %vm1585, %v3269, %v3257
    %v3271 = vsel %vm1587, %v3270, %v3259
    %v3272 = vsel %vm1589, %v3271, %v3261
    %v3273 = vsel %vm1591, %v3272, %v3263
    %v3274 = vsel %vm1593, %v3273, %v3266
    %v3275 = vrot.slane %v2275, 1
    %v3277 = vrot.slane %v2551, 7
    %v3279 = vrot.slane %v2690, 6
    %v3281 = vrot.slane %v2829, 5
    %v3283 = vrot.slane %v2968, 4
    %v3285 = vrot.slane %v3107, 3
    %v3287 = vrot.slane %v3246, 2
    %v3289 = vsel %vm298, %v3275, %v2412
    %v3290 = vsel %vm1583, %v3289, %v3277
    %v3291 = vsel %vm1585, %v3290, %v3279
    %v3292 = vsel %vm1587, %v3291, %v3281
    %v3293 = vsel %vm1589, %v3292, %v3283
    %v3294 = vsel %vm1591, %v3293, %v3285
    %v3295 = vsel %vm1593, %v3294, %v3287
    %v3296 = vld [vmem:[#allocation10] sm:$0xff]
    %v3297 = vld [vmem:[#allocation10 + $0x8] sm:$0xff]
    %v3298 = vld [vmem:[%s47] sm:$0x1]
    %v3300 = vperm.slane %v3298, 0
    %v3303 = vsel %vm1622, %v3274, 0
    %v3306 = vsel %vm1622, %v3295, 0
    %3308 = vmatpush.msra.mxu0 0.0
    %3309 = vmatpush.msra.mxu0 0.0
    %3310 = vmatpush.msra.mxu0 0.0
    %3311 = vmatpush.msra.mxu0 0.0
    %3312 = vmatpush.msra.mxu0 0.0
    %3313 = vmatpush.msra.mxu0 0.0
    %3314 = vmatpush.msra.mxu0 0.0
    %3315 = vmatpush.msra.mxu0 0.0
    %3316 = vmatpush.msra.mxu0 0.0
    %3317 = vmatpush.msra.mxu0 0.0
    %3318 = vmatpush.msra.mxu0 0.0
    %3319 = vmatpush.msra.mxu0 0.0
    %3320 = vmatpush.msra.mxu0 0.0
    %3321 = vmatpush.msra.mxu0 0.0
    %3322 = vmatpush.msra.mxu0 %v3297
    %3323 = vmatpush.msra.mxu0 %v3296
    %3324 = vmatmul.f32.gmra.mxu0 %v3303
    %v3325 = vpop.f32.mrf.mxu0
    %v3326 = vadd.f32 %v3300, %v3325
    %3327 = vmatmul.f32.gmra.mxu0 %v3306
    %v3328 = vpop.f32.mrf.mxu0
    %v3329 = vadd.f32 %v3300, %v3328
    %3330 = vdwg.mxu0
    %v3331 = vld [vmem:[#allocation11] sm:$0xff]
    %v3332 = vld [vmem:[#allocation11 + $0x8] sm:$0xff]
    %v3333 = vld [vmem:[%s51] sm:$0x1]
    %v3335 = vperm.slane %v3333, 0
    %3337 = vmatpush.msra.mxu0 0.0
    %3338 = vmatpush.msra.mxu0 0.0
    %3339 = vmatpush.msra.mxu0 0.0
    %3340 = vmatpush.msra.mxu0 0.0
    %3341 = vmatpush.msra.mxu0 0.0
    %3342 = vmatpush.msra.mxu0 0.0
    %3343 = vmatpush.msra.mxu0 0.0
    %3344 = vmatpush.msra.mxu0 0.0
    %3345 = vmatpush.msra.mxu0 0.0
    %3346 = vmatpush.msra.mxu0 0.0
    %3347 = vmatpush.msra.mxu0 0.0
    %3348 = vmatpush.msra.mxu0 0.0
    %3349 = vmatpush.msra.mxu0 0.0
    %3350 = vmatpush.msra.mxu0 0.0
    %3351 = vmatpush.msra.mxu0 %v3332
    %3352 = vmatpush.msra.mxu0 %v3331
    %3353 = vmatmul.f32.gmra.mxu0 %v3303
    %v3354 = vpop.f32.mrf.mxu0
    %v3355 = vadd.f32 %v3335, %v3354
    %3356 = vmatmul.f32.gmra.mxu0 %v3306
    %v3357 = vpop.f32.mrf.mxu0
    %v3358 = vadd.f32 %v3335, %v3357
    %3359 = vdwg.mxu0
    %v3360 = vld [vmem:[%s53] sm:$0xff]
    %v3361 = vld [vmem:[%s53 + $0x8] sm:$0xff]
    %v3362 = vld [vmem:[%s55] sm:$0x1]
    %v3364 = vperm.slane %v3362, 0
    %3366 = vmatpush.msra.mxu0 0.0
    %3367 = vmatpush.msra.mxu0 0.0
    %3368 = vmatpush.msra.mxu0 0.0
    %3369 = vmatpush.msra.mxu0 0.0
    %3370 = vmatpush.msra.mxu0 0.0
    %3371 = vmatpush.msra.mxu0 0.0
    %3372 = vmatpush.msra.mxu0 0.0
    %3373 = vmatpush.msra.mxu0 0.0
    %3374 = vmatpush.msra.mxu0 0.0
    %3375 = vmatpush.msra.mxu0 0.0
    %3376 = vmatpush.msra.mxu0 0.0
    %3377 = vmatpush.msra.mxu0 0.0
    %3378 = vmatpush.msra.mxu0 0.0
    %3379 = vmatpush.msra.mxu0 0.0
    %3380 = vmatpush.msra.mxu0 %v3361
    %3381 = vmatpush.msra.mxu0 %v3360
    %3382 = vmatmul.f32.gmra.mxu0 %v3303
    %v3383 = vpop.f32.mrf.mxu0
    %v3384 = vadd.f32 %v3364, %v3383
    %3385 = vmatmul.f32.gmra.mxu0 %v3306
    %v3386 = vpop.f32.mrf.mxu0
    %v3387 = vadd.f32 %v3364, %v3386
    %3388 = vdwg.mxu0
    %v3390 = vsel %vm344, %v3326, 0
    %v3393 = vsel %vm344, %v3355, 0
    %3395 = vmatpush.xpose.msra.mxu0 0.0
    %3396 = vmatpush.xpose.msra.mxu0 0.0
    %3397 = vmatpush.xpose.msra.mxu0 0.0
    %3398 = vmatpush.xpose.msra.mxu0 0.0
    %3399 = vmatpush.xpose.msra.mxu0 0.0
    %3400 = vmatpush.xpose.msra.mxu0 0.0
    %3401 = vmatpush.xpose.msra.mxu0 0.0
    %3402 = vmatpush.xpose.msra.mxu0 0.0
    %3403 = vmatpush.xpose.msra.mxu0 0.0
    %3404 = vmatpush.xpose.msra.mxu0 0.0
    %3405 = vmatpush.xpose.msra.mxu0 0.0
    %3406 = vmatpush.xpose.msra.mxu0 0.0
    %3407 = vmatpush.xpose.msra.mxu0 0.0
    %3408 = vmatpush.xpose.msra.mxu0 0.0
    %3409 = vmatpush.xpose.msra.mxu0 0.0
    %3410 = vmatpush.xpose.msra.mxu0 %v3393
    %3411 = vmatmul.f32.gmra.mxu0 %v3390
    %v3412 = vpop.f32.mrf.mxu0
    %v3413 = vadd.f32 0.0, %v3412
    %3414 = vdwg.mxu0
    %v3415 = vmul.f32 %v3413, 0.35355338
    %v3416 = vsel %vm344, %v3415, -inf
    %3417 = vmax.xlane.f32.xlu0 %v3416
    %v3418 = vpop.xlane.xlu0 %3417
    %v3419 = vsub.f32 %v3415, %v3418
    %v3420 = vmul.f32 %v3419, 1.442695
    %v3421 = vpow.pop %v3420
    %v3422 = vsel %vm344, %v3421, 0.0
    %3423 = vadd.xlane.f32.xlu0 %v3422
    %v3424 = vpop.xlane.xlu0 %3423
    %v3425 = vrcp.pop %v3424
    %v3426 = vmul.f32 %v3424, %v3425
    %v3427 = vsub.f32 1.0, %v3426
    %v3428 = vmul.f32 %v3425, %v3427
    %v3429 = vadd.f32 %v3425, %v3428
    %vm3430 = vweird.f32 %v3424
    %vm3431 = vweird.f32 %v3425
    %vm3432 = vmor %vm3430, %vm3431
    %v3433 = vsel %vm3432, %v3425, %v3429
    %v3434 = vand.u32 2147483647, %v3424
    %vm3435 = vcmp.eq.f32.partialorder %v3434, 8.507059e+37
    %v3436 = vand.u32 %v3424, 2147483648
    %v3437 = vor.u32 1.1754944e-38, %v3436
    %v3438 = vsel %vm3435, %v3437, %v3433
    %v3439 = vmul.f32 %v3421, %v3438
    %v3441 = vsel %vm344, %v3439, 0
    %3443 = vmatpush.msra.mxu0 0.0
    %3444 = vmatpush.msra.mxu0 0.0
    %3445 = vmatpush.msra.mxu0 0.0
    %3446 = vmatpush.msra.mxu0 0.0
    %3447 = vmatpush.msra.mxu0 0.0
    %3448 = vmatpush.msra.mxu0 0.0
    %3449 = vmatpush.msra.mxu0 0.0
    %3450 = vmatpush.msra.mxu0 0.0
    %3451 = vmatpush.msra.mxu0 0.0
    %3452 = vmatpush.msra.mxu0 0.0
    %3453 = vmatpush.msra.mxu0 0.0
    %3454 = vmatpush.msra.mxu0 0.0
    %3455 = vmatpush.msra.mxu0 0.0
    %3456 = vmatpush.msra.mxu0 0.0
    %3457 = vmatpush.msra.mxu0 0.0
    %3458 = vmatpush.msra.mxu0 %v3384
    %3459 = vmatmul.f32.gmra.mxu0 %v3441
    %v3460 = vpop.f32.mrf.mxu0
    %v3461 = vadd.f32 0.0, %v3460
    %3462 = vdwg.mxu0
    %3463 = vrot.lane.b32.xlu0 %v3326, 120
    %v3464 = vpop.permute.xlu0 %3463
    %3465 = vrot.lane.b32.xlu0 %v3355, 120
    %v3466 = vpop.permute.xlu0 %3465
    %v3467 = vsel %vm344, %v3464, 0
    %v3469 = vsel %vm344, %v3466, 0
    %3471 = vmatpush.xpose.msra.mxu0 0.0
    %3472 = vmatpush.xpose.msra.mxu0 0.0
    %3473 = vmatpush.xpose.msra.mxu0 0.0
    %3474 = vmatpush.xpose.msra.mxu0 0.0
    %3475 = vmatpush.xpose.msra.mxu0 0.0
    %3476 = vmatpush.xpose.msra.mxu0 0.0
    %3477 = vmatpush.xpose.msra.mxu0 0.0
    %3478 = vmatpush.xpose.msra.mxu0 0.0
    %3479 = vmatpush.xpose.msra.mxu0 0.0
    %3480 = vmatpush.xpose.msra.mxu0 0.0
    %3481 = vmatpush.xpose.msra.mxu0 0.0
    %3482 = vmatpush.xpose.msra.mxu0 0.0
    %3483 = vmatpush.xpose.msra.mxu0 0.0
    %3484 = vmatpush.xpose.msra.mxu0 0.0
    %3485 = vmatpush.xpose.msra.mxu0 0.0
    %3486 = vmatpush.xpose.msra.mxu0 %v3469
    %3487 = vmatmul.f32.gmra.mxu0 %v3467
    %v3488 = vpop.f32.mrf.mxu0
    %v3489 = vadd.f32 0.0, %v3488
    %3490 = vdwg.mxu0
    %v3491 = vmul.f32 %v3489, 0.35355338
    %v3492 = vsel %vm344, %v3491, -inf
    %3493 = vmax.xlane.f32.xlu0 %v3492
    %v3494 = vpop.xlane.xlu0 %3493
    %v3495 = vsub.f32 %v3491, %v3494
    %v3496 = vmul.f32 %v3495, 1.442695
    %v3497 = vpow.pop %v3496
    %v3498 = vsel %vm344, %v3497, 0.0
    %3499 = vadd.xlane.f32.xlu0 %v3498
    %v3500 = vpop.xlane.xlu0 %3499
    %v3501 = vrcp.pop %v3500
    %v3502 = vmul.f32 %v3500, %v3501
    %v3503 = vsub.f32 1.0, %v3502
    %v3504 = vmul.f32 %v3501, %v3503
    %v3505 = vadd.f32 %v3501, %v3504
    %vm3506 = vweird.f32 %v3500
    %vm3507 = vweird.f32 %v3501
    %vm3508 = vmor %vm3506, %vm3507
    %v3509 = vsel %vm3508, %v3501, %v3505
    %v3510 = vand.u32 2147483647, %v3500
    %vm3511 = vcmp.eq.f32.partialorder %v3510, 8.507059e+37
    %v3512 = vand.u32 %v3500, 2147483648
    %v3513 = vor.u32 1.1754944e-38, %v3512
    %v3514 = vsel %vm3511, %v3513, %v3509
    %v3515 = vmul.f32 %v3497, %v3514
    %3517 = vrot.lane.b32.xlu0 %v3384, 120
    %v3518 = vpop.permute.xlu0 %3517
    %v3521 = vsel %vm344, %v3515, 0
    %3523 = vmatpush.msra.mxu0 0.0
    %3524 = vmatpush.msra.mxu0 0.0
    %3525 = vmatpush.msra.mxu0 0.0
    %3526 = vmatpush.msra.mxu0 0.0
    %3527 = vmatpush.msra.mxu0 0.0
    %3528 = vmatpush.msra.mxu0 0.0
    %3529 = vmatpush.msra.mxu0 0.0
    %3530 = vmatpush.msra.mxu0 0.0
    %3531 = vmatpush.msra.mxu0 0.0
    %3532 = vmatpush.msra.mxu0 0.0
    %3533 = vmatpush.msra.mxu0 0.0
    %3534 = vmatpush.msra.mxu0 0.0
    %3535 = vmatpush.msra.mxu0 0.0
    %3536 = vmatpush.msra.mxu0 0.0
    %3537 = vmatpush.msra.mxu0 0.0
    %3538 = vmatpush.msra.mxu0 %v3518
    %3539 = vmatmul.f32.gmra.mxu0 %v3521
    %v3540 = vpop.f32.mrf.mxu0
    %v3541 = vadd.f32 0.0, %v3540
    %3542 = vdwg.mxu0
    %3544 = vrot.lane.b32.xlu0 %v3541, 8
    %v3545 = vpop.permute.xlu0 %3544
    %v3547 = vsel %vm344, %v3461, %v3545
    %v3549 = vsel %vm344, %v3329, 0
    %v3552 = vsel %vm344, %v3358, 0
    %3554 = vmatpush.xpose.msra.mxu0 0.0
    %3555 = vmatpush.xpose.msra.mxu0 0.0
    %3556 = vmatpush.xpose.msra.mxu0 0.0
    %3557 = vmatpush.xpose.msra.mxu0 0.0
    %3558 = vmatpush.xpose.msra.mxu0 0.0
    %3559 = vmatpush.xpose.msra.mxu0 0.0
    %3560 = vmatpush.xpose.msra.mxu0 0.0
    %3561 = vmatpush.xpose.msra.mxu0 0.0
    %3562 = vmatpush.xpose.msra.mxu0 0.0
    %3563 = vmatpush.xpose.msra.mxu0 0.0
    %3564 = vmatpush.xpose.msra.mxu0 0.0
    %3565 = vmatpush.xpose.msra.mxu0 0.0
    %3566 = vmatpush.xpose.msra.mxu0 0.0
    %3567 = vmatpush.xpose.msra.mxu0 0.0
    %3568 = vmatpush.xpose.msra.mxu0 0.0
    %3569 = vmatpush.xpose.msra.mxu0 %v3552
    %3570 = vmatmul.f32.gmra.mxu0 %v3549
    %v3571 = vpop.f32.mrf.mxu0
    %v3572 = vadd.f32 0.0, %v3571
    %3573 = vdwg.mxu0
    %v3574 = vmul.f32 %v3572, 0.35355338
    %v3575 = vsel %vm344, %v3574, -inf
    %3576 = vmax.xlane.f32.xlu0 %v3575
    %v3577 = vpop.xlane.xlu0 %3576
    %v3578 = vsub.f32 %v3574, %v3577
    %v3579 = vmul.f32 %v3578, 1.442695
    %v3580 = vpow.pop %v3579
    %v3581 = vsel %vm344, %v3580, 0.0
    %3582 = vadd.xlane.f32.xlu0 %v3581
    %v3583 = vpop.xlane.xlu0 %3582
    %v3584 = vrcp.pop %v3583
    %v3585 = vmul.f32 %v3583, %v3584
    %v3586 = vsub.f32 1.0, %v3585
    %v3587 = vmul.f32 %v3584, %v3586
    %v3588 = vadd.f32 %v3584, %v3587
    %vm3589 = vweird.f32 %v3583
    %vm3590 = vweird.f32 %v3584
    %vm3591 = vmor %vm3589, %vm3590
    %v3592 = vsel %vm3591, %v3584, %v3588
    %v3593 = vand.u32 2147483647, %v3583
    %vm3594 = vcmp.eq.f32.partialorder %v3593, 8.507059e+37
    %v3595 = vand.u32 %v3583, 2147483648
    %v3596 = vor.u32 1.1754944e-38, %v3595
    %v3597 = vsel %vm3594, %v3596, %v3592
    %v3598 = vmul.f32 %v3580, %v3597
    %v3600 = vsel %vm344, %v3598, 0
    %3602 = vmatpush.msra.mxu0 0.0
    %3603 = vmatpush.msra.mxu0 0.0
    %3604 = vmatpush.msra.mxu0 0.0
    %3605 = vmatpush.msra.mxu0 0.0
    %3606 = vmatpush.msra.mxu0 0.0
    %3607 = vmatpush.msra.mxu0 0.0
    %3608 = vmatpush.msra.mxu0 0.0
    %3609 = vmatpush.msra.mxu0 0.0
    %3610 = vmatpush.msra.mxu0 0.0
    %3611 = vmatpush.msra.mxu0 0.0
    %3612 = vmatpush.msra.mxu0 0.0
    %3613 = vmatpush.msra.mxu0 0.0
    %3614 = vmatpush.msra.mxu0 0.0
    %3615 = vmatpush.msra.mxu0 0.0
    %3616 = vmatpush.msra.mxu0 0.0
    %3617 = vmatpush.msra.mxu0 %v3387
    %3618 = vmatmul.f32.gmra.mxu0 %v3600
    %v3619 = vpop.f32.mrf.mxu0
    %v3620 = vadd.f32 0.0, %v3619
    %3621 = vdwg.mxu0
    %3622 = vrot.lane.b32.xlu0 %v3329, 120
    %v3623 = vpop.permute.xlu0 %3622
    %3624 = vrot.lane.b32.xlu0 %v3358, 120
    %v3625 = vpop.permute.xlu0 %3624
    %v3626 = vsel %vm344, %v3623, 0
    %v3628 = vsel %vm344, %v3625, 0
    %3630 = vmatpush.xpose.msra.mxu0 0.0
    %3631 = vmatpush.xpose.msra.mxu0 0.0
    %3632 = vmatpush.xpose.msra.mxu0 0.0
    %3633 = vmatpush.xpose.msra.mxu0 0.0
    %3634 = vmatpush.xpose.msra.mxu0 0.0
    %3635 = vmatpush.xpose.msra.mxu0 0.0
    %3636 = vmatpush.xpose.msra.mxu0 0.0
    %3637 = vmatpush.xpose.msra.mxu0 0.0
    %3638 = vmatpush.xpose.msra.mxu0 0.0
    %3639 = vmatpush.xpose.msra.mxu0 0.0
    %3640 = vmatpush.xpose.msra.mxu0 0.0
    %3641 = vmatpush.xpose.msra.mxu0 0.0
    %3642 = vmatpush.xpose.msra.mxu0 0.0
    %3643 = vmatpush.xpose.msra.mxu0 0.0
    %3644 = vmatpush.xpose.msra.mxu0 0.0
    %3645 = vmatpush.xpose.msra.mxu0 %v3628
    %3646 = vmatmul.f32.gmra.mxu0 %v3626
    %v3647 = vpop.f32.mrf.mxu0
    %v3648 = vadd.f32 0.0, %v3647
    %3649 = vdwg.mxu0
    %v3650 = vmul.f32 %v3648, 0.35355338
    %v3651 = vsel %vm344, %v3650, -inf
    %3652 = vmax.xlane.f32.xlu0 %v3651
    %v3653 = vpop.xlane.xlu0 %3652
    %v3654 = vsub.f32 %v3650, %v3653
    %v3655 = vmul.f32 %v3654, 1.442695
    %v3656 = vpow.pop %v3655
    %v3657 = vsel %vm344, %v3656, 0.0
    %3658 = vadd.xlane.f32.xlu0 %v3657
    %v3659 = vpop.xlane.xlu0 %3658
    %v3660 = vrcp.pop %v3659
    %v3661 = vmul.f32 %v3659, %v3660
    %v3662 = vsub.f32 1.0, %v3661
    %v3663 = vmul.f32 %v3660, %v3662
    %v3664 = vadd.f32 %v3660, %v3663
    %vm3665 = vweird.f32 %v3659
    %vm3666 = vweird.f32 %v3660
    %vm3667 = vmor %vm3665, %vm3666
    %v3668 = vsel %vm3667, %v3660, %v3664
    %v3669 = vand.u32 2147483647, %v3659
    %vm3670 = vcmp.eq.f32.partialorder %v3669, 8.507059e+37
    %v3671 = vand.u32 %v3659, 2147483648
    %v3672 = vor.u32 1.1754944e-38, %v3671
    %v3673 = vsel %vm3670, %v3672, %v3668
    %v3674 = vmul.f32 %v3656, %v3673
    %3676 = vrot.lane.b32.xlu0 %v3387, 120
    %v3677 = vpop.permute.xlu0 %3676
    %v3680 = vsel %vm344, %v3674, 0
    %3682 = vmatpush.msra.mxu0 0.0
    %3683 = vmatpush.msra.mxu0 0.0
    %3684 = vmatpush.msra.mxu0 0.0
    %3685 = vmatpush.msra.mxu0 0.0
    %3686 = vmatpush.msra.mxu0 0.0
    %3687 = vmatpush.msra.mxu0 0.0
    %3688 = vmatpush.msra.mxu0 0.0
    %3689 = vmatpush.msra.mxu0 0.0
    %3690 = vmatpush.msra.mxu0 0.0
    %3691 = vmatpush.msra.mxu0 0.0
    %3692 = vmatpush.msra.mxu0 0.0
    %3693 = vmatpush.msra.mxu0 0.0
    %3694 = vmatpush.msra.mxu0 0.0
    %3695 = vmatpush.msra.mxu0 0.0
    %3696 = vmatpush.msra.mxu0 0.0
    %3697 = vmatpush.msra.mxu0 %v3677
    %3698 = vmatmul.f32.gmra.mxu0 %v3680
    %v3699 = vpop.f32.mrf.mxu0
    %v3700 = vadd.f32 0.0, %v3699
    %3701 = vdwg.mxu0
    %3703 = vrot.lane.b32.xlu0 %v3700, 8
    %v3704 = vpop.permute.xlu0 %3703
    %v3706 = vsel %vm344, %v3620, %v3704
    %v3707 = vld [vmem:[#allocation13] sm:$0xff]
    %v3708 = vld [vmem:[#allocation13 + $0x8] sm:$0xff]
    %v3709 = vld [vmem:[%s59] sm:$0x1]
    %v3711 = vperm.slane %v3709, 0
    %v3714 = vsel %vm1622, %v3547, 0
    %v3717 = vsel %vm1622, %v3706, 0
    %3719 = vmatpush.msra.mxu0 0.0
    %3720 = vmatpush.msra.mxu0 0.0
    %3721 = vmatpush.msra.mxu0 0.0
    %3722 = vmatpush.msra.mxu0 0.0
    %3723 = vmatpush.msra.mxu0 0.0
    %3724 = vmatpush.msra.mxu0 0.0
    %3725 = vmatpush.msra.mxu0 0.0
    %3726 = vmatpush.msra.mxu0 0.0
    %3727 = vmatpush.msra.mxu0 0.0
    %3728 = vmatpush.msra.mxu0 0.0
    %3729 = vmatpush.msra.mxu0 0.0
    %3730 = vmatpush.msra.mxu0 0.0
    %3731 = vmatpush.msra.mxu0 0.0
    %3732 = vmatpush.msra.mxu0 0.0
    %3733 = vmatpush.msra.mxu0 %v3708
    %3734 = vmatpush.msra.mxu0 %v3707
    %3735 = vmatmul.f32.gmra.mxu0 %v3714
    %v3736 = vpop.f32.mrf.mxu0
    %v3737 = vadd.f32 %v3711, %v3736
    %3738 = vmatmul.f32.gmra.mxu0 %v3717
    %v3739 = vpop.f32.mrf.mxu0
    %v3740 = vadd.f32 %v3711, %v3739
    %3741 = vdwg.mxu0
    %v3743 = vrot.slane %v3737, 7
    %v3746 = vrot.slane %v3740, 6
    %v3748 = vsel %vm298, %v3743, %v3746
    %v3749 = vld [vmem:[#allocation14] sm:$0xff]
    %v3750 = vld [vmem:[#allocation14 + $0x8] sm:$0xff]
    %v3751 = vld [vmem:[%s63] sm:$0x1]
    %v3753 = vperm.slane %v3751, 0
    %v3756 = vsel %vm1622, %v3748, 0
    %3758 = vmatpush.msra.mxu0 0.0
    %3759 = vmatpush.msra.mxu0 0.0
    %3760 = vmatpush.msra.mxu0 0.0
    %3761 = vmatpush.msra.mxu0 0.0
    %3762 = vmatpush.msra.mxu0 0.0
    %3763 = vmatpush.msra.mxu0 0.0
    %3764 = vmatpush.msra.mxu0 0.0
    %3765 = vmatpush.msra.mxu0 0.0
    %3766 = vmatpush.msra.mxu0 0.0
    %3767 = vmatpush.msra.mxu0 0.0
    %3768 = vmatpush.msra.mxu0 0.0
    %3769 = vmatpush.msra.mxu0 0.0
    %3770 = vmatpush.msra.mxu0 0.0
    %3771 = vmatpush.msra.mxu0 0.0
    %3772 = vmatpush.msra.mxu0 %v3750
    %3773 = vmatpush.msra.mxu0 %v3749
    %3774 = vmatmul.f32.gmra.mxu0 %v3756
    %v3775 = vpop.f32.mrf.mxu0
    %v3776 = vadd.f32 %v3753, %v3775
    %3777 = vdwg.mxu0
    %v3778 = vld [vmem:[%s65] sm:$0xff]
    %v3779 = vld [vmem:[%s65 + $0x8] sm:$0xff]
    %v3780 = vld [vmem:[%s65 + $0x10] sm:$0xff]
    %v3781 = vld [vmem:[%s65 + $0x18] sm:$0xff]
    %v3782 = vld [vmem:[%s67] sm:$0x1]
    %v3784 = vperm.slane %v3782, 0
    %v3787 = vsel %vm415, %v3776, 0
    %3789 = vmatpush.msra.mxu0 0.0
    %3790 = vmatpush.msra.mxu0 0.0
    %3791 = vmatpush.msra.mxu0 0.0
    %3792 = vmatpush.msra.mxu0 0.0
    %3793 = vmatpush.msra.mxu0 0.0
    %3794 = vmatpush.msra.mxu0 0.0
    %3795 = vmatpush.msra.mxu0 0.0
    %3796 = vmatpush.msra.mxu0 0.0
    %3797 = vmatpush.msra.mxu0 0.0
    %3798 = vmatpush.msra.mxu0 0.0
    %3799 = vmatpush.msra.mxu0 0.0
    %3800 = vmatpush.msra.mxu0 0.0
    %3801 = vmatpush.msra.mxu0 %v3781
    %3802 = vmatpush.msra.mxu0 %v3780
    %3803 = vmatpush.msra.mxu0 %v3779
    %3804 = vmatpush.msra.mxu0 %v3778
    %3805 = vmatmul.f32.gmra.mxu0 %v3787
    %v3806 = vpop.f32.mrf.mxu0
    %v3807 = vadd.f32 %v3784, %v3806
    %3808 = vdwg.mxu0
    %vm3809 = vcmask 123904
    %v3810 = vsel %vm3809, %v3807, 0.0
    %3811 = vadd.xlane.f32.xlu0 %v3810
    %v3812 = vpop.xlane.xlu0 %3811
    %v3813 = vrcp.pop 16.0
    %v3814 = vmul.f32 16.0, %v3813
    %v3815 = vsub.f32 1.0, %v3814
    %v3816 = vmul.f32 %v3813, %v3815
    %v3817 = vadd.f32 %v3813, %v3816
    %vm3818 = vweird.f32 %v3813
    %v3819 = vsel %vm3818, %v3813, %v3817
    %v3820 = vmul.f32 %v3812, %v3819
    %v3821 = vsub.f32 %v3807, %v3820
    %v3822 = vmul.f32 %v3821, %v3821
    %v3823 = vsel %vm3809, %v3822, 0.0
    %3824 = vadd.xlane.f32.xlu0 %v3823
    %v3825 = vpop.xlane.xlu0 %3824
    %v3826 = vmul.f32 %v3825, %v3819
    %v3827 = vadd.f32 %v3826, 1e-06
    %v3828 = vrsqrt.pop %v3827
    %v3829 = vmul.f32 %v3828, %v3827
    %v3830 = vmul.f32 %v3829, %v3828
    %v3831 = vmul.f32 0.5, %v3830
    %v3832 = vsub.f32 1.5, %v3831
    %v3833 = vmul.f32 %v3828, %v3832
    %vm3834 = vweird.f32 %v3827
    %vm3835 = vweird.f32 %v3828
    %vm3836 = vmor %vm3834, %vm3835
    %v3837 = vsel %vm3836, %v3828, %v3833
    %v3838 = vmul.f32 %v3821, %v3837
    %v3839 = vld [vmem:[%s69] sm:$0x1]
    %v3841 = vperm.slane %v3839, 0
    %v3843 = vmul.f32 %v3838, %v3841
    %v3844 = vld [vmem:[%s71] sm:$0x1]
    %v3846 = vperm.slane %v3844, 0
    %v3848 = vadd.f32 %v3843, %v3846
    %vm3849 = vcmp.ge.f32.partialorder %v3848, 0.0
    %v3850 = vmul.f32 %v3848, 0.01
    %v3851 = vsel %vm3849, %v3848, %v3850
    %v3852 = vld [vmem:[%s73] sm:$0xff]
    %v3853 = vld [vmem:[%s73 + $0x8] sm:$0xff]
    %v3854 = vld [vmem:[%s75] sm:$0x1]
    %v3856 = vperm.slane %v3854, 0
    %v3859 = vsel %vm1622, %v3851, 0
    %3861 = vmatpush.msra.mxu0 0.0
    %3862 = vmatpush.msra.mxu0 0.0
    %3863 = vmatpush.msra.mxu0 0.0
    %3864 = vmatpush.msra.mxu0 0.0
    %3865 = vmatpush.msra.mxu0 0.0
    %3866 = vmatpush.msra.mxu0 0.0
    %3867 = vmatpush.msra.mxu0 0.0
    %3868 = vmatpush.msra.mxu0 0.0
    %3869 = vmatpush.msra.mxu0 0.0
    %3870 = vmatpush.msra.mxu0 0.0
    %3871 = vmatpush.msra.mxu0 0.0
    %3872 = vmatpush.msra.mxu0 0.0
    %3873 = vmatpush.msra.mxu0 0.0
    %3874 = vmatpush.msra.mxu0 0.0
    %3875 = vmatpush.msra.mxu0 %v3853
    %3876 = vmatpush.msra.mxu0 %v3852
    %3877 = vmatmul.f32.gmra.mxu0 %v3859
    %v3878 = vpop.f32.mrf.mxu0
    %v3879 = vadd.f32 %v3856, %v3878
    %3880 = vdwg.mxu0
    %vm3881 = vcmask 25600
    %3882 = vst.msk [vmem:[#allocation16] sm:$0x3] %vm3881, %v3879
    // Predicated region
    $region186: #{cfc_net_forward.1} parent=1 // pred_check
      _
    $region187: #{cfc_net_forward.1} parent=1 // pred_check_branch
      %3884 = sbr.rel (0) target = $region189
    $region188: #{cfc_net_forward.1} parent=1 // pred_region
      %3886 = vsyncadd [#allocation4], 0
      %s3888 = sshll.u32 [#allocation16], 4
      %s3889 = int_to_ptr.vmem [resolvable:$true] %s3888
      %s3890 = sshll.u32 %s77, 4
      %s3891 = int_to_ptr.hbm [resolvable:$true] %s3890
      %3893 = dma.vmem_to_hbm [thread:$0]  %s3889, 32, %s3891, [#allocation4]
    $region189: #{cfc_net_forward.1} parent=1 // pred_fallthru
      _
    // Predicated region
    $region190: #{cfc_net_forward.1} parent=1 // pred_check
      _
    $region191: #{cfc_net_forward.1} parent=1 // pred_check_branch
      %3895 = sbr.rel (0) target = $region193
    $region192: #{cfc_net_forward.1} parent=1 // pred_region
      _
    $region193: #{cfc_net_forward.1} parent=1 // pred_fallthru
      _
    // Predicated region
    $region194: #{cfc_net_forward.1} parent=1 // pred_check
      _
    $region195: #{cfc_net_forward.1} parent=1 // pred_check_branch
      %3897 = sbr.rel (0) target = $region197
    $region196: #{cfc_net_forward.1} parent=1 // pred_region
      _
    $region197: #{cfc_net_forward.1} parent=1 // pred_fallthru
      _
    // Predicated region
    $region198: #{cfc_net_forward.1} parent=1 // pred_check
      _
    $region199: #{cfc_net_forward.1} parent=1 // pred_check_branch
      %3899 = sbr.rel (0) target = $region201
    $region200: #{cfc_net_forward.1} parent=1 // pred_region
      _
    $region201: #{cfc_net_forward.1} parent=1 // pred_fallthru
      _
    // Predicated region
    $region202: #{cfc_net_forward.1} parent=1 // pred_check
      _
    $region203: #{cfc_net_forward.1} parent=1 // pred_check_branch
      %3901 = sbr.rel (0) target = $region205
    $region204: #{cfc_net_forward.1} parent=1 // pred_region
      _
    $region205: #{cfc_net_forward.1} parent=1 // pred_fallthru
      _
    // Predicated region
    $region206: #{cfc_net_forward.1} parent=1 // pred_check
      _
    $region207: #{cfc_net_forward.1} parent=1 // pred_check_branch
      %3903 = sbr.rel (0) target = $region209
    $region208: #{cfc_net_forward.1} parent=1 // pred_region
      %3905 = dma.done [#allocation4], 32
    $region209: #{cfc_net_forward.1} parent=1 // pred_fallthru
      _
    // Predicated region
    $region210: #{cfc_net_forward.1} parent=1 // pred_check
      _
    $region211: #{cfc_net_forward.1} parent=1 // pred_check_branch
      %3907 = sbr.rel (0) target = $region213
    $region212: #{cfc_net_forward.1} parent=1 // pred_region
      _
    $region213: #{cfc_net_forward.1} parent=1 // pred_fallthru
      _
    // Predicated region
    $region214: #{cfc_net_forward.1} parent=1 // pred_check
      _
    $region215: #{cfc_net_forward.1} parent=1 // pred_check_branch
      %3909 = sbr.rel (0) target = $region217
    $region216: #{cfc_net_forward.1} parent=1 // pred_region
      _
    $region217: #{cfc_net_forward.1} parent=1 // pred_fallthru
      _
    // Predicated region
    $region218: #{cfc_net_forward.1} parent=1 // pred_check
      _
    $region219: #{cfc_net_forward.1} parent=1 // pred_check_branch
      %3911 = sbr.rel (0) target = $region221
    $region220: #{cfc_net_forward.1} parent=1 // pred_region
      _
    $region221: #{cfc_net_forward.1} parent=1 // pred_fallthru
      _
    // Predicated region
    $region222: #{cfc_net_forward.1} parent=1 // pred_check
      _
    $region223: #{cfc_net_forward.1} parent=1 // pred_check_branch
      %3913 = sbr.rel (0) target = $region225
    $region224: #{cfc_net_forward.1} parent=1 // pred_region
      _
    $region225: #{cfc_net_forward.1} parent=1 // pred_fallthru
      _
    %3914 = vsyncpa [#allocation3], 1
    %3915 = vsyncpa [#allocation6], 1
    %3916 = vsyncpa [#allocation9], 1
    %3917 = vsyncpa [#allocation12], 1
    %3918 = vsyncpa [#allocation15], 1
    %3919 = vsyncpa [#allocation4], 1

</llo_original>
